<compile_context>
chip_gen: v7x
topology: tpu7x:2x2x1
jax: 0.10.0
libtpu: 0.0.40
codegen_flags: <defaults>
</compile_context>

<pallas_src>
import jax
import jax.numpy as jnp
import numpy as np
from jax.experimental import pallas as pl
from jax.experimental.pallas import tpu as pltpu

C_IN, C_OUT, K, PAD = 3, 4, 5, 2
H = W = 64
FC1_OUT = 64
N_CLASSES = 4
OUT_PAD = 128                          # fc2 output padded to one full lane tile
BN_EPS = 1e-5
KDIM = C_IN * K * (W + 2 * PAD)        # 1020 im2row features
KDIM_PAD = 1024                        # padded contraction dim for the conv matmul


# ---------------------------------------------------------------------------
# wrapper-side constant builders
# ---------------------------------------------------------------------------

def _build_conv_matrix(wconv, scale_c):
    """(1024, 256) bf16 banded conv matrix with the BN2d per-channel scale folded in.
    Row r = (ic*K + ky)*(W+2*PAD) + px   (1020 real rows, 4 zero rows of padding).
    Col c = (ox % 4)*64 + oc*16 + ox//4  (pool-friendly column permutation)."""
    wc = wconv * scale_c[:, None, None, None]                    # (4, 3, 5, 5)
    wb = np.zeros((KDIM_PAD, C_OUT * W), np.float32)
    ox = np.arange(W)
    for ic in range(C_IN):
        for ky in range(K):
            base = (ic * K + ky) * (W + 2 * PAD)
            for kx in range(K):
                for oc in range(C_OUT):
                    wb[base + ox + kx, oc * W + ox] = wc[oc, ic, ky, kx]
    # permute columns: new col (j=ox%4, oc, ox4=ox//4)  <-  old col oc*64 + 4*ox4 + j
    cn = np.arange(C_OUT * W)
    j, within = cn // 64, cn % 64
    oc_, ox4 = within // 16, within % 16
    src = oc_ * W + 4 * ox4 + j
    return jnp.asarray(wb[:, src], jnp.bfloat16)


def _build_fc1_blocks(w1):
    """(16, 64, 64) f32: w1r[oy4, oc*16+ox4, :] = w1[oc*256 + oy4*16 + ox4, :]."""
    w1r = np.asarray(w1, np.float32).reshape(C_OUT, H // 4, W // 4, FC1_OUT)
    w1r = w1r.transpose(1, 0, 2, 3).reshape(H // 4, C_OUT * (W // 4), FC1_OUT)
    return jnp.asarray(w1r, jnp.float32)


def _im2row(xp, nb):
    """(npad*64, 1024) bf16 im2row slab.  Row order inside each nb-sample block is
    (oy%4)*(nb*16) + (oy//4)*nb + b so the 4x4 max-pool becomes aligned slab maxes and the
    pooled rows come out ordered oy4*nb + b (aligned nb-row blocks for fc1)."""
    npad = xp.shape[0]
    win = jnp.stack([xp[:, :, ky:ky + H, :] for ky in range(K)], axis=3)   # (npad,3,64,5,68)
    win = win.transpose(0, 2, 1, 3, 4).reshape(npad, H, KDIM)              # (npad,64,1020)
    win = jnp.pad(win, ((0, 0), (0, 0), (0, KDIM_PAD - KDIM)))             # -> 1024
    win = win.reshape(npad // nb, nb, H // 4, 4, KDIM_PAD)                 # (g,b,oy4,j,:)
    win = win.transpose(0, 3, 2, 1, 4)                                     # (g,j,oy4,b,:)
    return win.reshape(npad * H, KDIM_PAD).astype(jnp.bfloat16)


# ---------------------------------------------------------------------------
# fused kernel
# ---------------------------------------------------------------------------

def fused_cnn_kernel(xr_ref, wb_ref, shift_ref, w1_ref, a1_ref, c1_ref,
                     w2_ref, b2_ref, o_ref):
    nb = o_ref.shape[0]

    # ---- Conv2d(3->4,k=5,pad=2) with BN2d scale folded in: ONE bf16 MXU matmul ----
    y = jnp.dot(xr_ref[...], wb_ref[...],
                preferred_element_type=jnp.float32)               # (nb*64, 256) f32

    # ---- relu(pool2x2(pool2x2(.))) == relu(pool4x4(.)); rows/cols were pre-permuted so
    # ---- the 4-way maxes are aligned slab maxes on the VPU (no selection matmuls) ----
    q = nb * (H // 4)
    rmax = jnp.maximum(jnp.maximum(y[0:q, :], y[q:2 * q, :]),
                       jnp.maximum(y[2 * q:3 * q, :], y[3 * q:4 * q, :]))   # (nb*16, 256)
    lmax = jnp.maximum(rmax[:, :128], rmax[:, 128:])                         # (nb*16, 128)
    pool = jnp.maximum(lmax[:, :64], lmax[:, 64:])                           # (nb*16, 64)
    # BN2d shift (constant within each pooled column) + ReLU after the max
    pool = jnp.maximum(pool + shift_ref[...], 0.0)                # rows oy4*nb+b, cols oc*16+ox4

    # TODO(synk): nn.Dropout() is identity in eval mode; training-mode masking not implemented.

    # ---- fc1 (1024->64): 16 aligned (nb,64)@(64,64) dots, 4 independent accumulators ----
    accs = [jnp.zeros((nb, FC1_OUT), jnp.float32) for _ in range(4)]
    for k in range(H // 4):
        accs[k % 4] = accs[k % 4] + jnp.dot(pool[k * nb:(k + 1) * nb, :], w1_ref[k],
                                            preferred_element_type=jnp.float32)
    h = (accs[0] + accs[1]) + (accs[2] + accs[3])

    # ---- fc1 bias + BN1d (eval) folded + ReLU ----
    h = jnp.maximum(h * a1_ref[...] + c1_ref[...], 0.0)

    # ---- fc2 (64->4, padded to 128 output lanes for unmasked stores) ----
    o_ref[...] = jnp.dot(h, w2_ref[...], preferred_element_type=jnp.float32) + b2_ref[...]


# ---------------------------------------------------------------------------
# wrapper
# ---------------------------------------------------------------------------

def mycnn2_forward(x, params):
    (wconv, bconv, gc, bc, mc, vc, w1, b1, g1, bt1, m1, v1, w2, b2) = params
    n = x.shape[0]
    # per-block work is now O(nb), so larger blocks are safe; keep 8 for small batches
    nb = 32 if n >= 32 else 8
    npad = -(-n // nb) * nb

    # fold conv bias + BN2d (eval running stats): scale -> conv weights, shift -> (1,64) vector
    scale_c = np.asarray(gc / jnp.sqrt(vc + BN_EPS), np.float32)
    shift_c = np.asarray(bc + (gc / jnp.sqrt(vc + BN_EPS)) * (bconv - mc), np.float32)
    wb = _build_conv_matrix(np.asarray(wconv, np.float32), scale_c)        # (1024,256) bf16
    shift_p = jnp.asarray(np.repeat(shift_c, W // 4), jnp.float32)[None, :]  # (1, 64)

    # fc1 blocks + fold fc1 bias + BN1d (eval)
    w1r = _build_fc1_blocks(w1)                                             # (16, 64, 64)
    a1 = np.asarray(g1 / jnp.sqrt(v1 + BN_EPS), np.float32)
    c1 = np.asarray(bt1, np.float32) + a1 * np.asarray(b1 - m1, np.float32)
    a1_j = jnp.asarray(a1)[None, :]
    c1_j = jnp.asarray(c1)[None, :]

    # fc2, padded to 128 output lanes
    w2p = np.zeros((FC1_OUT, OUT_PAD), np.float32)
    w2p[:, :N_CLASSES] = np.asarray(w2, np.float32)
    b2p = np.zeros((1, OUT_PAD), np.float32)
    b2p[0, :N_CLASSES] = np.asarray(b2, np.float32)
    w2_j = jnp.asarray(w2p)
    b2_j = jnp.asarray(b2p)

    # batch-pad + spatial zero-pad (padding=2), then wrapper-side im2row (layout plumbing)
    xp = jnp.pad(x, ((0, npad - n), (0, 0), (PAD, PAD), (PAD, PAD)))
    xr = _im2row(xp, nb)                                                    # (npad*64, 1024) bf16

    def cspec(a):
        nd = a.ndim
        return pl.BlockSpec(a.shape, lambda i: (0,) * nd)   # VMEM-resident constant

    grid_spec = pltpu.PrefetchScalarGridSpec(
        num_scalar_prefetch=0,
        grid=(npad // nb,),
        in_specs=[pl.BlockSpec((nb * H, KDIM_PAD), lambda i: (i, 0)),
                  cspec(wb), cspec(shift_p), cspec(w1r),
                  cspec(a1_j), cspec(c1_j), cspec(w2_j), cspec(b2_j)],
        out_specs=pl.BlockSpec((nb, OUT_PAD), lambda i: (i, 0)),
    )
    out = pl.pallas_call(
        fused_cnn_kernel,
        grid_spec=grid_spec,
        out_shape=jax.ShapeDtypeStruct((npad, OUT_PAD), jnp.float32),
        compiler_params=pltpu.CompilerParams(
            dimension_semantics=("parallel",),
            vmem_limit_bytes=32 * 1024 * 1024),
    )(xr, wb, shift_p, w1r, a1_j, c1_j, w2_j, b2_j)
    return out[:n, :N_CLASSES]


# ---------------- pure-JAX reference (for correctness check) ----------------

def _maxpool_ref(y):
    n, c, h, w = y.shape
    return y.reshape(n, c, h // 2, 2, w // 2, 2).max(axis=(3, 5))


def mycnn2_reference(x, params):
    (wconv, bconv, gc, bc, mc, vc, w1, b1, g1, bt1, m1, v1, w2, b2) = params
    y = jax.lax.conv_general_dilated(
        x, wconv, (1, 1), ((PAD, PAD), (PAD, PAD)),
        dimension_numbers=("NCHW", "OIHW", "NCHW"),
        precision=jax.lax.Precision.HIGHEST)
    y = y + bconv[None, :, None, None]
    y = (y - mc[None, :, None, None]) / jnp.sqrt(vc + BN_EPS)[None, :, None, None] \
        * gc[None, :, None, None] + bc[None, :, None, None]
    y = jnp.maximum(_maxpool_ref(y), 0.0)
    y = _maxpool_ref(y)
    f = y.reshape(x.shape[0], -1)
    h = jnp.dot(f, w1, precision=jax.lax.Precision.HIGHEST) + b1
    h = (h - m1) / jnp.sqrt(v1 + BN_EPS) * g1 + bt1
    h = jnp.maximum(h, 0.0)
    return jnp.dot(h, w2, precision=jax.lax.Precision.HIGHEST) + b2


if __name__ == "__main__":
    key = jax.random.PRNGKey(0)
    keys = jax.random.split(key, 16)
    # conv1: Conv2d(3, 4, kernel_size=5, padding=2), conv1_bn: BatchNorm2d(4)
    wconv = 0.1 * jax.random.normal(keys[0], (C_OUT, C_IN, K, K), jnp.float32)
    bconv = 0.1 * jax.random.normal(keys[1], (C_OUT,), jnp.float32)
    gc = 1.0 + 0.1 * jax.random.normal(keys[2], (C_OUT,), jnp.float32)
    bc = 0.1 * jax.random.normal(keys[3], (C_OUT,), jnp.float32)
    mc = 0.1 * jax.random.normal(keys[4], (C_OUT,), jnp.float32)
    vc = 1.0 + 0.5 * jax.random.uniform(keys[5], (C_OUT,), jnp.float32)
    # fc1: Linear(4*16*16=1024, 64) (weights stored pre-transposed), fc1_bn: BatchNorm1d(64)
    w1 = 0.03 * jax.random.normal(keys[6], (C_OUT * 16 * 16, FC1_OUT), jnp.float32)
    b1 = 0.1 * jax.random.normal(keys[7], (FC1_OUT,), jnp.float32)
    g1 = 1.0 + 0.1 * jax.random.normal(keys[8], (FC1_OUT,), jnp.float32)
    bt1 = 0.1 * jax.random.normal(keys[9], (FC1_OUT,), jnp.float32)
    m1 = 0.1 * jax.random.normal(keys[10], (FC1_OUT,), jnp.float32)
    v1 = 1.0 + 0.5 * jax.random.uniform(keys[11], (FC1_OUT,), jnp.float32)
    # fc2: Linear(64, 4)
    w2 = 0.1 * jax.random.normal(keys[12], (FC1_OUT, N_CLASSES), jnp.float32)
    b2 = 0.1 * jax.random.normal(keys[13], (N_CLASSES,), jnp.float32)
    params = (wconv, bconv, gc, bc, mc, vc, w1, b1, g1, bt1, m1, v1, w2, b2)

    # fc1 expects 4*16*16 features after two 2x2 pools => spatial must be 64x64
    x = jax.random.normal(keys[14], (2, C_IN, H, W), jnp.float32)

    out = jax.block_until_ready(mycnn2_forward(x, params))
    ref = jax.block_until_ready(mycnn2_reference(x, params))
    assert out.shape == (2, N_CLASSES)
    np.testing.assert_allclose(np.asarray(out), np.asarray(ref), rtol=2e-2, atol=2e-2)
    print("KERNEL_OK")
</pallas_src>

<mosaic_0001>
module attributes {stable_mosaic.version = 11 : i64} {
  func.func @fused_cnn_kernel(%arg0: i32, %arg1: memref<512x1024xbf16, #tpu.memory_space<vmem>>, %arg2: memref<1024x256xbf16, #tpu.memory_space<vmem>>, %arg3: memref<1x64xf32, #tpu.memory_space<vmem>>, %arg4: memref<16x64x64xf32, #tpu.memory_space<vmem>>, %arg5: memref<1x64xf32, #tpu.memory_space<vmem>>, %arg6: memref<1x64xf32, #tpu.memory_space<vmem>>, %arg7: memref<64x128xf32, #tpu.memory_space<vmem>>, %arg8: memref<1x128xf32, #tpu.memory_space<vmem>>, %arg9: memref<8x128xf32, #tpu.memory_space<vmem>>) attributes {dimension_semantics = [#tpu.dimension_semantics<parallel>], iteration_bounds = array<i64: 1>, scalar_prefetch = 0 : i64, scratch_operands = 0 : i64, tpu.core_type = #tpu.core_type<tc>, window_params = [{transform_indices = @transform_0, window_bounds = array<i64: 512, 1024>}, {pipeline_mode = #tpu.pipeline_mode<synchronous>, transform_indices = @transform_1, window_bounds = array<i64: 1024, 256>}, {pipeline_mode = #tpu.pipeline_mode<synchronous>, transform_indices = @transform_2, window_bounds = array<i64: 1, 64>}, {pipeline_mode = #tpu.pipeline_mode<synchronous>, transform_indices = @transform_3, window_bounds = array<i64: 16, 64, 64>}, {pipeline_mode = #tpu.pipeline_mode<synchronous>, transform_indices = @transform_4, window_bounds = array<i64: 1, 64>}, {pipeline_mode = #tpu.pipeline_mode<synchronous>, transform_indices = @transform_5, window_bounds = array<i64: 1, 64>}, {pipeline_mode = #tpu.pipeline_mode<synchronous>, transform_indices = @transform_6, window_bounds = array<i64: 64, 128>}, {pipeline_mode = #tpu.pipeline_mode<synchronous>, transform_indices = @transform_7, window_bounds = array<i64: 1, 128>}, {transform_indices = @transform_8, window_bounds = array<i64: 8, 128>}]} {
    %c0 = arith.constant 0 : index
    %c0_0 = arith.constant 0 : index
    %0 = vector.load %arg1[%c0, %c0_0] : memref<512x1024xbf16, #tpu.memory_space<vmem>>, vector<512x1024xbf16>
    %c0_1 = arith.constant 0 : index
    %c0_2 = arith.constant 0 : index
    %1 = vector.load %arg2[%c0_1, %c0_2] : memref<1024x256xbf16, #tpu.memory_space<vmem>>, vector<1024x256xbf16>
    %cst = arith.constant dense<0.000000e+00> : vector<512x256xf32>
    %2 = tpu.matmul %0, %1, %cst {dimension_numbers = #tpu.dot_dimension_numbers<[1], [0], [0], [1], [0, 0, 1, 1], [], []>} : vector<512x1024xbf16>, vector<1024x256xbf16>, vector<512x256xf32> -> vector<512x256xf32>
    %3 = vector.extract_strided_slice %2 {offsets = [0, 0], sizes = [128, 256], strides = [1, 1]} : vector<512x256xf32> to vector<128x256xf32>
    %4 = vector.extract_strided_slice %2 {offsets = [128, 0], sizes = [128, 256], strides = [1, 1]} : vector<512x256xf32> to vector<128x256xf32>
    %5 = arith.maximumf %3, %4 : vector<128x256xf32>
    %6 = vector.extract_strided_slice %2 {offsets = [256, 0], sizes = [128, 256], strides = [1, 1]} : vector<512x256xf32> to vector<128x256xf32>
    %7 = vector.extract_strided_slice %2 {offsets = [384, 0], sizes = [128, 256], strides = [1, 1]} : vector<512x256xf32> to vector<128x256xf32>
    %8 = arith.maximumf %6, %7 : vector<128x256xf32>
    %9 = arith.maximumf %5, %8 : vector<128x256xf32>
    %10 = vector.extract_strided_slice %9 {offsets = [0, 0], sizes = [128, 128], strides = [1, 1]} : vector<128x256xf32> to vector<128x128xf32>
    %11 = vector.extract_strided_slice %9 {offsets = [0, 128], sizes = [128, 128], strides = [1, 1]} : vector<128x256xf32> to vector<128x128xf32>
    %12 = arith.maximumf %10, %11 : vector<128x128xf32>
    %13 = vector.extract_strided_slice %12 {offsets = [0, 0], sizes = [128, 64], strides = [1, 1]} : vector<128x128xf32> to vector<128x64xf32>
    %14 = vector.extract_strided_slice %12 {offsets = [0, 64], sizes = [128, 64], strides = [1, 1]} : vector<128x128xf32> to vector<128x64xf32>
    %15 = arith.maximumf %13, %14 : vector<128x64xf32>
    %c0_3 = arith.constant 0 : index
    %c0_4 = arith.constant 0 : index
    %16 = vector.load %arg3[%c0_3, %c0_4] : memref<1x64xf32, #tpu.memory_space<vmem>>, vector<1x64xf32>
    %17 = vector.broadcast %16 : vector<1x64xf32> to vector<128x64xf32>
    %18 = arith.addf %15, %17 : vector<128x64xf32>
    %cst_5 = arith.constant 0.000000e+00 : f32
    %19 = vector.broadcast %cst_5 : f32 to vector<128x64xf32>
    %20 = arith.maximumf %18, %19 : vector<128x64xf32>
    %cst_6 = arith.constant 0.000000e+00 : f32
    %21 = vector.broadcast %cst_6 : f32 to vector<8x64xf32>
    %cst_7 = arith.constant 0.000000e+00 : f32
    %22 = vector.broadcast %cst_7 : f32 to vector<8x64xf32>
    %cst_8 = arith.constant 0.000000e+00 : f32
    %23 = vector.broadcast %cst_8 : f32 to vector<8x64xf32>
    %cst_9 = arith.constant 0.000000e+00 : f32
    %24 = vector.broadcast %cst_9 : f32 to vector<8x64xf32>
    %25 = vector.extract_strided_slice %20 {offsets = [0, 0], sizes = [8, 64], strides = [1, 1]} : vector<128x64xf32> to vector<8x64xf32>
    %c0_10 = arith.constant 0 : index
    %c0_11 = arith.constant 0 : index
    %c0_12 = arith.constant 0 : index
    %26 = vector.load %arg4[%c0_10, %c0_11, %c0_12] : memref<16x64x64xf32, #tpu.memory_space<vmem>>, vector<1x64x64xf32>
    %27 = vector.shape_cast %26 : vector<1x64x64xf32> to vector<64x64xf32>
    %cst_13 = arith.constant dense<0.000000e+00> : vector<8x64xf32>
    %28 = tpu.matmul %25, %27, %cst_13 {dimension_numbers = #tpu.dot_dimension_numbers<[1], [0], [0], [1], [0, 0, 1, 1], [], []>} : vector<8x64xf32>, vector<64x64xf32>, vector<8x64xf32> -> vector<8x64xf32>
    %29 = arith.addf %21, %28 : vector<8x64xf32>
    %30 = vector.extract_strided_slice %20 {offsets = [8, 0], sizes = [8, 64], strides = [1, 1]} : vector<128x64xf32> to vector<8x64xf32>
    %c1 = arith.constant 1 : index
    %c0_14 = arith.constant 0 : index
    %c0_15 = arith.constant 0 : index
    %31 = vector.load %arg4[%c1, %c0_14, %c0_15] : memref<16x64x64xf32, #tpu.memory_space<vmem>>, vector<1x64x64xf32>
    %32 = vector.shape_cast %31 : vector<1x64x64xf32> to vector<64x64xf32>
    %cst_16 = arith.constant dense<0.000000e+00> : vector<8x64xf32>
    %33 = tpu.matmul %30, %32, %cst_16 {dimension_numbers = #tpu.dot_dimension_numbers<[1], [0], [0], [1], [0, 0, 1, 1], [], []>} : vector<8x64xf32>, vector<64x64xf32>, vector<8x64xf32> -> vector<8x64xf32>
    %34 = arith.addf %22, %33 : vector<8x64xf32>
    %35 = vector.extract_strided_slice %20 {offsets = [16, 0], sizes = [8, 64], strides = [1, 1]} : vector<128x64xf32> to vector<8x64xf32>
    %c2 = arith.constant 2 : index
    %c0_17 = arith.constant 0 : index
    %c0_18 = arith.constant 0 : index
    %36 = vector.load %arg4[%c2, %c0_17, %c0_18] : memref<16x64x64xf32, #tpu.memory_space<vmem>>, vector<1x64x64xf32>
    %37 = vector.shape_cast %36 : vector<1x64x64xf32> to vector<64x64xf32>
    %cst_19 = arith.constant dense<0.000000e+00> : vector<8x64xf32>
    %38 = tpu.matmul %35, %37, %cst_19 {dimension_numbers = #tpu.dot_dimension_numbers<[1], [0], [0], [1], [0, 0, 1, 1], [], []>} : vector<8x64xf32>, vector<64x64xf32>, vector<8x64xf32> -> vector<8x64xf32>
    %39 = arith.addf %23, %38 : vector<8x64xf32>
    %40 = vector.extract_strided_slice %20 {offsets = [24, 0], sizes = [8, 64], strides = [1, 1]} : vector<128x64xf32> to vector<8x64xf32>
    %c3 = arith.constant 3 : index
    %c0_20 = arith.constant 0 : index
    %c0_21 = arith.constant 0 : index
    %41 = vector.load %arg4[%c3, %c0_20, %c0_21] : memref<16x64x64xf32, #tpu.memory_space<vmem>>, vector<1x64x64xf32>
    %42 = vector.shape_cast %41 : vector<1x64x64xf32> to vector<64x64xf32>
    %cst_22 = arith.constant dense<0.000000e+00> : vector<8x64xf32>
    %43 = tpu.matmul %40, %42, %cst_22 {dimension_numbers = #tpu.dot_dimension_numbers<[1], [0], [0], [1], [0, 0, 1, 1], [], []>} : vector<8x64xf32>, vector<64x64xf32>, vector<8x64xf32> -> vector<8x64xf32>
    %44 = arith.addf %24, %43 : vector<8x64xf32>
    %45 = vector.extract_strided_slice %20 {offsets = [32, 0], sizes = [8, 64], strides = [1, 1]} : vector<128x64xf32> to vector<8x64xf32>
    %c4 = arith.constant 4 : index
    %c0_23 = arith.constant 0 : index
    %c0_24 = arith.constant 0 : index
    %46 = vector.load %arg4[%c4, %c0_23, %c0_24] : memref<16x64x64xf32, #tpu.memory_space<vmem>>, vector<1x64x64xf32>
    %47 = vector.shape_cast %46 : vector<1x64x64xf32> to vector<64x64xf32>
    %cst_25 = arith.constant dense<0.000000e+00> : vector<8x64xf32>
    %48 = tpu.matmul %45, %47, %cst_25 {dimension_numbers = #tpu.dot_dimension_numbers<[1], [0], [0], [1], [0, 0, 1, 1], [], []>} : vector<8x64xf32>, vector<64x64xf32>, vector<8x64xf32> -> vector<8x64xf32>
    %49 = arith.addf %29, %48 : vector<8x64xf32>
    %50 = vector.extract_strided_slice %20 {offsets = [40, 0], sizes = [8, 64], strides = [1, 1]} : vector<128x64xf32> to vector<8x64xf32>
    %c5 = arith.constant 5 : index
    %c0_26 = arith.constant 0 : index
    %c0_27 = arith.constant 0 : index
    %51 = vector.load %arg4[%c5, %c0_26, %c0_27] : memref<16x64x64xf32, #tpu.memory_space<vmem>>, vector<1x64x64xf32>
    %52 = vector.shape_cast %51 : vector<1x64x64xf32> to vector<64x64xf32>
    %cst_28 = arith.constant dense<0.000000e+00> : vector<8x64xf32>
    %53 = tpu.matmul %50, %52, %cst_28 {dimension_numbers = #tpu.dot_dimension_numbers<[1], [0], [0], [1], [0, 0, 1, 1], [], []>} : vector<8x64xf32>, vector<64x64xf32>, vector<8x64xf32> -> vector<8x64xf32>
    %54 = arith.addf %34, %53 : vector<8x64xf32>
    %55 = vector.extract_strided_slice %20 {offsets = [48, 0], sizes = [8, 64], strides = [1, 1]} : vector<128x64xf32> to vector<8x64xf32>
    %c6 = arith.constant 6 : index
    %c0_29 = arith.constant 0 : index
    %c0_30 = arith.constant 0 : index
    %56 = vector.load %arg4[%c6, %c0_29, %c0_30] : memref<16x64x64xf32, #tpu.memory_space<vmem>>, vector<1x64x64xf32>
    %57 = vector.shape_cast %56 : vector<1x64x64xf32> to vector<64x64xf32>
    %cst_31 = arith.constant dense<0.000000e+00> : vector<8x64xf32>
    %58 = tpu.matmul %55, %57, %cst_31 {dimension_numbers = #tpu.dot_dimension_numbers<[1], [0], [0], [1], [0, 0, 1, 1], [], []>} : vector<8x64xf32>, vector<64x64xf32>, vector<8x64xf32> -> vector<8x64xf32>
    %59 = arith.addf %39, %58 : vector<8x64xf32>
    %60 = vector.extract_strided_slice %20 {offsets = [56, 0], sizes = [8, 64], strides = [1, 1]} : vector<128x64xf32> to vector<8x64xf32>
    %c7 = arith.constant 7 : index
    %c0_32 = arith.constant 0 : index
    %c0_33 = arith.constant 0 : index
    %61 = vector.load %arg4[%c7, %c0_32, %c0_33] : memref<16x64x64xf32, #tpu.memory_space<vmem>>, vector<1x64x64xf32>
    %62 = vector.shape_cast %61 : vector<1x64x64xf32> to vector<64x64xf32>
    %cst_34 = arith.constant dense<0.000000e+00> : vector<8x64xf32>
    %63 = tpu.matmul %60, %62, %cst_34 {dimension_numbers = #tpu.dot_dimension_numbers<[1], [0], [0], [1], [0, 0, 1, 1], [], []>} : vector<8x64xf32>, vector<64x64xf32>, vector<8x64xf32> -> vector<8x64xf32>
    %64 = arith.addf %44, %63 : vector<8x64xf32>
    %65 = vector.extract_strided_slice %20 {offsets = [64, 0], sizes = [8, 64], strides = [1, 1]} : vector<128x64xf32> to vector<8x64xf32>
    %c8 = arith.constant 8 : index
    %c0_35 = arith.constant 0 : index
    %c0_36 = arith.constant 0 : index
    %66 = vector.load %arg4[%c8, %c0_35, %c0_36] : memref<16x64x64xf32, #tpu.memory_space<vmem>>, vector<1x64x64xf32>
    %67 = vector.shape_cast %66 : vector<1x64x64xf32> to vector<64x64xf32>
    %cst_37 = arith.constant dense<0.000000e+00> : vector<8x64xf32>
    %68 = tpu.matmul %65, %67, %cst_37 {dimension_numbers = #tpu.dot_dimension_numbers<[1], [0], [0], [1], [0, 0, 1, 1], [], []>} : vector<8x64xf32>, vector<64x64xf32>, vector<8x64xf32> -> vector<8x64xf32>
    %69 = arith.addf %49, %68 : vector<8x64xf32>
    %70 = vector.extract_strided_slice %20 {offsets = [72, 0], sizes = [8, 64], strides = [1, 1]} : vector<128x64xf32> to vector<8x64xf32>
    %c9 = arith.constant 9 : index
    %c0_38 = arith.constant 0 : index
    %c0_39 = arith.constant 0 : index
    %71 = vector.load %arg4[%c9, %c0_38, %c0_39] : memref<16x64x64xf32, #tpu.memory_space<vmem>>, vector<1x64x64xf32>
    %72 = vector.shape_cast %71 : vector<1x64x64xf32> to vector<64x64xf32>
    %cst_40 = arith.constant dense<0.000000e+00> : vector<8x64xf32>
    %73 = tpu.matmul %70, %72, %cst_40 {dimension_numbers = #tpu.dot_dimension_numbers<[1], [0], [0], [1], [0, 0, 1, 1], [], []>} : vector<8x64xf32>, vector<64x64xf32>, vector<8x64xf32> -> vector<8x64xf32>
    %74 = arith.addf %54, %73 : vector<8x64xf32>
    %75 = vector.extract_strided_slice %20 {offsets = [80, 0], sizes = [8, 64], strides = [1, 1]} : vector<128x64xf32> to vector<8x64xf32>
    %c10 = arith.constant 10 : index
    %c0_41 = arith.constant 0 : index
    %c0_42 = arith.constant 0 : index
    %76 = vector.load %arg4[%c10, %c0_41, %c0_42] : memref<16x64x64xf32, #tpu.memory_space<vmem>>, vector<1x64x64xf32>
    %77 = vector.shape_cast %76 : vector<1x64x64xf32> to vector<64x64xf32>
    %cst_43 = arith.constant dense<0.000000e+00> : vector<8x64xf32>
    %78 = tpu.matmul %75, %77, %cst_43 {dimension_numbers = #tpu.dot_dimension_numbers<[1], [0], [0], [1], [0, 0, 1, 1], [], []>} : vector<8x64xf32>, vector<64x64xf32>, vector<8x64xf32> -> vector<8x64xf32>
    %79 = arith.addf %59, %78 : vector<8x64xf32>
    %80 = vector.extract_strided_slice %20 {offsets = [88, 0], sizes = [8, 64], strides = [1, 1]} : vector<128x64xf32> to vector<8x64xf32>
    %c11 = arith.constant 11 : index
    %c0_44 = arith.constant 0 : index
    %c0_45 = arith.constant 0 : index
    %81 = vector.load %arg4[%c11, %c0_44, %c0_45] : memref<16x64x64xf32, #tpu.memory_space<vmem>>, vector<1x64x64xf32>
    %82 = vector.shape_cast %81 : vector<1x64x64xf32> to vector<64x64xf32>
    %cst_46 = arith.constant dense<0.000000e+00> : vector<8x64xf32>
    %83 = tpu.matmul %80, %82, %cst_46 {dimension_numbers = #tpu.dot_dimension_numbers<[1], [0], [0], [1], [0, 0, 1, 1], [], []>} : vector<8x64xf32>, vector<64x64xf32>, vector<8x64xf32> -> vector<8x64xf32>
    %84 = arith.addf %64, %83 : vector<8x64xf32>
    %85 = vector.extract_strided_slice %20 {offsets = [96, 0], sizes = [8, 64], strides = [1, 1]} : vector<128x64xf32> to vector<8x64xf32>
    %c12 = arith.constant 12 : index
    %c0_47 = arith.constant 0 : index
    %c0_48 = arith.constant 0 : index
    %86 = vector.load %arg4[%c12, %c0_47, %c0_48] : memref<16x64x64xf32, #tpu.memory_space<vmem>>, vector<1x64x64xf32>
    %87 = vector.shape_cast %86 : vector<1x64x64xf32> to vector<64x64xf32>
    %cst_49 = arith.constant dense<0.000000e+00> : vector<8x64xf32>
    %88 = tpu.matmul %85, %87, %cst_49 {dimension_numbers = #tpu.dot_dimension_numbers<[1], [0], [0], [1], [0, 0, 1, 1], [], []>} : vector<8x64xf32>, vector<64x64xf32>, vector<8x64xf32> -> vector<8x64xf32>
    %89 = arith.addf %69, %88 : vector<8x64xf32>
    %90 = vector.extract_strided_slice %20 {offsets = [104, 0], sizes = [8, 64], strides = [1, 1]} : vector<128x64xf32> to vector<8x64xf32>
    %c13 = arith.constant 13 : index
    %c0_50 = arith.constant 0 : index
    %c0_51 = arith.constant 0 : index
    %91 = vector.load %arg4[%c13, %c0_50, %c0_51] : memref<16x64x64xf32, #tpu.memory_space<vmem>>, vector<1x64x64xf32>
    %92 = vector.shape_cast %91 : vector<1x64x64xf32> to vector<64x64xf32>
    %cst_52 = arith.constant dense<0.000000e+00> : vector<8x64xf32>
    %93 = tpu.matmul %90, %92, %cst_52 {dimension_numbers = #tpu.dot_dimension_numbers<[1], [0], [0], [1], [0, 0, 1, 1], [], []>} : vector<8x64xf32>, vector<64x64xf32>, vector<8x64xf32> -> vector<8x64xf32>
    %94 = arith.addf %74, %93 : vector<8x64xf32>
    %95 = vector.extract_strided_slice %20 {offsets = [112, 0], sizes = [8, 64], strides = [1, 1]} : vector<128x64xf32> to vector<8x64xf32>
    %c14 = arith.constant 14 : index
    %c0_53 = arith.constant 0 : index
    %c0_54 = arith.constant 0 : index
    %96 = vector.load %arg4[%c14, %c0_53, %c0_54] : memref<16x64x64xf32, #tpu.memory_space<vmem>>, vector<1x64x64xf32>
    %97 = vector.shape_cast %96 : vector<1x64x64xf32> to vector<64x64xf32>
    %cst_55 = arith.constant dense<0.000000e+00> : vector<8x64xf32>
    %98 = tpu.matmul %95, %97, %cst_55 {dimension_numbers = #tpu.dot_dimension_numbers<[1], [0], [0], [1], [0, 0, 1, 1], [], []>} : vector<8x64xf32>, vector<64x64xf32>, vector<8x64xf32> -> vector<8x64xf32>
    %99 = arith.addf %79, %98 : vector<8x64xf32>
    %100 = vector.extract_strided_slice %20 {offsets = [120, 0], sizes = [8, 64], strides = [1, 1]} : vector<128x64xf32> to vector<8x64xf32>
    %c15 = arith.constant 15 : index
    %c0_56 = arith.constant 0 : index
    %c0_57 = arith.constant 0 : index
    %101 = vector.load %arg4[%c15, %c0_56, %c0_57] : memref<16x64x64xf32, #tpu.memory_space<vmem>>, vector<1x64x64xf32>
    %102 = vector.shape_cast %101 : vector<1x64x64xf32> to vector<64x64xf32>
    %cst_58 = arith.constant dense<0.000000e+00> : vector<8x64xf32>
    %103 = tpu.matmul %100, %102, %cst_58 {dimension_numbers = #tpu.dot_dimension_numbers<[1], [0], [0], [1], [0, 0, 1, 1], [], []>} : vector<8x64xf32>, vector<64x64xf32>, vector<8x64xf32> -> vector<8x64xf32>
    %104 = arith.addf %84, %103 : vector<8x64xf32>
    %105 = arith.addf %89, %94 : vector<8x64xf32>
    %106 = arith.addf %99, %104 : vector<8x64xf32>
    %107 = arith.addf %105, %106 : vector<8x64xf32>
    %c0_59 = arith.constant 0 : index
    %c0_60 = arith.constant 0 : index
    %108 = vector.load %arg5[%c0_59, %c0_60] : memref<1x64xf32, #tpu.memory_space<vmem>>, vector<1x64xf32>
    %109 = vector.broadcast %108 : vector<1x64xf32> to vector<8x64xf32>
    %110 = arith.mulf %107, %109 : vector<8x64xf32>
    %c0_61 = arith.constant 0 : index
    %c0_62 = arith.constant 0 : index
    %111 = vector.load %arg6[%c0_61, %c0_62] : memref<1x64xf32, #tpu.memory_space<vmem>>, vector<1x64xf32>
    %112 = vector.broadcast %111 : vector<1x64xf32> to vector<8x64xf32>
    %113 = arith.addf %110, %112 : vector<8x64xf32>
    %cst_63 = arith.constant 0.000000e+00 : f32
    %114 = vector.broadcast %cst_63 : f32 to vector<8x64xf32>
    %115 = arith.maximumf %113, %114 : vector<8x64xf32>
    %c0_64 = arith.constant 0 : index
    %c0_65 = arith.constant 0 : index
    %116 = vector.load %arg7[%c0_64, %c0_65] : memref<64x128xf32, #tpu.memory_space<vmem>>, vector<64x128xf32>
    %cst_66 = arith.constant dense<0.000000e+00> : vector<8x128xf32>
    %117 = tpu.matmul %115, %116, %cst_66 {dimension_numbers = #tpu.dot_dimension_numbers<[1], [0], [0], [1], [0, 0, 1, 1], [], []>} : vector<8x64xf32>, vector<64x128xf32>, vector<8x128xf32> -> vector<8x128xf32>
    %c0_67 = arith.constant 0 : index
    %c0_68 = arith.constant 0 : index
    %118 = vector.load %arg8[%c0_67, %c0_68] : memref<1x128xf32, #tpu.memory_space<vmem>>, vector<1x128xf32>
    %119 = vector.broadcast %118 : vector<1x128xf32> to vector<8x128xf32>
    %120 = arith.addf %117, %119 : vector<8x128xf32>
    %c0_69 = arith.constant 0 : index
    %c0_70 = arith.constant 0 : index
    %121 = vector.load %arg9[%c0_69, %c0_70] : memref<8x128xf32, #tpu.memory_space<vmem>>, vector<8x128xf32>
    tpu.vector_store %arg9[%c0_69, %c0_70], %120 {strides = array<i32>} : memref<8x128xf32, #tpu.memory_space<vmem>>, vector<8x128xf32>,
    return
  }
  func.func @transform_0(%arg0: i32) -> (i32, i32) {
    %c0_i32 = arith.constant 0 : i32
    %c0_i32_0 = arith.constant 0 : i32
    return %arg0, %c0_i32 : i32, i32
  }
  func.func @transform_1(%arg0: i32) -> (i32, i32) {
    %c0_i32 = arith.constant 0 : i32
    %c0_i32_0 = arith.constant 0 : i32
    %c0_i32_1 = arith.constant 0 : i32
    return %c0_i32, %c0_i32_0 : i32, i32
  }
  func.func @transform_2(%arg0: i32) -> (i32, i32) {
    %c0_i32 = arith.constant 0 : i32
    %c0_i32_0 = arith.constant 0 : i32
    %c0_i32_1 = arith.constant 0 : i32
    return %c0_i32, %c0_i32_0 : i32, i32
  }
  func.func @transform_3(%arg0: i32) -> (i32, i32, i32) {
    %c0_i32 = arith.constant 0 : i32
    %c0_i32_0 = arith.constant 0 : i32
    %c0_i32_1 = arith.constant 0 : i32
    %c0_i32_2 = arith.constant 0 : i32
    return %c0_i32, %c0_i32_0, %c0_i32_1 : i32, i32, i32
  }
  func.func @transform_4(%arg0: i32) -> (i32, i32) {
    %c0_i32 = arith.constant 0 : i32
    %c0_i32_0 = arith.constant 0 : i32
    %c0_i32_1 = arith.constant 0 : i32
    return %c0_i32, %c0_i32_0 : i32, i32
  }
  func.func @transform_5(%arg0: i32) -> (i32, i32) {
    %c0_i32 = arith.constant 0 : i32
    %c0_i32_0 = arith.constant 0 : i32
    %c0_i32_1 = arith.constant 0 : i32
    return %c0_i32, %c0_i32_0 : i32, i32
  }
  func.func @transform_6(%arg0: i32) -> (i32, i32) {
    %c0_i32 = arith.constant 0 : i32
    %c0_i32_0 = arith.constant 0 : i32
    %c0_i32_1 = arith.constant 0 : i32
    return %c0_i32, %c0_i32_0 : i32, i32
  }
  func.func @transform_7(%arg0: i32) -> (i32, i32) {
    %c0_i32 = arith.constant 0 : i32
    %c0_i32_0 = arith.constant 0 : i32
    %c0_i32_1 = arith.constant 0 : i32
    return %c0_i32, %c0_i32_0 : i32, i32
  }
  func.func @transform_8(%arg0: i32) -> (i32, i32) {
    %c0_i32 = arith.constant 0 : i32
    %c0_i32_0 = arith.constant 0 : i32
    return %arg0, %c0_i32 : i32, i32
  }
}

</mosaic_0001>

<llo_original>
// kernel: tpu_custom_call.1
$region0: #{tpu_custom_call.1}
  #allocation0 [shape = 'u32[]', space=smem, size = 0x4, offset = 0x4, fixed_abs, tag = 'smem constant byte address 0x4 - core index']
  #allocation1 [shape = 'u32[144,128]{1,0:T(1,128)}', space=vmem, size = 0x12000, scoped, tag = 'internal scratch']
  %s0 = inlined_call_operand.hbm [shape: bf16[512,1024], index: 0, kind: input, shape index: {}]
  %s1 = inlined_call_operand.hbm [shape: bf16[1024,256], index: 1, kind: input, shape index: {}]
  %s2 = inlined_call_operand.vmem [shape: f32[1,64], index: 2, kind: input, shape index: {}]
  %s3 = inlined_call_operand.hbm [shape: f32[16,64,64], index: 3, kind: input, shape index: {}]
  %s4 = inlined_call_operand.vmem [shape: f32[1,64], index: 4, kind: input, shape index: {}]
  %s5 = inlined_call_operand.vmem [shape: f32[1,64], index: 5, kind: input, shape index: {}]
  %s6 = inlined_call_operand.hbm [shape: f32[64,128], index: 6, kind: input, shape index: {}]
  %s7 = inlined_call_operand.vmem [shape: f32[1,128], index: 7, kind: input, shape index: {}]
  %s8 = inlined_call_operand.hbm [shape: f32[8,128], index: 8, kind: output, shape index: {}]
  %s9 = sld [smem:[#allocation0]]
  $region58: #{tpu_custom_call.1} parent=0
    _
  %s11 = ssub.s32 1, %s9
  %s12 = scalar_select 0, %s11, %s9
  $region1: #{tpu_custom_call.1} parent=0
    #allocation2 [shape = 'u8[1048576]{0}', space=vmem, size = 0x100000, scoped, tag = 'input window, operand 0, single buffered']
    #allocation3 [shape = 's32[1]{0}', space=sflag, size = 0x4, scoped, tag = 'scoped memory for tpu_custom_call.1']
    #allocation4 [shape = 's32[1]{0}', space=sflag, size = 0x4, scoped, tag = 'scoped memory for tpu_custom_call.1']
    #allocation5 [shape = 'u8[524288]{0}', space=vmem, size = 0x80000, scoped, tag = 'input window, operand 1, single buffered']
    #allocation6 [shape = 's32[1]{0}', space=sflag, size = 0x4, scoped, tag = 'scoped memory for tpu_custom_call.1']
    #allocation7 [shape = 'u8[524288]{0}', space=vmem, size = 0x80000, scoped, tag = 'input window, operand 3, single buffered']
    #allocation8 [shape = 'u8[32768]{0}', space=vmem, size = 0x8000, scoped, tag = 'input window, operand 6, single buffered']
    #allocation9 [shape = 's32[1]{0}', space=sflag, size = 0x4, scoped, tag = 'scoped memory for tpu_custom_call.1']
    #allocation10 [shape = 'u8[4096]{0}', space=vmem, size = 0x1000, scoped, tag = 'output window, operand 0, single buffered']
    %13 = vsyncpa [#allocation3], 0
    %14 = vsyncpa [#allocation6], 0
    %15 = vsyncpa [#allocation9], 0
    %16 = vsyncpa [#allocation4], 0
    // Predicated region
    $region2: #{tpu_custom_call.1} parent=1 // pred_check
      _
    $region3: #{tpu_custom_call.1} parent=1 // pred_check_branch
      %18 = sbr.rel (0) target = $region5
    $region4: #{tpu_custom_call.1} parent=1 // pred_region
      %s20 = ssub.s32 32768, 32768
      %21 = vsyncadd [#allocation3], %s20
      %s22 = sshll.u32 [#allocation2], 4
      %s23 = int_to_ptr.vmem [resolvable:$true] %s22
      %28 = dma.hbm_to_vmem [thread:$0]  %s0, 32768, %s23, [#allocation3], 512, 512, 32
    $region5: #{tpu_custom_call.1} parent=1 // pred_fallthru
      _
    // Predicated region
    $region6: #{tpu_custom_call.1} parent=1 // pred_check
      _
    $region7: #{tpu_custom_call.1} parent=1 // pred_check_branch
      %30 = sbr.rel (0) target = $region9
    $region8: #{tpu_custom_call.1} parent=1 // pred_region
      %s32 = ssub.s32 16384, 16384
      %33 = vsyncadd [#allocation6], %s32
      %s34 = sshll.u32 [#allocation5], 4
      %s35 = int_to_ptr.vmem [resolvable:$true] %s34
      %40 = dma.hbm_to_vmem [thread:$0]  %s1, 16384, %s35, [#allocation6], 128, 128, 8
    $region9: #{tpu_custom_call.1} parent=1 // pred_fallthru
      _
    // Predicated region
    $region10: #{tpu_custom_call.1} parent=1 // pred_check
      _
    $region11: #{tpu_custom_call.1} parent=1 // pred_check_branch
      %42 = sbr.rel (0) target = $region13
    $region12: #{tpu_custom_call.1} parent=1 // pred_region
      _
    $region13: #{tpu_custom_call.1} parent=1 // pred_fallthru
      _
    // Predicated region
    $region14: #{tpu_custom_call.1} parent=1 // pred_check
      _
    $region15: #{tpu_custom_call.1} parent=1 // pred_check_branch
      %44 = sbr.rel (0) target = $region17
    $region16: #{tpu_custom_call.1} parent=1 // pred_region
      %s46 = ssub.s32 16384, 16384
      %47 = vsyncadd [#allocation6], %s46
      %s48 = sshll.u32 [#allocation7], 4
      %s49 = int_to_ptr.vmem [resolvable:$true] %s48
      %54 = dma.hbm_to_vmem [thread:$0]  %s3, 16384, %s49, [#allocation6], 128, 128, 8
    $region17: #{tpu_custom_call.1} parent=1 // pred_fallthru
      _
    // Predicated region
    $region18: #{tpu_custom_call.1} parent=1 // pred_check
      _
    $region19: #{tpu_custom_call.1} parent=1 // pred_check_branch
      %56 = sbr.rel (0) target = $region21
    $region20: #{tpu_custom_call.1} parent=1 // pred_region
      _
    $region21: #{tpu_custom_call.1} parent=1 // pred_fallthru
      _
    // Predicated region
    $region22: #{tpu_custom_call.1} parent=1 // pred_check
      _
    $region23: #{tpu_custom_call.1} parent=1 // pred_check_branch
      %58 = sbr.rel (0) target = $region25
    $region24: #{tpu_custom_call.1} parent=1 // pred_region
      _
    $region25: #{tpu_custom_call.1} parent=1 // pred_fallthru
      _
    // Predicated region
    $region26: #{tpu_custom_call.1} parent=1 // pred_check
      _
    $region27: #{tpu_custom_call.1} parent=1 // pred_check_branch
      %60 = sbr.rel (0) target = $region29
    $region28: #{tpu_custom_call.1} parent=1 // pred_region
      %s62 = ssub.s32 1024, 1024
      %63 = vsyncadd [#allocation9], %s62
      %s64 = sshll.u32 [#allocation8], 4
      %s65 = int_to_ptr.vmem [resolvable:$true] %s64
      %70 = dma.hbm_to_vmem [thread:$0]  %s6, 1024, %s65, [#allocation9], 128, 128, 8
    $region29: #{tpu_custom_call.1} parent=1 // pred_fallthru
      _
    // Predicated region
    $region30: #{tpu_custom_call.1} parent=1 // pred_check
      _
    $region31: #{tpu_custom_call.1} parent=1 // pred_check_branch
      %72 = sbr.rel (0) target = $region33
    $region32: #{tpu_custom_call.1} parent=1 // pred_region
      _
    $region33: #{tpu_custom_call.1} parent=1 // pred_fallthru
      _
    // Predicated region
    $region34: #{tpu_custom_call.1} parent=1 // pred_check
      _
    $region35: #{tpu_custom_call.1} parent=1 // pred_check_branch
      %74 = sbr.rel (0) target = $region37
    $region36: #{tpu_custom_call.1} parent=1 // pred_region
      %75 = dma.done [#allocation3], 32768
    $region37: #{tpu_custom_call.1} parent=1 // pred_fallthru
      _
    // Predicated region
    $region38: #{tpu_custom_call.1} parent=1 // pred_check
      _
    $region39: #{tpu_custom_call.1} parent=1 // pred_check_branch
      %77 = sbr.rel (0) target = $region41
    $region40: #{tpu_custom_call.1} parent=1 // pred_region
      %78 = dma.done [#allocation6], 16384
    $region41: #{tpu_custom_call.1} parent=1 // pred_fallthru
      _
    // Predicated region
    $region42: #{tpu_custom_call.1} parent=1 // pred_check
      _
    $region43: #{tpu_custom_call.1} parent=1 // pred_check_branch
      %80 = sbr.rel (0) target = $region45
    $region44: #{tpu_custom_call.1} parent=1 // pred_region
      %81 = dma.done [#allocation6], 16384
    $region45: #{tpu_custom_call.1} parent=1 // pred_fallthru
      _
    // Predicated region
    $region46: #{tpu_custom_call.1} parent=1 // pred_check
      _
    $region47: #{tpu_custom_call.1} parent=1 // pred_check_branch
      %83 = sbr.rel (0) target = $region49
    $region48: #{tpu_custom_call.1} parent=1 // pred_region
      %84 = dma.done [#allocation9], 1024
    $region49: #{tpu_custom_call.1} parent=1 // pred_fallthru
      _
    %v85 = vld [vmem:[#allocation2] sm:$0xff]
    %v86 = vld [vmem:[#allocation2 + $0x8] sm:$0xff]
    %v87 = vld [vmem:[#allocation2 + $0x10] sm:$0xff]
    %v88 = vld [vmem:[#allocation2 + $0x18] sm:$0xff]
    %v89 = vld [vmem:[#allocation2 + $0x20] sm:$0xff]
    %v90 = vld [vmem:[#allocation2 + $0x28] sm:$0xff]
    %v91 = vld [vmem:[#allocation2 + $0x30] sm:$0xff]
    %v92 = vld [vmem:[#allocation2 + $0x38] sm:$0xff]
    %v93 = vld [vmem:[#allocation2 + $0x40] sm:$0xff]
    %v94 = vld [vmem:[#allocation2 + $0x48] sm:$0xff]
    %v95 = vld [vmem:[#allocation2 + $0x50] sm:$0xff]
    %v96 = vld [vmem:[#allocation2 + $0x58] sm:$0xff]
    %v97 = vld [vmem:[#allocation2 + $0x60] sm:$0xff]
    %v98 = vld [vmem:[#allocation2 + $0x68] sm:$0xff]
    %v99 = vld [vmem:[#allocation2 + $0x70] sm:$0xff]
    %v100 = vld [vmem:[#allocation2 + $0x78] sm:$0xff]
    %v101 = vld [vmem:[#allocation2 + $0x80] sm:$0xff]
    %v102 = vld [vmem:[#allocation2 + $0x88] sm:$0xff]
    %v103 = vld [vmem:[#allocation2 + $0x90] sm:$0xff]
    %v104 = vld [vmem:[#allocation2 + $0x98] sm:$0xff]
    %v105 = vld [vmem:[#allocation2 + $0xa0] sm:$0xff]
    %v106 = vld [vmem:[#allocation2 + $0xa8] sm:$0xff]
    %v107 = vld [vmem:[#allocation2 + $0xb0] sm:$0xff]
    %v108 = vld [vmem:[#allocation2 + $0xb8] sm:$0xff]
    %v109 = vld [vmem:[#allocation2 + $0xc0] sm:$0xff]
    %v110 = vld [vmem:[#allocation2 + $0xc8] sm:$0xff]
    %v111 = vld [vmem:[#allocation2 + $0xd0] sm:$0xff]
    %v112 = vld [vmem:[#allocation2 + $0xd8] sm:$0xff]
    %v113 = vld [vmem:[#allocation2 + $0xe0] sm:$0xff]
    %v114 = vld [vmem:[#allocation2 + $0xe8] sm:$0xff]
    %v115 = vld [vmem:[#allocation2 + $0xf0] sm:$0xff]
    %v116 = vld [vmem:[#allocation2 + $0xf8] sm:$0xff]
    %v117 = vld [vmem:[#allocation2 + $0x100] sm:$0xff]
    %v118 = vld [vmem:[#allocation2 + $0x108] sm:$0xff]
    %v119 = vld [vmem:[#allocation2 + $0x110] sm:$0xff]
    %v120 = vld [vmem:[#allocation2 + $0x118] sm:$0xff]
    %v121 = vld [vmem:[#allocation2 + $0x120] sm:$0xff]
    %v122 = vld [vmem:[#allocation2 + $0x128] sm:$0xff]
    %v123 = vld [vmem:[#allocation2 + $0x130] sm:$0xff]
    %v124 = vld [vmem:[#allocation2 + $0x138] sm:$0xff]
    %v125 = vld [vmem:[#allocation2 + $0x140] sm:$0xff]
    %v126 = vld [vmem:[#allocation2 + $0x148] sm:$0xff]
    %v127 = vld [vmem:[#allocation2 + $0x150] sm:$0xff]
    %v128 = vld [vmem:[#allocation2 + $0x158] sm:$0xff]
    %v129 = vld [vmem:[#allocation2 + $0x160] sm:$0xff]
    %v130 = vld [vmem:[#allocation2 + $0x168] sm:$0xff]
    %v131 = vld [vmem:[#allocation2 + $0x170] sm:$0xff]
    %v132 = vld [vmem:[#allocation2 + $0x178] sm:$0xff]
    %v133 = vld [vmem:[#allocation2 + $0x180] sm:$0xff]
    %v134 = vld [vmem:[#allocation2 + $0x188] sm:$0xff]
    %v135 = vld [vmem:[#allocation2 + $0x190] sm:$0xff]
    %v136 = vld [vmem:[#allocation2 + $0x198] sm:$0xff]
    %v137 = vld [vmem:[#allocation2 + $0x1a0] sm:$0xff]
    %v138 = vld [vmem:[#allocation2 + $0x1a8] sm:$0xff]
    %v139 = vld [vmem:[#allocation2 + $0x1b0] sm:$0xff]
    %v140 = vld [vmem:[#allocation2 + $0x1b8] sm:$0xff]
    %v141 = vld [vmem:[#allocation2 + $0x1c0] sm:$0xff]
    %v142 = vld [vmem:[#allocation2 + $0x1c8] sm:$0xff]
    %v143 = vld [vmem:[#allocation2 + $0x1d0] sm:$0xff]
    %v144 = vld [vmem:[#allocation2 + $0x1d8] sm:$0xff]
    %v145 = vld [vmem:[#allocation2 + $0x1e0] sm:$0xff]
    %v146 = vld [vmem:[#allocation2 + $0x1e8] sm:$0xff]
    %v147 = vld [vmem:[#allocation2 + $0x1f0] sm:$0xff]
    %v148 = vld [vmem:[#allocation2 + $0x1f8] sm:$0xff]
    %v149 = vld [vmem:[#allocation2 + $0x200] sm:$0xff]
    %v150 = vld [vmem:[#allocation2 + $0x208] sm:$0xff]
    %v151 = vld [vmem:[#allocation2 + $0x210] sm:$0xff]
    %v152 = vld [vmem:[#allocation2 + $0x218] sm:$0xff]
    %v153 = vld [vmem:[#allocation2 + $0x220] sm:$0xff]
    %v154 = vld [vmem:[#allocation2 + $0x228] sm:$0xff]
    %v155 = vld [vmem:[#allocation2 + $0x230] sm:$0xff]
    %v156 = vld [vmem:[#allocation2 + $0x238] sm:$0xff]
    %v157 = vld [vmem:[#allocation2 + $0x240] sm:$0xff]
    %v158 = vld [vmem:[#allocation2 + $0x248] sm:$0xff]
    %v159 = vld [vmem:[#allocation2 + $0x250] sm:$0xff]
    %v160 = vld [vmem:[#allocation2 + $0x258] sm:$0xff]
    %v161 = vld [vmem:[#allocation2 + $0x260] sm:$0xff]
    %v162 = vld [vmem:[#allocation2 + $0x268] sm:$0xff]
    %v163 = vld [vmem:[#allocation2 + $0x270] sm:$0xff]
    %v164 = vld [vmem:[#allocation2 + $0x278] sm:$0xff]
    %v165 = vld [vmem:[#allocation2 + $0x280] sm:$0xff]
    %v166 = vld [vmem:[#allocation2 + $0x288] sm:$0xff]
    %v167 = vld [vmem:[#allocation2 + $0x290] sm:$0xff]
    %v168 = vld [vmem:[#allocation2 + $0x298] sm:$0xff]
    %v169 = vld [vmem:[#allocation2 + $0x2a0] sm:$0xff]
    %v170 = vld [vmem:[#allocation2 + $0x2a8] sm:$0xff]
    %v171 = vld [vmem:[#allocation2 + $0x2b0] sm:$0xff]
    %v172 = vld [vmem:[#allocation2 + $0x2b8] sm:$0xff]
    %v173 = vld [vmem:[#allocation2 + $0x2c0] sm:$0xff]
    %v174 = vld [vmem:[#allocation2 + $0x2c8] sm:$0xff]
    %v175 = vld [vmem:[#allocation2 + $0x2d0] sm:$0xff]
    %v176 = vld [vmem:[#allocation2 + $0x2d8] sm:$0xff]
    %v177 = vld [vmem:[#allocation2 + $0x2e0] sm:$0xff]
    %v178 = vld [vmem:[#allocation2 + $0x2e8] sm:$0xff]
    %v179 = vld [vmem:[#allocation2 + $0x2f0] sm:$0xff]
    %v180 = vld [vmem:[#allocation2 + $0x2f8] sm:$0xff]
    %v181 = vld [vmem:[#allocation2 + $0x300] sm:$0xff]
    %v182 = vld [vmem:[#allocation2 + $0x308] sm:$0xff]
    %v183 = vld [vmem:[#allocation2 + $0x310] sm:$0xff]
    %v184 = vld [vmem:[#allocation2 + $0x318] sm:$0xff]
    %v185 = vld [vmem:[#allocation2 + $0x320] sm:$0xff]
    %v186 = vld [vmem:[#allocation2 + $0x328] sm:$0xff]
    %v187 = vld [vmem:[#allocation2 + $0x330] sm:$0xff]
    %v188 = vld [vmem:[#allocation2 + $0x338] sm:$0xff]
    %v189 = vld [vmem:[#allocation2 + $0x340] sm:$0xff]
    %v190 = vld [vmem:[#allocation2 + $0x348] sm:$0xff]
    %v191 = vld [vmem:[#allocation2 + $0x350] sm:$0xff]
    %v192 = vld [vmem:[#allocation2 + $0x358] sm:$0xff]
    %v193 = vld [vmem:[#allocation2 + $0x360] sm:$0xff]
    %v194 = vld [vmem:[#allocation2 + $0x368] sm:$0xff]
    %v195 = vld [vmem:[#allocation2 + $0x370] sm:$0xff]
    %v196 = vld [vmem:[#allocation2 + $0x378] sm:$0xff]
    %v197 = vld [vmem:[#allocation2 + $0x380] sm:$0xff]
    %v198 = vld [vmem:[#allocation2 + $0x388] sm:$0xff]
    %v199 = vld [vmem:[#allocation2 + $0x390] sm:$0xff]
    %v200 = vld [vmem:[#allocation2 + $0x398] sm:$0xff]
    %v201 = vld [vmem:[#allocation2 + $0x3a0] sm:$0xff]
    %v202 = vld [vmem:[#allocation2 + $0x3a8] sm:$0xff]
    %v203 = vld [vmem:[#allocation2 + $0x3b0] sm:$0xff]
    %v204 = vld [vmem:[#allocation2 + $0x3b8] sm:$0xff]
    %v205 = vld [vmem:[#allocation2 + $0x3c0] sm:$0xff]
    %v206 = vld [vmem:[#allocation2 + $0x3c8] sm:$0xff]
    %v207 = vld [vmem:[#allocation2 + $0x3d0] sm:$0xff]
    %v208 = vld [vmem:[#allocation2 + $0x3d8] sm:$0xff]
    %v209 = vld [vmem:[#allocation2 + $0x3e0] sm:$0xff]
    %v210 = vld [vmem:[#allocation2 + $0x3e8] sm:$0xff]
    %v211 = vld [vmem:[#allocation2 + $0x3f0] sm:$0xff]
    %v212 = vld [vmem:[#allocation2 + $0x3f8] sm:$0xff]
    %v213 = vld [vmem:[#allocation2 + $0x400] sm:$0xff]
    %v214 = vld [vmem:[#allocation2 + $0x408] sm:$0xff]
    %v215 = vld [vmem:[#allocation2 + $0x410] sm:$0xff]
    %v216 = vld [vmem:[#allocation2 + $0x418] sm:$0xff]
    %v217 = vld [vmem:[#allocation2 + $0x420] sm:$0xff]
    %v218 = vld [vmem:[#allocation2 + $0x428] sm:$0xff]
    %v219 = vld [vmem:[#allocation2 + $0x430] sm:$0xff]
    %v220 = vld [vmem:[#allocation2 + $0x438] sm:$0xff]
    %v221 = vld [vmem:[#allocation2 + $0x440] sm:$0xff]
    %v222 = vld [vmem:[#allocation2 + $0x448] sm:$0xff]
    %v223 = vld [vmem:[#allocation2 + $0x450] sm:$0xff]
    %v224 = vld [vmem:[#allocation2 + $0x458] sm:$0xff]
    %v225 = vld [vmem:[#allocation2 + $0x460] sm:$0xff]
    %v226 = vld [vmem:[#allocation2 + $0x468] sm:$0xff]
    %v227 = vld [vmem:[#allocation2 + $0x470] sm:$0xff]
    %v228 = vld [vmem:[#allocation2 + $0x478] sm:$0xff]
    %v229 = vld [vmem:[#allocation2 + $0x480] sm:$0xff]
    %v230 = vld [vmem:[#allocation2 + $0x488] sm:$0xff]
    %v231 = vld [vmem:[#allocation2 + $0x490] sm:$0xff]
    %v232 = vld [vmem:[#allocation2 + $0x498] sm:$0xff]
    %v233 = vld [vmem:[#allocation2 + $0x4a0] sm:$0xff]
    %v234 = vld [vmem:[#allocation2 + $0x4a8] sm:$0xff]
    %v235 = vld [vmem:[#allocation2 + $0x4b0] sm:$0xff]
    %v236 = vld [vmem:[#allocation2 + $0x4b8] sm:$0xff]
    %v237 = vld [vmem:[#allocation2 + $0x4c0] sm:$0xff]
    %v238 = vld [vmem:[#allocation2 + $0x4c8] sm:$0xff]
    %v239 = vld [vmem:[#allocation2 + $0x4d0] sm:$0xff]
    %v240 = vld [vmem:[#allocation2 + $0x4d8] sm:$0xff]
    %v241 = vld [vmem:[#allocation2 + $0x4e0] sm:$0xff]
    %v242 = vld [vmem:[#allocation2 + $0x4e8] sm:$0xff]
    %v243 = vld [vmem:[#allocation2 + $0x4f0] sm:$0xff]
    %v244 = vld [vmem:[#allocation2 + $0x4f8] sm:$0xff]
    %v245 = vld [vmem:[#allocation2 + $0x500] sm:$0xff]
    %v246 = vld [vmem:[#allocation2 + $0x508] sm:$0xff]
    %v247 = vld [vmem:[#allocation2 + $0x510] sm:$0xff]
    %v248 = vld [vmem:[#allocation2 + $0x518] sm:$0xff]
    %v249 = vld [vmem:[#allocation2 + $0x520] sm:$0xff]
    %v250 = vld [vmem:[#allocation2 + $0x528] sm:$0xff]
    %v251 = vld [vmem:[#allocation2 + $0x530] sm:$0xff]
    %v252 = vld [vmem:[#allocation2 + $0x538] sm:$0xff]
    %v253 = vld [vmem:[#allocation2 + $0x540] sm:$0xff]
    %v254 = vld [vmem:[#allocation2 + $0x548] sm:$0xff]
    %v255 = vld [vmem:[#allocation2 + $0x550] sm:$0xff]
    %v256 = vld [vmem:[#allocation2 + $0x558] sm:$0xff]
    %v257 = vld [vmem:[#allocation2 + $0x560] sm:$0xff]
    %v258 = vld [vmem:[#allocation2 + $0x568] sm:$0xff]
    %v259 = vld [vmem:[#allocation2 + $0x570] sm:$0xff]
    %v260 = vld [vmem:[#allocation2 + $0x578] sm:$0xff]
    %v261 = vld [vmem:[#allocation2 + $0x580] sm:$0xff]
    %v262 = vld [vmem:[#allocation2 + $0x588] sm:$0xff]
    %v263 = vld [vmem:[#allocation2 + $0x590] sm:$0xff]
    %v264 = vld [vmem:[#allocation2 + $0x598] sm:$0xff]
    %v265 = vld [vmem:[#allocation2 + $0x5a0] sm:$0xff]
    %v266 = vld [vmem:[#allocation2 + $0x5a8] sm:$0xff]
    %v267 = vld [vmem:[#allocation2 + $0x5b0] sm:$0xff]
    %v268 = vld [vmem:[#allocation2 + $0x5b8] sm:$0xff]
    %v269 = vld [vmem:[#allocation2 + $0x5c0] sm:$0xff]
    %v270 = vld [vmem:[#allocation2 + $0x5c8] sm:$0xff]
    %v271 = vld [vmem:[#allocation2 + $0x5d0] sm:$0xff]
    %v272 = vld [vmem:[#allocation2 + $0x5d8] sm:$0xff]
    %v273 = vld [vmem:[#allocation2 + $0x5e0] sm:$0xff]
    %v274 = vld [vmem:[#allocation2 + $0x5e8] sm:$0xff]
    %v275 = vld [vmem:[#allocation2 + $0x5f0] sm:$0xff]
    %v276 = vld [vmem:[#allocation2 + $0x5f8] sm:$0xff]
    %v277 = vld [vmem:[#allocation2 + $0x600] sm:$0xff]
    %v278 = vld [vmem:[#allocation2 + $0x608] sm:$0xff]
    %v279 = vld [vmem:[#allocation2 + $0x610] sm:$0xff]
    %v280 = vld [vmem:[#allocation2 + $0x618] sm:$0xff]
    %v281 = vld [vmem:[#allocation2 + $0x620] sm:$0xff]
    %v282 = vld [vmem:[#allocation2 + $0x628] sm:$0xff]
    %v283 = vld [vmem:[#allocation2 + $0x630] sm:$0xff]
    %v284 = vld [vmem:[#allocation2 + $0x638] sm:$0xff]
    %v285 = vld [vmem:[#allocation2 + $0x640] sm:$0xff]
    %v286 = vld [vmem:[#allocation2 + $0x648] sm:$0xff]
    %v287 = vld [vmem:[#allocation2 + $0x650] sm:$0xff]
    %v288 = vld [vmem:[#allocation2 + $0x658] sm:$0xff]
    %v289 = vld [vmem:[#allocation2 + $0x660] sm:$0xff]
    %v290 = vld [vmem:[#allocation2 + $0x668] sm:$0xff]
    %v291 = vld [vmem:[#allocation2 + $0x670] sm:$0xff]
    %v292 = vld [vmem:[#allocation2 + $0x678] sm:$0xff]
    %v293 = vld [vmem:[#allocation2 + $0x680] sm:$0xff]
    %v294 = vld [vmem:[#allocation2 + $0x688] sm:$0xff]
    %v295 = vld [vmem:[#allocation2 + $0x690] sm:$0xff]
    %v296 = vld [vmem:[#allocation2 + $0x698] sm:$0xff]
    %v297 = vld [vmem:[#allocation2 + $0x6a0] sm:$0xff]
    %v298 = vld [vmem:[#allocation2 + $0x6a8] sm:$0xff]
    %v299 = vld [vmem:[#allocation2 + $0x6b0] sm:$0xff]
    %v300 = vld [vmem:[#allocation2 + $0x6b8] sm:$0xff]
    %v301 = vld [vmem:[#allocation2 + $0x6c0] sm:$0xff]
    %v302 = vld [vmem:[#allocation2 + $0x6c8] sm:$0xff]
    %v303 = vld [vmem:[#allocation2 + $0x6d0] sm:$0xff]
    %v304 = vld [vmem:[#allocation2 + $0x6d8] sm:$0xff]
    %v305 = vld [vmem:[#allocation2 + $0x6e0] sm:$0xff]
    %v306 = vld [vmem:[#allocation2 + $0x6e8] sm:$0xff]
    %v307 = vld [vmem:[#allocation2 + $0x6f0] sm:$0xff]
    %v308 = vld [vmem:[#allocation2 + $0x6f8] sm:$0xff]
    %v309 = vld [vmem:[#allocation2 + $0x700] sm:$0xff]
    %v310 = vld [vmem:[#allocation2 + $0x708] sm:$0xff]
    %v311 = vld [vmem:[#allocation2 + $0x710] sm:$0xff]
    %v312 = vld [vmem:[#allocation2 + $0x718] sm:$0xff]
    %v313 = vld [vmem:[#allocation2 + $0x720] sm:$0xff]
    %v314 = vld [vmem:[#allocation2 + $0x728] sm:$0xff]
    %v315 = vld [vmem:[#allocation2 + $0x730] sm:$0xff]
    %v316 = vld [vmem:[#allocation2 + $0x738] sm:$0xff]
    %v317 = vld [vmem:[#allocation2 + $0x740] sm:$0xff]
    %v318 = vld [vmem:[#allocation2 + $0x748] sm:$0xff]
    %v319 = vld [vmem:[#allocation2 + $0x750] sm:$0xff]
    %v320 = vld [vmem:[#allocation2 + $0x758] sm:$0xff]
    %v321 = vld [vmem:[#allocation2 + $0x760] sm:$0xff]
    %v322 = vld [vmem:[#allocation2 + $0x768] sm:$0xff]
    %v323 = vld [vmem:[#allocation2 + $0x770] sm:$0xff]
    %v324 = vld [vmem:[#allocation2 + $0x778] sm:$0xff]
    %v325 = vld [vmem:[#allocation2 + $0x780] sm:$0xff]
    %v326 = vld [vmem:[#allocation2 + $0x788] sm:$0xff]
    %v327 = vld [vmem:[#allocation2 + $0x790] sm:$0xff]
    %v328 = vld [vmem:[#allocation2 + $0x798] sm:$0xff]
    %v329 = vld [vmem:[#allocation2 + $0x7a0] sm:$0xff]
    %v330 = vld [vmem:[#allocation2 + $0x7a8] sm:$0xff]
    %v331 = vld [vmem:[#allocation2 + $0x7b0] sm:$0xff]
    %v332 = vld [vmem:[#allocation2 + $0x7b8] sm:$0xff]
    %v333 = vld [vmem:[#allocation2 + $0x7c0] sm:$0xff]
    %v334 = vld [vmem:[#allocation2 + $0x7c8] sm:$0xff]
    %v335 = vld [vmem:[#allocation2 + $0x7d0] sm:$0xff]
    %v336 = vld [vmem:[#allocation2 + $0x7d8] sm:$0xff]
    %v337 = vld [vmem:[#allocation2 + $0x7e0] sm:$0xff]
    %v338 = vld [vmem:[#allocation2 + $0x7e8] sm:$0xff]
    %v339 = vld [vmem:[#allocation2 + $0x7f0] sm:$0xff]
    %v340 = vld [vmem:[#allocation2 + $0x7f8] sm:$0xff]
    %v341 = vld [vmem:[#allocation5] sm:$0xff]
    %v342 = vld [vmem:[#allocation5 + $0x8] sm:$0xff]
    %v343 = vld [vmem:[#allocation5 + $0x10] sm:$0xff]
    %v344 = vld [vmem:[#allocation5 + $0x18] sm:$0xff]
    %v345 = vld [vmem:[#allocation5 + $0x20] sm:$0xff]
    %v346 = vld [vmem:[#allocation5 + $0x28] sm:$0xff]
    %v347 = vld [vmem:[#allocation5 + $0x30] sm:$0xff]
    %v348 = vld [vmem:[#allocation5 + $0x38] sm:$0xff]
    %v349 = vld [vmem:[#allocation5 + $0x40] sm:$0xff]
    %v350 = vld [vmem:[#allocation5 + $0x48] sm:$0xff]
    %v351 = vld [vmem:[#allocation5 + $0x50] sm:$0xff]
    %v352 = vld [vmem:[#allocation5 + $0x58] sm:$0xff]
    %v353 = vld [vmem:[#allocation5 + $0x60] sm:$0xff]
    %v354 = vld [vmem:[#allocation5 + $0x68] sm:$0xff]
    %v355 = vld [vmem:[#allocation5 + $0x70] sm:$0xff]
    %v356 = vld [vmem:[#allocation5 + $0x78] sm:$0xff]
    %v357 = vld [vmem:[#allocation5 + $0x80] sm:$0xff]
    %v358 = vld [vmem:[#allocation5 + $0x88] sm:$0xff]
    %v359 = vld [vmem:[#allocation5 + $0x90] sm:$0xff]
    %v360 = vld [vmem:[#allocation5 + $0x98] sm:$0xff]
    %v361 = vld [vmem:[#allocation5 + $0xa0] sm:$0xff]
    %v362 = vld [vmem:[#allocation5 + $0xa8] sm:$0xff]
    %v363 = vld [vmem:[#allocation5 + $0xb0] sm:$0xff]
    %v364 = vld [vmem:[#allocation5 + $0xb8] sm:$0xff]
    %v365 = vld [vmem:[#allocation5 + $0xc0] sm:$0xff]
    %v366 = vld [vmem:[#allocation5 + $0xc8] sm:$0xff]
    %v367 = vld [vmem:[#allocation5 + $0xd0] sm:$0xff]
    %v368 = vld [vmem:[#allocation5 + $0xd8] sm:$0xff]
    %v369 = vld [vmem:[#allocation5 + $0xe0] sm:$0xff]
    %v370 = vld [vmem:[#allocation5 + $0xe8] sm:$0xff]
    %v371 = vld [vmem:[#allocation5 + $0xf0] sm:$0xff]
    %v372 = vld [vmem:[#allocation5 + $0xf8] sm:$0xff]
    %v373 = vld [vmem:[#allocation5 + $0x100] sm:$0xff]
    %v374 = vld [vmem:[#allocation5 + $0x108] sm:$0xff]
    %v375 = vld [vmem:[#allocation5 + $0x110] sm:$0xff]
    %v376 = vld [vmem:[#allocation5 + $0x118] sm:$0xff]
    %v377 = vld [vmem:[#allocation5 + $0x120] sm:$0xff]
    %v378 = vld [vmem:[#allocation5 + $0x128] sm:$0xff]
    %v379 = vld [vmem:[#allocation5 + $0x130] sm:$0xff]
    %v380 = vld [vmem:[#allocation5 + $0x138] sm:$0xff]
    %v381 = vld [vmem:[#allocation5 + $0x140] sm:$0xff]
    %v382 = vld [vmem:[#allocation5 + $0x148] sm:$0xff]
    %v383 = vld [vmem:[#allocation5 + $0x150] sm:$0xff]
    %v384 = vld [vmem:[#allocation5 + $0x158] sm:$0xff]
    %v385 = vld [vmem:[#allocation5 + $0x160] sm:$0xff]
    %v386 = vld [vmem:[#allocation5 + $0x168] sm:$0xff]
    %v387 = vld [vmem:[#allocation5 + $0x170] sm:$0xff]
    %v388 = vld [vmem:[#allocation5 + $0x178] sm:$0xff]
    %v389 = vld [vmem:[#allocation5 + $0x180] sm:$0xff]
    %v390 = vld [vmem:[#allocation5 + $0x188] sm:$0xff]
    %v391 = vld [vmem:[#allocation5 + $0x190] sm:$0xff]
    %v392 = vld [vmem:[#allocation5 + $0x198] sm:$0xff]
    %v393 = vld [vmem:[#allocation5 + $0x1a0] sm:$0xff]
    %v394 = vld [vmem:[#allocation5 + $0x1a8] sm:$0xff]
    %v395 = vld [vmem:[#allocation5 + $0x1b0] sm:$0xff]
    %v396 = vld [vmem:[#allocation5 + $0x1b8] sm:$0xff]
    %v397 = vld [vmem:[#allocation5 + $0x1c0] sm:$0xff]
    %v398 = vld [vmem:[#allocation5 + $0x1c8] sm:$0xff]
    %v399 = vld [vmem:[#allocation5 + $0x1d0] sm:$0xff]
    %v400 = vld [vmem:[#allocation5 + $0x1d8] sm:$0xff]
    %v401 = vld [vmem:[#allocation5 + $0x1e0] sm:$0xff]
    %v402 = vld [vmem:[#allocation5 + $0x1e8] sm:$0xff]
    %v403 = vld [vmem:[#allocation5 + $0x1f0] sm:$0xff]
    %v404 = vld [vmem:[#allocation5 + $0x1f8] sm:$0xff]
    %v405 = vld [vmem:[#allocation5 + $0x200] sm:$0xff]
    %v406 = vld [vmem:[#allocation5 + $0x208] sm:$0xff]
    %v407 = vld [vmem:[#allocation5 + $0x210] sm:$0xff]
    %v408 = vld [vmem:[#allocation5 + $0x218] sm:$0xff]
    %v409 = vld [vmem:[#allocation5 + $0x220] sm:$0xff]
    %v410 = vld [vmem:[#allocation5 + $0x228] sm:$0xff]
    %v411 = vld [vmem:[#allocation5 + $0x230] sm:$0xff]
    %v412 = vld [vmem:[#allocation5 + $0x238] sm:$0xff]
    %v413 = vld [vmem:[#allocation5 + $0x240] sm:$0xff]
    %v414 = vld [vmem:[#allocation5 + $0x248] sm:$0xff]
    %v415 = vld [vmem:[#allocation5 + $0x250] sm:$0xff]
    %v416 = vld [vmem:[#allocation5 + $0x258] sm:$0xff]
    %v417 = vld [vmem:[#allocation5 + $0x260] sm:$0xff]
    %v418 = vld [vmem:[#allocation5 + $0x268] sm:$0xff]
    %v419 = vld [vmem:[#allocation5 + $0x270] sm:$0xff]
    %v420 = vld [vmem:[#allocation5 + $0x278] sm:$0xff]
    %v421 = vld [vmem:[#allocation5 + $0x280] sm:$0xff]
    %v422 = vld [vmem:[#allocation5 + $0x288] sm:$0xff]
    %v423 = vld [vmem:[#allocation5 + $0x290] sm:$0xff]
    %v424 = vld [vmem:[#allocation5 + $0x298] sm:$0xff]
    %v425 = vld [vmem:[#allocation5 + $0x2a0] sm:$0xff]
    %v426 = vld [vmem:[#allocation5 + $0x2a8] sm:$0xff]
    %v427 = vld [vmem:[#allocation5 + $0x2b0] sm:$0xff]
    %v428 = vld [vmem:[#allocation5 + $0x2b8] sm:$0xff]
    %v429 = vld [vmem:[#allocation5 + $0x2c0] sm:$0xff]
    %v430 = vld [vmem:[#allocation5 + $0x2c8] sm:$0xff]
    %v431 = vld [vmem:[#allocation5 + $0x2d0] sm:$0xff]
    %v432 = vld [vmem:[#allocation5 + $0x2d8] sm:$0xff]
    %v433 = vld [vmem:[#allocation5 + $0x2e0] sm:$0xff]
    %v434 = vld [vmem:[#allocation5 + $0x2e8] sm:$0xff]
    %v435 = vld [vmem:[#allocation5 + $0x2f0] sm:$0xff]
    %v436 = vld [vmem:[#allocation5 + $0x2f8] sm:$0xff]
    %v437 = vld [vmem:[#allocation5 + $0x300] sm:$0xff]
    %v438 = vld [vmem:[#allocation5 + $0x308] sm:$0xff]
    %v439 = vld [vmem:[#allocation5 + $0x310] sm:$0xff]
    %v440 = vld [vmem:[#allocation5 + $0x318] sm:$0xff]
    %v441 = vld [vmem:[#allocation5 + $0x320] sm:$0xff]
    %v442 = vld [vmem:[#allocation5 + $0x328] sm:$0xff]
    %v443 = vld [vmem:[#allocation5 + $0x330] sm:$0xff]
    %v444 = vld [vmem:[#allocation5 + $0x338] sm:$0xff]
    %v445 = vld [vmem:[#allocation5 + $0x340] sm:$0xff]
    %v446 = vld [vmem:[#allocation5 + $0x348] sm:$0xff]
    %v447 = vld [vmem:[#allocation5 + $0x350] sm:$0xff]
    %v448 = vld [vmem:[#allocation5 + $0x358] sm:$0xff]
    %v449 = vld [vmem:[#allocation5 + $0x360] sm:$0xff]
    %v450 = vld [vmem:[#allocation5 + $0x368] sm:$0xff]
    %v451 = vld [vmem:[#allocation5 + $0x370] sm:$0xff]
    %v452 = vld [vmem:[#allocation5 + $0x378] sm:$0xff]
    %v453 = vld [vmem:[#allocation5 + $0x380] sm:$0xff]
    %v454 = vld [vmem:[#allocation5 + $0x388] sm:$0xff]
    %v455 = vld [vmem:[#allocation5 + $0x390] sm:$0xff]
    %v456 = vld [vmem:[#allocation5 + $0x398] sm:$0xff]
    %v457 = vld [vmem:[#allocation5 + $0x3a0] sm:$0xff]
    %v458 = vld [vmem:[#allocation5 + $0x3a8] sm:$0xff]
    %v459 = vld [vmem:[#allocation5 + $0x3b0] sm:$0xff]
    %v460 = vld [vmem:[#allocation5 + $0x3b8] sm:$0xff]
    %v461 = vld [vmem:[#allocation5 + $0x3c0] sm:$0xff]
    %v462 = vld [vmem:[#allocation5 + $0x3c8] sm:$0xff]
    %v463 = vld [vmem:[#allocation5 + $0x3d0] sm:$0xff]
    %v464 = vld [vmem:[#allocation5 + $0x3d8] sm:$0xff]
    %v465 = vld [vmem:[#allocation5 + $0x3e0] sm:$0xff]
    %v466 = vld [vmem:[#allocation5 + $0x3e8] sm:$0xff]
    %v467 = vld [vmem:[#allocation5 + $0x3f0] sm:$0xff]
    %v468 = vld [vmem:[#allocation5 + $0x3f8] sm:$0xff]
    %v725 = vunpack.c.l.b16 %v85
    %v726 = vunpack.c.h.b16 %v85
    %v727 = vunpack.c.l.b16 %v86
    %v728 = vunpack.c.h.b16 %v86
    %v729 = vunpack.c.l.b16 %v87
    %v730 = vunpack.c.h.b16 %v87
    %v731 = vunpack.c.l.b16 %v88
    %v732 = vunpack.c.h.b16 %v88
    %v733 = vunpack.c.l.b16 %v89
    %v734 = vunpack.c.h.b16 %v89
    %v735 = vunpack.c.l.b16 %v90
    %v736 = vunpack.c.h.b16 %v90
    %v737 = vunpack.c.l.b16 %v91
    %v738 = vunpack.c.h.b16 %v91
    %v739 = vunpack.c.l.b16 %v92
    %v740 = vunpack.c.h.b16 %v92
    %v741 = vunpack.c.l.b16 %v93
    %v742 = vunpack.c.h.b16 %v93
    %v743 = vunpack.c.l.b16 %v94
    %v744 = vunpack.c.h.b16 %v94
    %v745 = vunpack.c.l.b16 %v95
    %v746 = vunpack.c.h.b16 %v95
    %v747 = vunpack.c.l.b16 %v96
    %v748 = vunpack.c.h.b16 %v96
    %v749 = vunpack.c.l.b16 %v97
    %v750 = vunpack.c.h.b16 %v97
    %v751 = vunpack.c.l.b16 %v98
    %v752 = vunpack.c.h.b16 %v98
    %v753 = vunpack.c.l.b16 %v99
    %v754 = vunpack.c.h.b16 %v99
    %v755 = vunpack.c.l.b16 %v100
    %v756 = vunpack.c.h.b16 %v100
    %v757 = vunpack.c.l.b16 %v101
    %v758 = vunpack.c.h.b16 %v101
    %v759 = vunpack.c.l.b16 %v102
    %v760 = vunpack.c.h.b16 %v102
    %v761 = vunpack.c.l.b16 %v103
    %v762 = vunpack.c.h.b16 %v103
    %v763 = vunpack.c.l.b16 %v104
    %v764 = vunpack.c.h.b16 %v104
    %v765 = vunpack.c.l.b16 %v105
    %v766 = vunpack.c.h.b16 %v105
    %v767 = vunpack.c.l.b16 %v106
    %v768 = vunpack.c.h.b16 %v106
    %v769 = vunpack.c.l.b16 %v107
    %v770 = vunpack.c.h.b16 %v107
    %v771 = vunpack.c.l.b16 %v108
    %v772 = vunpack.c.h.b16 %v108
    %v773 = vunpack.c.l.b16 %v109
    %v774 = vunpack.c.h.b16 %v109
    %v775 = vunpack.c.l.b16 %v110
    %v776 = vunpack.c.h.b16 %v110
    %v777 = vunpack.c.l.b16 %v111
    %v778 = vunpack.c.h.b16 %v111
    %v779 = vunpack.c.l.b16 %v112
    %v780 = vunpack.c.h.b16 %v112
    %v781 = vunpack.c.l.b16 %v113
    %v782 = vunpack.c.h.b16 %v113
    %v783 = vunpack.c.l.b16 %v114
    %v784 = vunpack.c.h.b16 %v114
    %v785 = vunpack.c.l.b16 %v115
    %v786 = vunpack.c.h.b16 %v115
    %v787 = vunpack.c.l.b16 %v116
    %v788 = vunpack.c.h.b16 %v116
    %v789 = vunpack.c.l.b16 %v117
    %v790 = vunpack.c.h.b16 %v117
    %v791 = vunpack.c.l.b16 %v118
    %v792 = vunpack.c.h.b16 %v118
    %v793 = vunpack.c.l.b16 %v119
    %v794 = vunpack.c.h.b16 %v119
    %v795 = vunpack.c.l.b16 %v120
    %v796 = vunpack.c.h.b16 %v120
    %v797 = vunpack.c.l.b16 %v121
    %v798 = vunpack.c.h.b16 %v121
    %v799 = vunpack.c.l.b16 %v122
    %v800 = vunpack.c.h.b16 %v122
    %v801 = vunpack.c.l.b16 %v123
    %v802 = vunpack.c.h.b16 %v123
    %v803 = vunpack.c.l.b16 %v124
    %v804 = vunpack.c.h.b16 %v124
    %v805 = vunpack.c.l.b16 %v125
    %v806 = vunpack.c.h.b16 %v125
    %v807 = vunpack.c.l.b16 %v126
    %v808 = vunpack.c.h.b16 %v126
    %v809 = vunpack.c.l.b16 %v127
    %v810 = vunpack.c.h.b16 %v127
    %v811 = vunpack.c.l.b16 %v128
    %v812 = vunpack.c.h.b16 %v128
    %v813 = vunpack.c.l.b16 %v129
    %v814 = vunpack.c.h.b16 %v129
    %v815 = vunpack.c.l.b16 %v130
    %v816 = vunpack.c.h.b16 %v130
    %v817 = vunpack.c.l.b16 %v131
    %v818 = vunpack.c.h.b16 %v131
    %v819 = vunpack.c.l.b16 %v132
    %v820 = vunpack.c.h.b16 %v132
    %v821 = vunpack.c.l.b16 %v133
    %v822 = vunpack.c.h.b16 %v133
    %v823 = vunpack.c.l.b16 %v134
    %v824 = vunpack.c.h.b16 %v134
    %v825 = vunpack.c.l.b16 %v135
    %v826 = vunpack.c.h.b16 %v135
    %v827 = vunpack.c.l.b16 %v136
    %v828 = vunpack.c.h.b16 %v136
    %v829 = vunpack.c.l.b16 %v137
    %v830 = vunpack.c.h.b16 %v137
    %v831 = vunpack.c.l.b16 %v138
    %v832 = vunpack.c.h.b16 %v138
    %v833 = vunpack.c.l.b16 %v139
    %v834 = vunpack.c.h.b16 %v139
    %v835 = vunpack.c.l.b16 %v140
    %v836 = vunpack.c.h.b16 %v140
    %v837 = vunpack.c.l.b16 %v141
    %v838 = vunpack.c.h.b16 %v141
    %v839 = vunpack.c.l.b16 %v142
    %v840 = vunpack.c.h.b16 %v142
    %v841 = vunpack.c.l.b16 %v143
    %v842 = vunpack.c.h.b16 %v143
    %v843 = vunpack.c.l.b16 %v144
    %v844 = vunpack.c.h.b16 %v144
    %v845 = vunpack.c.l.b16 %v145
    %v846 = vunpack.c.h.b16 %v145
    %v847 = vunpack.c.l.b16 %v146
    %v848 = vunpack.c.h.b16 %v146
    %v849 = vunpack.c.l.b16 %v147
    %v850 = vunpack.c.h.b16 %v147
    %v851 = vunpack.c.l.b16 %v148
    %v852 = vunpack.c.h.b16 %v148
    %v853 = vunpack.c.l.b16 %v149
    %v854 = vunpack.c.h.b16 %v149
    %v855 = vunpack.c.l.b16 %v150
    %v856 = vunpack.c.h.b16 %v150
    %v857 = vunpack.c.l.b16 %v151
    %v858 = vunpack.c.h.b16 %v151
    %v859 = vunpack.c.l.b16 %v152
    %v860 = vunpack.c.h.b16 %v152
    %v861 = vunpack.c.l.b16 %v153
    %v862 = vunpack.c.h.b16 %v153
    %v863 = vunpack.c.l.b16 %v154
    %v864 = vunpack.c.h.b16 %v154
    %v865 = vunpack.c.l.b16 %v155
    %v866 = vunpack.c.h.b16 %v155
    %v867 = vunpack.c.l.b16 %v156
    %v868 = vunpack.c.h.b16 %v156
    %v869 = vunpack.c.l.b16 %v157
    %v870 = vunpack.c.h.b16 %v157
    %v871 = vunpack.c.l.b16 %v158
    %v872 = vunpack.c.h.b16 %v158
    %v873 = vunpack.c.l.b16 %v159
    %v874 = vunpack.c.h.b16 %v159
    %v875 = vunpack.c.l.b16 %v160
    %v876 = vunpack.c.h.b16 %v160
    %v877 = vunpack.c.l.b16 %v161
    %v878 = vunpack.c.h.b16 %v161
    %v879 = vunpack.c.l.b16 %v162
    %v880 = vunpack.c.h.b16 %v162
    %v881 = vunpack.c.l.b16 %v163
    %v882 = vunpack.c.h.b16 %v163
    %v883 = vunpack.c.l.b16 %v164
    %v884 = vunpack.c.h.b16 %v164
    %v885 = vunpack.c.l.b16 %v165
    %v886 = vunpack.c.h.b16 %v165
    %v887 = vunpack.c.l.b16 %v166
    %v888 = vunpack.c.h.b16 %v166
    %v889 = vunpack.c.l.b16 %v167
    %v890 = vunpack.c.h.b16 %v167
    %v891 = vunpack.c.l.b16 %v168
    %v892 = vunpack.c.h.b16 %v168
    %v893 = vunpack.c.l.b16 %v169
    %v894 = vunpack.c.h.b16 %v169
    %v895 = vunpack.c.l.b16 %v170
    %v896 = vunpack.c.h.b16 %v170
    %v897 = vunpack.c.l.b16 %v171
    %v898 = vunpack.c.h.b16 %v171
    %v899 = vunpack.c.l.b16 %v172
    %v900 = vunpack.c.h.b16 %v172
    %v901 = vunpack.c.l.b16 %v173
    %v902 = vunpack.c.h.b16 %v173
    %v903 = vunpack.c.l.b16 %v174
    %v904 = vunpack.c.h.b16 %v174
    %v905 = vunpack.c.l.b16 %v175
    %v906 = vunpack.c.h.b16 %v175
    %v907 = vunpack.c.l.b16 %v176
    %v908 = vunpack.c.h.b16 %v176
    %v909 = vunpack.c.l.b16 %v177
    %v910 = vunpack.c.h.b16 %v177
    %v911 = vunpack.c.l.b16 %v178
    %v912 = vunpack.c.h.b16 %v178
    %v913 = vunpack.c.l.b16 %v179
    %v914 = vunpack.c.h.b16 %v179
    %v915 = vunpack.c.l.b16 %v180
    %v916 = vunpack.c.h.b16 %v180
    %v917 = vunpack.c.l.b16 %v181
    %v918 = vunpack.c.h.b16 %v181
    %v919 = vunpack.c.l.b16 %v182
    %v920 = vunpack.c.h.b16 %v182
    %v921 = vunpack.c.l.b16 %v183
    %v922 = vunpack.c.h.b16 %v183
    %v923 = vunpack.c.l.b16 %v184
    %v924 = vunpack.c.h.b16 %v184
    %v925 = vunpack.c.l.b16 %v185
    %v926 = vunpack.c.h.b16 %v185
    %v927 = vunpack.c.l.b16 %v186
    %v928 = vunpack.c.h.b16 %v186
    %v929 = vunpack.c.l.b16 %v187
    %v930 = vunpack.c.h.b16 %v187
    %v931 = vunpack.c.l.b16 %v188
    %v932 = vunpack.c.h.b16 %v188
    %v933 = vunpack.c.l.b16 %v189
    %v934 = vunpack.c.h.b16 %v189
    %v935 = vunpack.c.l.b16 %v190
    %v936 = vunpack.c.h.b16 %v190
    %v937 = vunpack.c.l.b16 %v191
    %v938 = vunpack.c.h.b16 %v191
    %v939 = vunpack.c.l.b16 %v192
    %v940 = vunpack.c.h.b16 %v192
    %v941 = vunpack.c.l.b16 %v193
    %v942 = vunpack.c.h.b16 %v193
    %v943 = vunpack.c.l.b16 %v194
    %v944 = vunpack.c.h.b16 %v194
    %v945 = vunpack.c.l.b16 %v195
    %v946 = vunpack.c.h.b16 %v195
    %v947 = vunpack.c.l.b16 %v196
    %v948 = vunpack.c.h.b16 %v196
    %v949 = vunpack.c.l.b16 %v197
    %v950 = vunpack.c.h.b16 %v197
    %v951 = vunpack.c.l.b16 %v198
    %v952 = vunpack.c.h.b16 %v198
    %v953 = vunpack.c.l.b16 %v199
    %v954 = vunpack.c.h.b16 %v199
    %v955 = vunpack.c.l.b16 %v200
    %v956 = vunpack.c.h.b16 %v200
    %v957 = vunpack.c.l.b16 %v201
    %v958 = vunpack.c.h.b16 %v201
    %v959 = vunpack.c.l.b16 %v202
    %v960 = vunpack.c.h.b16 %v202
    %v961 = vunpack.c.l.b16 %v203
    %v962 = vunpack.c.h.b16 %v203
    %v963 = vunpack.c.l.b16 %v204
    %v964 = vunpack.c.h.b16 %v204
    %v965 = vunpack.c.l.b16 %v205
    %v966 = vunpack.c.h.b16 %v205
    %v967 = vunpack.c.l.b16 %v206
    %v968 = vunpack.c.h.b16 %v206
    %v969 = vunpack.c.l.b16 %v207
    %v970 = vunpack.c.h.b16 %v207
    %v971 = vunpack.c.l.b16 %v208
    %v972 = vunpack.c.h.b16 %v208
    %v973 = vunpack.c.l.b16 %v209
    %v974 = vunpack.c.h.b16 %v209
    %v975 = vunpack.c.l.b16 %v210
    %v976 = vunpack.c.h.b16 %v210
    %v977 = vunpack.c.l.b16 %v211
    %v978 = vunpack.c.h.b16 %v211
    %v979 = vunpack.c.l.b16 %v212
    %v980 = vunpack.c.h.b16 %v212
    %v981 = vunpack.c.l.b16 %v213
    %v982 = vunpack.c.h.b16 %v213
    %v983 = vunpack.c.l.b16 %v214
    %v984 = vunpack.c.h.b16 %v214
    %v985 = vunpack.c.l.b16 %v215
    %v986 = vunpack.c.h.b16 %v215
    %v987 = vunpack.c.l.b16 %v216
    %v988 = vunpack.c.h.b16 %v216
    %v989 = vunpack.c.l.b16 %v217
    %v990 = vunpack.c.h.b16 %v217
    %v991 = vunpack.c.l.b16 %v218
    %v992 = vunpack.c.h.b16 %v218
    %v993 = vunpack.c.l.b16 %v219
    %v994 = vunpack.c.h.b16 %v219
    %v995 = vunpack.c.l.b16 %v220
    %v996 = vunpack.c.h.b16 %v220
    %v997 = vunpack.c.l.b16 %v221
    %v998 = vunpack.c.h.b16 %v221
    %v999 = vunpack.c.l.b16 %v222
    %v1000 = vunpack.c.h.b16 %v222
    %v1001 = vunpack.c.l.b16 %v223
    %v1002 = vunpack.c.h.b16 %v223
    %v1003 = vunpack.c.l.b16 %v224
    %v1004 = vunpack.c.h.b16 %v224
    %v1005 = vunpack.c.l.b16 %v225
    %v1006 = vunpack.c.h.b16 %v225
    %v1007 = vunpack.c.l.b16 %v226
    %v1008 = vunpack.c.h.b16 %v226
    %v1009 = vunpack.c.l.b16 %v227
    %v1010 = vunpack.c.h.b16 %v227
    %v1011 = vunpack.c.l.b16 %v228
    %v1012 = vunpack.c.h.b16 %v228
    %v1013 = vunpack.c.l.b16 %v229
    %v1014 = vunpack.c.h.b16 %v229
    %v1015 = vunpack.c.l.b16 %v230
    %v1016 = vunpack.c.h.b16 %v230
    %v1017 = vunpack.c.l.b16 %v231
    %v1018 = vunpack.c.h.b16 %v231
    %v1019 = vunpack.c.l.b16 %v232
    %v1020 = vunpack.c.h.b16 %v232
    %v1021 = vunpack.c.l.b16 %v233
    %v1022 = vunpack.c.h.b16 %v233
    %v1023 = vunpack.c.l.b16 %v234
    %v1024 = vunpack.c.h.b16 %v234
    %v1025 = vunpack.c.l.b16 %v235
    %v1026 = vunpack.c.h.b16 %v235
    %v1027 = vunpack.c.l.b16 %v236
    %v1028 = vunpack.c.h.b16 %v236
    %v1029 = vunpack.c.l.b16 %v237
    %v1030 = vunpack.c.h.b16 %v237
    %v1031 = vunpack.c.l.b16 %v238
    %v1032 = vunpack.c.h.b16 %v238
    %v1033 = vunpack.c.l.b16 %v239
    %v1034 = vunpack.c.h.b16 %v239
    %v1035 = vunpack.c.l.b16 %v240
    %v1036 = vunpack.c.h.b16 %v240
    %v1037 = vunpack.c.l.b16 %v241
    %v1038 = vunpack.c.h.b16 %v241
    %v1039 = vunpack.c.l.b16 %v242
    %v1040 = vunpack.c.h.b16 %v242
    %v1041 = vunpack.c.l.b16 %v243
    %v1042 = vunpack.c.h.b16 %v243
    %v1043 = vunpack.c.l.b16 %v244
    %v1044 = vunpack.c.h.b16 %v244
    %v1045 = vunpack.c.l.b16 %v245
    %v1046 = vunpack.c.h.b16 %v245
    %v1047 = vunpack.c.l.b16 %v246
    %v1048 = vunpack.c.h.b16 %v246
    %v1049 = vunpack.c.l.b16 %v247
    %v1050 = vunpack.c.h.b16 %v247
    %v1051 = vunpack.c.l.b16 %v248
    %v1052 = vunpack.c.h.b16 %v248
    %v1053 = vunpack.c.l.b16 %v249
    %v1054 = vunpack.c.h.b16 %v249
    %v1055 = vunpack.c.l.b16 %v250
    %v1056 = vunpack.c.h.b16 %v250
    %v1057 = vunpack.c.l.b16 %v251
    %v1058 = vunpack.c.h.b16 %v251
    %v1059 = vunpack.c.l.b16 %v252
    %v1060 = vunpack.c.h.b16 %v252
    %v1061 = vunpack.c.l.b16 %v253
    %v1062 = vunpack.c.h.b16 %v253
    %v1063 = vunpack.c.l.b16 %v254
    %v1064 = vunpack.c.h.b16 %v254
    %v1065 = vunpack.c.l.b16 %v255
    %v1066 = vunpack.c.h.b16 %v255
    %v1067 = vunpack.c.l.b16 %v256
    %v1068 = vunpack.c.h.b16 %v256
    %v1069 = vunpack.c.l.b16 %v257
    %v1070 = vunpack.c.h.b16 %v257
    %v1071 = vunpack.c.l.b16 %v258
    %v1072 = vunpack.c.h.b16 %v258
    %v1073 = vunpack.c.l.b16 %v259
    %v1074 = vunpack.c.h.b16 %v259
    %v1075 = vunpack.c.l.b16 %v260
    %v1076 = vunpack.c.h.b16 %v260
    %v1077 = vunpack.c.l.b16 %v261
    %v1078 = vunpack.c.h.b16 %v261
    %v1079 = vunpack.c.l.b16 %v262
    %v1080 = vunpack.c.h.b16 %v262
    %v1081 = vunpack.c.l.b16 %v263
    %v1082 = vunpack.c.h.b16 %v263
    %v1083 = vunpack.c.l.b16 %v264
    %v1084 = vunpack.c.h.b16 %v264
    %v1085 = vunpack.c.l.b16 %v265
    %v1086 = vunpack.c.h.b16 %v265
    %v1087 = vunpack.c.l.b16 %v266
    %v1088 = vunpack.c.h.b16 %v266
    %v1089 = vunpack.c.l.b16 %v267
    %v1090 = vunpack.c.h.b16 %v267
    %v1091 = vunpack.c.l.b16 %v268
    %v1092 = vunpack.c.h.b16 %v268
    %v1093 = vunpack.c.l.b16 %v269
    %v1094 = vunpack.c.h.b16 %v269
    %v1095 = vunpack.c.l.b16 %v270
    %v1096 = vunpack.c.h.b16 %v270
    %v1097 = vunpack.c.l.b16 %v271
    %v1098 = vunpack.c.h.b16 %v271
    %v1099 = vunpack.c.l.b16 %v272
    %v1100 = vunpack.c.h.b16 %v272
    %v1101 = vunpack.c.l.b16 %v273
    %v1102 = vunpack.c.h.b16 %v273
    %v1103 = vunpack.c.l.b16 %v274
    %v1104 = vunpack.c.h.b16 %v274
    %v1105 = vunpack.c.l.b16 %v275
    %v1106 = vunpack.c.h.b16 %v275
    %v1107 = vunpack.c.l.b16 %v276
    %v1108 = vunpack.c.h.b16 %v276
    %v1109 = vunpack.c.l.b16 %v277
    %v1110 = vunpack.c.h.b16 %v277
    %v1111 = vunpack.c.l.b16 %v278
    %v1112 = vunpack.c.h.b16 %v278
    %v1113 = vunpack.c.l.b16 %v279
    %v1114 = vunpack.c.h.b16 %v279
    %v1115 = vunpack.c.l.b16 %v280
    %v1116 = vunpack.c.h.b16 %v280
    %v1117 = vunpack.c.l.b16 %v281
    %v1118 = vunpack.c.h.b16 %v281
    %v1119 = vunpack.c.l.b16 %v282
    %v1120 = vunpack.c.h.b16 %v282
    %v1121 = vunpack.c.l.b16 %v283
    %v1122 = vunpack.c.h.b16 %v283
    %v1123 = vunpack.c.l.b16 %v284
    %v1124 = vunpack.c.h.b16 %v284
    %v1125 = vunpack.c.l.b16 %v285
    %v1126 = vunpack.c.h.b16 %v285
    %v1127 = vunpack.c.l.b16 %v286
    %v1128 = vunpack.c.h.b16 %v286
    %v1129 = vunpack.c.l.b16 %v287
    %v1130 = vunpack.c.h.b16 %v287
    %v1131 = vunpack.c.l.b16 %v288
    %v1132 = vunpack.c.h.b16 %v288
    %v1133 = vunpack.c.l.b16 %v289
    %v1134 = vunpack.c.h.b16 %v289
    %v1135 = vunpack.c.l.b16 %v290
    %v1136 = vunpack.c.h.b16 %v290
    %v1137 = vunpack.c.l.b16 %v291
    %v1138 = vunpack.c.h.b16 %v291
    %v1139 = vunpack.c.l.b16 %v292
    %v1140 = vunpack.c.h.b16 %v292
    %v1141 = vunpack.c.l.b16 %v293
    %v1142 = vunpack.c.h.b16 %v293
    %v1143 = vunpack.c.l.b16 %v294
    %v1144 = vunpack.c.h.b16 %v294
    %v1145 = vunpack.c.l.b16 %v295
    %v1146 = vunpack.c.h.b16 %v295
    %v1147 = vunpack.c.l.b16 %v296
    %v1148 = vunpack.c.h.b16 %v296
    %v1149 = vunpack.c.l.b16 %v297
    %v1150 = vunpack.c.h.b16 %v297
    %v1151 = vunpack.c.l.b16 %v298
    %v1152 = vunpack.c.h.b16 %v298
    %v1153 = vunpack.c.l.b16 %v299
    %v1154 = vunpack.c.h.b16 %v299
    %v1155 = vunpack.c.l.b16 %v300
    %v1156 = vunpack.c.h.b16 %v300
    %v1157 = vunpack.c.l.b16 %v301
    %v1158 = vunpack.c.h.b16 %v301
    %v1159 = vunpack.c.l.b16 %v302
    %v1160 = vunpack.c.h.b16 %v302
    %v1161 = vunpack.c.l.b16 %v303
    %v1162 = vunpack.c.h.b16 %v303
    %v1163 = vunpack.c.l.b16 %v304
    %v1164 = vunpack.c.h.b16 %v304
    %v1165 = vunpack.c.l.b16 %v305
    %v1166 = vunpack.c.h.b16 %v305
    %v1167 = vunpack.c.l.b16 %v306
    %v1168 = vunpack.c.h.b16 %v306
    %v1169 = vunpack.c.l.b16 %v307
    %v1170 = vunpack.c.h.b16 %v307
    %v1171 = vunpack.c.l.b16 %v308
    %v1172 = vunpack.c.h.b16 %v308
    %v1173 = vunpack.c.l.b16 %v309
    %v1174 = vunpack.c.h.b16 %v309
    %v1175 = vunpack.c.l.b16 %v310
    %v1176 = vunpack.c.h.b16 %v310
    %v1177 = vunpack.c.l.b16 %v311
    %v1178 = vunpack.c.h.b16 %v311
    %v1179 = vunpack.c.l.b16 %v312
    %v1180 = vunpack.c.h.b16 %v312
    %v1181 = vunpack.c.l.b16 %v313
    %v1182 = vunpack.c.h.b16 %v313
    %v1183 = vunpack.c.l.b16 %v314
    %v1184 = vunpack.c.h.b16 %v314
    %v1185 = vunpack.c.l.b16 %v315
    %v1186 = vunpack.c.h.b16 %v315
    %v1187 = vunpack.c.l.b16 %v316
    %v1188 = vunpack.c.h.b16 %v316
    %v1189 = vunpack.c.l.b16 %v317
    %v1190 = vunpack.c.h.b16 %v317
    %v1191 = vunpack.c.l.b16 %v318
    %v1192 = vunpack.c.h.b16 %v318
    %v1193 = vunpack.c.l.b16 %v319
    %v1194 = vunpack.c.h.b16 %v319
    %v1195 = vunpack.c.l.b16 %v320
    %v1196 = vunpack.c.h.b16 %v320
    %v1197 = vunpack.c.l.b16 %v321
    %v1198 = vunpack.c.h.b16 %v321
    %v1199 = vunpack.c.l.b16 %v322
    %v1200 = vunpack.c.h.b16 %v322
    %v1201 = vunpack.c.l.b16 %v323
    %v1202 = vunpack.c.h.b16 %v323
    %v1203 = vunpack.c.l.b16 %v324
    %v1204 = vunpack.c.h.b16 %v324
    %v1205 = vunpack.c.l.b16 %v325
    %v1206 = vunpack.c.h.b16 %v325
    %v1207 = vunpack.c.l.b16 %v326
    %v1208 = vunpack.c.h.b16 %v326
    %v1209 = vunpack.c.l.b16 %v327
    %v1210 = vunpack.c.h.b16 %v327
    %v1211 = vunpack.c.l.b16 %v328
    %v1212 = vunpack.c.h.b16 %v328
    %v1213 = vunpack.c.l.b16 %v329
    %v1214 = vunpack.c.h.b16 %v329
    %v1215 = vunpack.c.l.b16 %v330
    %v1216 = vunpack.c.h.b16 %v330
    %v1217 = vunpack.c.l.b16 %v331
    %v1218 = vunpack.c.h.b16 %v331
    %v1219 = vunpack.c.l.b16 %v332
    %v1220 = vunpack.c.h.b16 %v332
    %v1221 = vunpack.c.l.b16 %v333
    %v1222 = vunpack.c.h.b16 %v333
    %v1223 = vunpack.c.l.b16 %v334
    %v1224 = vunpack.c.h.b16 %v334
    %v1225 = vunpack.c.l.b16 %v335
    %v1226 = vunpack.c.h.b16 %v335
    %v1227 = vunpack.c.l.b16 %v336
    %v1228 = vunpack.c.h.b16 %v336
    %v1229 = vunpack.c.l.b16 %v337
    %v1230 = vunpack.c.h.b16 %v337
    %v1231 = vunpack.c.l.b16 %v338
    %v1232 = vunpack.c.h.b16 %v338
    %v1233 = vunpack.c.l.b16 %v339
    %v1234 = vunpack.c.h.b16 %v339
    %v1235 = vunpack.c.l.b16 %v340
    %v1236 = vunpack.c.h.b16 %v340
    %v1237 = vpack.c.b16 %v733, %v725
    %v1238 = vpack.c.b16 %v734, %v726
    %v1239 = vpack.c.b16 %v735, %v727
    %v1240 = vpack.c.b16 %v736, %v728
    %v1241 = vpack.c.b16 %v737, %v729
    %v1242 = vpack.c.b16 %v738, %v730
    %v1243 = vpack.c.b16 %v739, %v731
    %v1244 = vpack.c.b16 %v740, %v732
    %v1245 = vpack.c.b16 %v749, %v741
    %v1246 = vpack.c.b16 %v750, %v742
    %v1247 = vpack.c.b16 %v751, %v743
    %v1248 = vpack.c.b16 %v752, %v744
    %v1249 = vpack.c.b16 %v753, %v745
    %v1250 = vpack.c.b16 %v754, %v746
    %v1251 = vpack.c.b16 %v755, %v747
    %v1252 = vpack.c.b16 %v756, %v748
    %v1253 = vpack.c.b16 %v765, %v757
    %v1254 = vpack.c.b16 %v766, %v758
    %v1255 = vpack.c.b16 %v767, %v759
    %v1256 = vpack.c.b16 %v768, %v760
    %v1257 = vpack.c.b16 %v769, %v761
    %v1258 = vpack.c.b16 %v770, %v762
    %v1259 = vpack.c.b16 %v771, %v763
    %v1260 = vpack.c.b16 %v772, %v764
    %v1261 = vpack.c.b16 %v781, %v773
    %v1262 = vpack.c.b16 %v782, %v774
    %v1263 = vpack.c.b16 %v783, %v775
    %v1264 = vpack.c.b16 %v784, %v776
    %v1265 = vpack.c.b16 %v785, %v777
    %v1266 = vpack.c.b16 %v786, %v778
    %v1267 = vpack.c.b16 %v787, %v779
    %v1268 = vpack.c.b16 %v788, %v780
    %v1269 = vpack.c.b16 %v797, %v789
    %v1270 = vpack.c.b16 %v798, %v790
    %v1271 = vpack.c.b16 %v799, %v791
    %v1272 = vpack.c.b16 %v800, %v792
    %v1273 = vpack.c.b16 %v801, %v793
    %v1274 = vpack.c.b16 %v802, %v794
    %v1275 = vpack.c.b16 %v803, %v795
    %v1276 = vpack.c.b16 %v804, %v796
    %v1277 = vpack.c.b16 %v813, %v805
    %v1278 = vpack.c.b16 %v814, %v806
    %v1279 = vpack.c.b16 %v815, %v807
    %v1280 = vpack.c.b16 %v816, %v808
    %v1281 = vpack.c.b16 %v817, %v809
    %v1282 = vpack.c.b16 %v818, %v810
    %v1283 = vpack.c.b16 %v819, %v811
    %v1284 = vpack.c.b16 %v820, %v812
    %v1285 = vpack.c.b16 %v829, %v821
    %v1286 = vpack.c.b16 %v830, %v822
    %v1287 = vpack.c.b16 %v831, %v823
    %v1288 = vpack.c.b16 %v832, %v824
    %v1289 = vpack.c.b16 %v833, %v825
    %v1290 = vpack.c.b16 %v834, %v826
    %v1291 = vpack.c.b16 %v835, %v827
    %v1292 = vpack.c.b16 %v836, %v828
    %v1293 = vpack.c.b16 %v845, %v837
    %v1294 = vpack.c.b16 %v846, %v838
    %v1295 = vpack.c.b16 %v847, %v839
    %v1296 = vpack.c.b16 %v848, %v840
    %v1297 = vpack.c.b16 %v849, %v841
    %v1298 = vpack.c.b16 %v850, %v842
    %v1299 = vpack.c.b16 %v851, %v843
    %v1300 = vpack.c.b16 %v852, %v844
    %v1301 = vpack.c.b16 %v861, %v853
    %v1302 = vpack.c.b16 %v862, %v854
    %v1303 = vpack.c.b16 %v863, %v855
    %v1304 = vpack.c.b16 %v864, %v856
    %v1305 = vpack.c.b16 %v865, %v857
    %v1306 = vpack.c.b16 %v866, %v858
    %v1307 = vpack.c.b16 %v867, %v859
    %v1308 = vpack.c.b16 %v868, %v860
    %v1309 = vpack.c.b16 %v877, %v869
    %v1310 = vpack.c.b16 %v878, %v870
    %v1311 = vpack.c.b16 %v879, %v871
    %v1312 = vpack.c.b16 %v880, %v872
    %v1313 = vpack.c.b16 %v881, %v873
    %v1314 = vpack.c.b16 %v882, %v874
    %v1315 = vpack.c.b16 %v883, %v875
    %v1316 = vpack.c.b16 %v884, %v876
    %v1317 = vpack.c.b16 %v893, %v885
    %v1318 = vpack.c.b16 %v894, %v886
    %v1319 = vpack.c.b16 %v895, %v887
    %v1320 = vpack.c.b16 %v896, %v888
    %v1321 = vpack.c.b16 %v897, %v889
    %v1322 = vpack.c.b16 %v898, %v890
    %v1323 = vpack.c.b16 %v899, %v891
    %v1324 = vpack.c.b16 %v900, %v892
    %v1325 = vpack.c.b16 %v909, %v901
    %v1326 = vpack.c.b16 %v910, %v902
    %v1327 = vpack.c.b16 %v911, %v903
    %v1328 = vpack.c.b16 %v912, %v904
    %v1329 = vpack.c.b16 %v913, %v905
    %v1330 = vpack.c.b16 %v914, %v906
    %v1331 = vpack.c.b16 %v915, %v907
    %v1332 = vpack.c.b16 %v916, %v908
    %v1333 = vpack.c.b16 %v925, %v917
    %v1334 = vpack.c.b16 %v926, %v918
    %v1335 = vpack.c.b16 %v927, %v919
    %v1336 = vpack.c.b16 %v928, %v920
    %v1337 = vpack.c.b16 %v929, %v921
    %v1338 = vpack.c.b16 %v930, %v922
    %v1339 = vpack.c.b16 %v931, %v923
    %v1340 = vpack.c.b16 %v932, %v924
    %v1341 = vpack.c.b16 %v941, %v933
    %v1342 = vpack.c.b16 %v942, %v934
    %v1343 = vpack.c.b16 %v943, %v935
    %v1344 = vpack.c.b16 %v944, %v936
    %v1345 = vpack.c.b16 %v945, %v937
    %v1346 = vpack.c.b16 %v946, %v938
    %v1347 = vpack.c.b16 %v947, %v939
    %v1348 = vpack.c.b16 %v948, %v940
    %v1349 = vpack.c.b16 %v957, %v949
    %v1350 = vpack.c.b16 %v958, %v950
    %v1351 = vpack.c.b16 %v959, %v951
    %v1352 = vpack.c.b16 %v960, %v952
    %v1353 = vpack.c.b16 %v961, %v953
    %v1354 = vpack.c.b16 %v962, %v954
    %v1355 = vpack.c.b16 %v963, %v955
    %v1356 = vpack.c.b16 %v964, %v956
    %v1357 = vpack.c.b16 %v973, %v965
    %v1358 = vpack.c.b16 %v974, %v966
    %v1359 = vpack.c.b16 %v975, %v967
    %v1360 = vpack.c.b16 %v976, %v968
    %v1361 = vpack.c.b16 %v977, %v969
    %v1362 = vpack.c.b16 %v978, %v970
    %v1363 = vpack.c.b16 %v979, %v971
    %v1364 = vpack.c.b16 %v980, %v972
    %v1365 = vpack.c.b16 %v989, %v981
    %v1366 = vpack.c.b16 %v990, %v982
    %v1367 = vpack.c.b16 %v991, %v983
    %v1368 = vpack.c.b16 %v992, %v984
    %v1369 = vpack.c.b16 %v993, %v985
    %v1370 = vpack.c.b16 %v994, %v986
    %v1371 = vpack.c.b16 %v995, %v987
    %v1372 = vpack.c.b16 %v996, %v988
    %v1373 = vpack.c.b16 %v1005, %v997
    %v1374 = vpack.c.b16 %v1006, %v998
    %v1375 = vpack.c.b16 %v1007, %v999
    %v1376 = vpack.c.b16 %v1008, %v1000
    %v1377 = vpack.c.b16 %v1009, %v1001
    %v1378 = vpack.c.b16 %v1010, %v1002
    %v1379 = vpack.c.b16 %v1011, %v1003
    %v1380 = vpack.c.b16 %v1012, %v1004
    %v1381 = vpack.c.b16 %v1021, %v1013
    %v1382 = vpack.c.b16 %v1022, %v1014
    %v1383 = vpack.c.b16 %v1023, %v1015
    %v1384 = vpack.c.b16 %v1024, %v1016
    %v1385 = vpack.c.b16 %v1025, %v1017
    %v1386 = vpack.c.b16 %v1026, %v1018
    %v1387 = vpack.c.b16 %v1027, %v1019
    %v1388 = vpack.c.b16 %v1028, %v1020
    %v1389 = vpack.c.b16 %v1037, %v1029
    %v1390 = vpack.c.b16 %v1038, %v1030
    %v1391 = vpack.c.b16 %v1039, %v1031
    %v1392 = vpack.c.b16 %v1040, %v1032
    %v1393 = vpack.c.b16 %v1041, %v1033
    %v1394 = vpack.c.b16 %v1042, %v1034
    %v1395 = vpack.c.b16 %v1043, %v1035
    %v1396 = vpack.c.b16 %v1044, %v1036
    %v1397 = vpack.c.b16 %v1053, %v1045
    %v1398 = vpack.c.b16 %v1054, %v1046
    %v1399 = vpack.c.b16 %v1055, %v1047
    %v1400 = vpack.c.b16 %v1056, %v1048
    %v1401 = vpack.c.b16 %v1057, %v1049
    %v1402 = vpack.c.b16 %v1058, %v1050
    %v1403 = vpack.c.b16 %v1059, %v1051
    %v1404 = vpack.c.b16 %v1060, %v1052
    %v1405 = vpack.c.b16 %v1069, %v1061
    %v1406 = vpack.c.b16 %v1070, %v1062
    %v1407 = vpack.c.b16 %v1071, %v1063
    %v1408 = vpack.c.b16 %v1072, %v1064
    %v1409 = vpack.c.b16 %v1073, %v1065
    %v1410 = vpack.c.b16 %v1074, %v1066
    %v1411 = vpack.c.b16 %v1075, %v1067
    %v1412 = vpack.c.b16 %v1076, %v1068
    %v1413 = vpack.c.b16 %v1085, %v1077
    %v1414 = vpack.c.b16 %v1086, %v1078
    %v1415 = vpack.c.b16 %v1087, %v1079
    %v1416 = vpack.c.b16 %v1088, %v1080
    %v1417 = vpack.c.b16 %v1089, %v1081
    %v1418 = vpack.c.b16 %v1090, %v1082
    %v1419 = vpack.c.b16 %v1091, %v1083
    %v1420 = vpack.c.b16 %v1092, %v1084
    %v1421 = vpack.c.b16 %v1101, %v1093
    %v1422 = vpack.c.b16 %v1102, %v1094
    %v1423 = vpack.c.b16 %v1103, %v1095
    %v1424 = vpack.c.b16 %v1104, %v1096
    %v1425 = vpack.c.b16 %v1105, %v1097
    %v1426 = vpack.c.b16 %v1106, %v1098
    %v1427 = vpack.c.b16 %v1107, %v1099
    %v1428 = vpack.c.b16 %v1108, %v1100
    %v1429 = vpack.c.b16 %v1117, %v1109
    %v1430 = vpack.c.b16 %v1118, %v1110
    %v1431 = vpack.c.b16 %v1119, %v1111
    %v1432 = vpack.c.b16 %v1120, %v1112
    %v1433 = vpack.c.b16 %v1121, %v1113
    %v1434 = vpack.c.b16 %v1122, %v1114
    %v1435 = vpack.c.b16 %v1123, %v1115
    %v1436 = vpack.c.b16 %v1124, %v1116
    %v1437 = vpack.c.b16 %v1133, %v1125
    %v1438 = vpack.c.b16 %v1134, %v1126
    %v1439 = vpack.c.b16 %v1135, %v1127
    %v1440 = vpack.c.b16 %v1136, %v1128
    %v1441 = vpack.c.b16 %v1137, %v1129
    %v1442 = vpack.c.b16 %v1138, %v1130
    %v1443 = vpack.c.b16 %v1139, %v1131
    %v1444 = vpack.c.b16 %v1140, %v1132
    %v1445 = vpack.c.b16 %v1149, %v1141
    %v1446 = vpack.c.b16 %v1150, %v1142
    %v1447 = vpack.c.b16 %v1151, %v1143
    %v1448 = vpack.c.b16 %v1152, %v1144
    %v1449 = vpack.c.b16 %v1153, %v1145
    %v1450 = vpack.c.b16 %v1154, %v1146
    %v1451 = vpack.c.b16 %v1155, %v1147
    %v1452 = vpack.c.b16 %v1156, %v1148
    %v1453 = vpack.c.b16 %v1165, %v1157
    %v1454 = vpack.c.b16 %v1166, %v1158
    %v1455 = vpack.c.b16 %v1167, %v1159
    %v1456 = vpack.c.b16 %v1168, %v1160
    %v1457 = vpack.c.b16 %v1169, %v1161
    %v1458 = vpack.c.b16 %v1170, %v1162
    %v1459 = vpack.c.b16 %v1171, %v1163
    %v1460 = vpack.c.b16 %v1172, %v1164
    %v1461 = vpack.c.b16 %v1181, %v1173
    %v1462 = vpack.c.b16 %v1182, %v1174
    %v1463 = vpack.c.b16 %v1183, %v1175
    %v1464 = vpack.c.b16 %v1184, %v1176
    %v1465 = vpack.c.b16 %v1185, %v1177
    %v1466 = vpack.c.b16 %v1186, %v1178
    %v1467 = vpack.c.b16 %v1187, %v1179
    %v1468 = vpack.c.b16 %v1188, %v1180
    %v1469 = vpack.c.b16 %v1197, %v1189
    %v1470 = vpack.c.b16 %v1198, %v1190
    %v1471 = vpack.c.b16 %v1199, %v1191
    %v1472 = vpack.c.b16 %v1200, %v1192
    %v1473 = vpack.c.b16 %v1201, %v1193
    %v1474 = vpack.c.b16 %v1202, %v1194
    %v1475 = vpack.c.b16 %v1203, %v1195
    %v1476 = vpack.c.b16 %v1204, %v1196
    %v1477 = vpack.c.b16 %v1213, %v1205
    %v1478 = vpack.c.b16 %v1214, %v1206
    %v1479 = vpack.c.b16 %v1215, %v1207
    %v1480 = vpack.c.b16 %v1216, %v1208
    %v1481 = vpack.c.b16 %v1217, %v1209
    %v1482 = vpack.c.b16 %v1218, %v1210
    %v1483 = vpack.c.b16 %v1219, %v1211
    %v1484 = vpack.c.b16 %v1220, %v1212
    %v1485 = vpack.c.b16 %v1229, %v1221
    %v1486 = vpack.c.b16 %v1230, %v1222
    %v1487 = vpack.c.b16 %v1231, %v1223
    %v1488 = vpack.c.b16 %v1232, %v1224
    %v1489 = vpack.c.b16 %v1233, %v1225
    %v1490 = vpack.c.b16 %v1234, %v1226
    %v1491 = vpack.c.b16 %v1235, %v1227
    %v1492 = vpack.c.b16 %v1236, %v1228
    %v1877 = vunpack.c.l.b16 %v341
    %v1878 = vunpack.c.h.b16 %v341
    %v1879 = vunpack.c.l.b16 %v342
    %v1880 = vunpack.c.h.b16 %v342
    %v1881 = vunpack.c.l.b16 %v343
    %v1882 = vunpack.c.h.b16 %v343
    %v1883 = vunpack.c.l.b16 %v344
    %v1884 = vunpack.c.h.b16 %v344
    %v1885 = vunpack.c.l.b16 %v345
    %v1886 = vunpack.c.h.b16 %v345
    %v1887 = vunpack.c.l.b16 %v346
    %v1888 = vunpack.c.h.b16 %v346
    %v1889 = vunpack.c.l.b16 %v347
    %v1890 = vunpack.c.h.b16 %v347
    %v1891 = vunpack.c.l.b16 %v348
    %v1892 = vunpack.c.h.b16 %v348
    %v1893 = vunpack.c.l.b16 %v349
    %v1894 = vunpack.c.h.b16 %v349
    %v1895 = vunpack.c.l.b16 %v350
    %v1896 = vunpack.c.h.b16 %v350
    %v1897 = vunpack.c.l.b16 %v351
    %v1898 = vunpack.c.h.b16 %v351
    %v1899 = vunpack.c.l.b16 %v352
    %v1900 = vunpack.c.h.b16 %v352
    %v1901 = vunpack.c.l.b16 %v353
    %v1902 = vunpack.c.h.b16 %v353
    %v1903 = vunpack.c.l.b16 %v354
    %v1904 = vunpack.c.h.b16 %v354
    %v1905 = vunpack.c.l.b16 %v355
    %v1906 = vunpack.c.h.b16 %v355
    %v1907 = vunpack.c.l.b16 %v356
    %v1908 = vunpack.c.h.b16 %v356
    %v1909 = vunpack.c.l.b16 %v357
    %v1910 = vunpack.c.h.b16 %v357
    %v1911 = vunpack.c.l.b16 %v358
    %v1912 = vunpack.c.h.b16 %v358
    %v1913 = vunpack.c.l.b16 %v359
    %v1914 = vunpack.c.h.b16 %v359
    %v1915 = vunpack.c.l.b16 %v360
    %v1916 = vunpack.c.h.b16 %v360
    %v1917 = vunpack.c.l.b16 %v361
    %v1918 = vunpack.c.h.b16 %v361
    %v1919 = vunpack.c.l.b16 %v362
    %v1920 = vunpack.c.h.b16 %v362
    %v1921 = vunpack.c.l.b16 %v363
    %v1922 = vunpack.c.h.b16 %v363
    %v1923 = vunpack.c.l.b16 %v364
    %v1924 = vunpack.c.h.b16 %v364
    %v1925 = vunpack.c.l.b16 %v365
    %v1926 = vunpack.c.h.b16 %v365
    %v1927 = vunpack.c.l.b16 %v366
    %v1928 = vunpack.c.h.b16 %v366
    %v1929 = vunpack.c.l.b16 %v367
    %v1930 = vunpack.c.h.b16 %v367
    %v1931 = vunpack.c.l.b16 %v368
    %v1932 = vunpack.c.h.b16 %v368
    %v1933 = vunpack.c.l.b16 %v369
    %v1934 = vunpack.c.h.b16 %v369
    %v1935 = vunpack.c.l.b16 %v370
    %v1936 = vunpack.c.h.b16 %v370
    %v1937 = vunpack.c.l.b16 %v371
    %v1938 = vunpack.c.h.b16 %v371
    %v1939 = vunpack.c.l.b16 %v372
    %v1940 = vunpack.c.h.b16 %v372
    %v1941 = vunpack.c.l.b16 %v373
    %v1942 = vunpack.c.h.b16 %v373
    %v1943 = vunpack.c.l.b16 %v374
    %v1944 = vunpack.c.h.b16 %v374
    %v1945 = vunpack.c.l.b16 %v375
    %v1946 = vunpack.c.h.b16 %v375
    %v1947 = vunpack.c.l.b16 %v376
    %v1948 = vunpack.c.h.b16 %v376
    %v1949 = vunpack.c.l.b16 %v377
    %v1950 = vunpack.c.h.b16 %v377
    %v1951 = vunpack.c.l.b16 %v378
    %v1952 = vunpack.c.h.b16 %v378
    %v1953 = vunpack.c.l.b16 %v379
    %v1954 = vunpack.c.h.b16 %v379
    %v1955 = vunpack.c.l.b16 %v380
    %v1956 = vunpack.c.h.b16 %v380
    %v1957 = vunpack.c.l.b16 %v381
    %v1958 = vunpack.c.h.b16 %v381
    %v1959 = vunpack.c.l.b16 %v382
    %v1960 = vunpack.c.h.b16 %v382
    %v1961 = vunpack.c.l.b16 %v383
    %v1962 = vunpack.c.h.b16 %v383
    %v1963 = vunpack.c.l.b16 %v384
    %v1964 = vunpack.c.h.b16 %v384
    %v1965 = vunpack.c.l.b16 %v385
    %v1966 = vunpack.c.h.b16 %v385
    %v1967 = vunpack.c.l.b16 %v386
    %v1968 = vunpack.c.h.b16 %v386
    %v1969 = vunpack.c.l.b16 %v387
    %v1970 = vunpack.c.h.b16 %v387
    %v1971 = vunpack.c.l.b16 %v388
    %v1972 = vunpack.c.h.b16 %v388
    %v1973 = vunpack.c.l.b16 %v389
    %v1974 = vunpack.c.h.b16 %v389
    %v1975 = vunpack.c.l.b16 %v390
    %v1976 = vunpack.c.h.b16 %v390
    %v1977 = vunpack.c.l.b16 %v391
    %v1978 = vunpack.c.h.b16 %v391
    %v1979 = vunpack.c.l.b16 %v392
    %v1980 = vunpack.c.h.b16 %v392
    %v1981 = vunpack.c.l.b16 %v393
    %v1982 = vunpack.c.h.b16 %v393
    %v1983 = vunpack.c.l.b16 %v394
    %v1984 = vunpack.c.h.b16 %v394
    %v1985 = vunpack.c.l.b16 %v395
    %v1986 = vunpack.c.h.b16 %v395
    %v1987 = vunpack.c.l.b16 %v396
    %v1988 = vunpack.c.h.b16 %v396
    %v1989 = vunpack.c.l.b16 %v397
    %v1990 = vunpack.c.h.b16 %v397
    %v1991 = vunpack.c.l.b16 %v398
    %v1992 = vunpack.c.h.b16 %v398
    %v1993 = vunpack.c.l.b16 %v399
    %v1994 = vunpack.c.h.b16 %v399
    %v1995 = vunpack.c.l.b16 %v400
    %v1996 = vunpack.c.h.b16 %v400
    %v1997 = vunpack.c.l.b16 %v401
    %v1998 = vunpack.c.h.b16 %v401
    %v1999 = vunpack.c.l.b16 %v402
    %v2000 = vunpack.c.h.b16 %v402
    %v2001 = vunpack.c.l.b16 %v403
    %v2002 = vunpack.c.h.b16 %v403
    %v2003 = vunpack.c.l.b16 %v404
    %v2004 = vunpack.c.h.b16 %v404
    %v2005 = vunpack.c.l.b16 %v405
    %v2006 = vunpack.c.h.b16 %v405
    %v2007 = vunpack.c.l.b16 %v406
    %v2008 = vunpack.c.h.b16 %v406
    %v2009 = vunpack.c.l.b16 %v407
    %v2010 = vunpack.c.h.b16 %v407
    %v2011 = vunpack.c.l.b16 %v408
    %v2012 = vunpack.c.h.b16 %v408
    %v2013 = vunpack.c.l.b16 %v409
    %v2014 = vunpack.c.h.b16 %v409
    %v2015 = vunpack.c.l.b16 %v410
    %v2016 = vunpack.c.h.b16 %v410
    %v2017 = vunpack.c.l.b16 %v411
    %v2018 = vunpack.c.h.b16 %v411
    %v2019 = vunpack.c.l.b16 %v412
    %v2020 = vunpack.c.h.b16 %v412
    %v2021 = vunpack.c.l.b16 %v413
    %v2022 = vunpack.c.h.b16 %v413
    %v2023 = vunpack.c.l.b16 %v414
    %v2024 = vunpack.c.h.b16 %v414
    %v2025 = vunpack.c.l.b16 %v415
    %v2026 = vunpack.c.h.b16 %v415
    %v2027 = vunpack.c.l.b16 %v416
    %v2028 = vunpack.c.h.b16 %v416
    %v2029 = vunpack.c.l.b16 %v417
    %v2030 = vunpack.c.h.b16 %v417
    %v2031 = vunpack.c.l.b16 %v418
    %v2032 = vunpack.c.h.b16 %v418
    %v2033 = vunpack.c.l.b16 %v419
    %v2034 = vunpack.c.h.b16 %v419
    %v2035 = vunpack.c.l.b16 %v420
    %v2036 = vunpack.c.h.b16 %v420
    %v2037 = vunpack.c.l.b16 %v421
    %v2038 = vunpack.c.h.b16 %v421
    %v2039 = vunpack.c.l.b16 %v422
    %v2040 = vunpack.c.h.b16 %v422
    %v2041 = vunpack.c.l.b16 %v423
    %v2042 = vunpack.c.h.b16 %v423
    %v2043 = vunpack.c.l.b16 %v424
    %v2044 = vunpack.c.h.b16 %v424
    %v2045 = vunpack.c.l.b16 %v425
    %v2046 = vunpack.c.h.b16 %v425
    %v2047 = vunpack.c.l.b16 %v426
    %v2048 = vunpack.c.h.b16 %v426
    %v2049 = vunpack.c.l.b16 %v427
    %v2050 = vunpack.c.h.b16 %v427
    %v2051 = vunpack.c.l.b16 %v428
    %v2052 = vunpack.c.h.b16 %v428
    %v2053 = vunpack.c.l.b16 %v429
    %v2054 = vunpack.c.h.b16 %v429
    %v2055 = vunpack.c.l.b16 %v430
    %v2056 = vunpack.c.h.b16 %v430
    %v2057 = vunpack.c.l.b16 %v431
    %v2058 = vunpack.c.h.b16 %v431
    %v2059 = vunpack.c.l.b16 %v432
    %v2060 = vunpack.c.h.b16 %v432
    %v2061 = vunpack.c.l.b16 %v433
    %v2062 = vunpack.c.h.b16 %v433
    %v2063 = vunpack.c.l.b16 %v434
    %v2064 = vunpack.c.h.b16 %v434
    %v2065 = vunpack.c.l.b16 %v435
    %v2066 = vunpack.c.h.b16 %v435
    %v2067 = vunpack.c.l.b16 %v436
    %v2068 = vunpack.c.h.b16 %v436
    %v2069 = vunpack.c.l.b16 %v437
    %v2070 = vunpack.c.h.b16 %v437
    %v2071 = vunpack.c.l.b16 %v438
    %v2072 = vunpack.c.h.b16 %v438
    %v2073 = vunpack.c.l.b16 %v439
    %v2074 = vunpack.c.h.b16 %v439
    %v2075 = vunpack.c.l.b16 %v440
    %v2076 = vunpack.c.h.b16 %v440
    %v2077 = vunpack.c.l.b16 %v441
    %v2078 = vunpack.c.h.b16 %v441
    %v2079 = vunpack.c.l.b16 %v442
    %v2080 = vunpack.c.h.b16 %v442
    %v2081 = vunpack.c.l.b16 %v443
    %v2082 = vunpack.c.h.b16 %v443
    %v2083 = vunpack.c.l.b16 %v444
    %v2084 = vunpack.c.h.b16 %v444
    %v2085 = vunpack.c.l.b16 %v445
    %v2086 = vunpack.c.h.b16 %v445
    %v2087 = vunpack.c.l.b16 %v446
    %v2088 = vunpack.c.h.b16 %v446
    %v2089 = vunpack.c.l.b16 %v447
    %v2090 = vunpack.c.h.b16 %v447
    %v2091 = vunpack.c.l.b16 %v448
    %v2092 = vunpack.c.h.b16 %v448
    %v2093 = vunpack.c.l.b16 %v449
    %v2094 = vunpack.c.h.b16 %v449
    %v2095 = vunpack.c.l.b16 %v450
    %v2096 = vunpack.c.h.b16 %v450
    %v2097 = vunpack.c.l.b16 %v451
    %v2098 = vunpack.c.h.b16 %v451
    %v2099 = vunpack.c.l.b16 %v452
    %v2100 = vunpack.c.h.b16 %v452
    %v2101 = vunpack.c.l.b16 %v453
    %v2102 = vunpack.c.h.b16 %v453
    %v2103 = vunpack.c.l.b16 %v454
    %v2104 = vunpack.c.h.b16 %v454
    %v2105 = vunpack.c.l.b16 %v455
    %v2106 = vunpack.c.h.b16 %v455
    %v2107 = vunpack.c.l.b16 %v456
    %v2108 = vunpack.c.h.b16 %v456
    %v2109 = vunpack.c.l.b16 %v457
    %v2110 = vunpack.c.h.b16 %v457
    %v2111 = vunpack.c.l.b16 %v458
    %v2112 = vunpack.c.h.b16 %v458
    %v2113 = vunpack.c.l.b16 %v459
    %v2114 = vunpack.c.h.b16 %v459
    %v2115 = vunpack.c.l.b16 %v460
    %v2116 = vunpack.c.h.b16 %v460
    %v2117 = vunpack.c.l.b16 %v461
    %v2118 = vunpack.c.h.b16 %v461
    %v2119 = vunpack.c.l.b16 %v462
    %v2120 = vunpack.c.h.b16 %v462
    %v2121 = vunpack.c.l.b16 %v463
    %v2122 = vunpack.c.h.b16 %v463
    %v2123 = vunpack.c.l.b16 %v464
    %v2124 = vunpack.c.h.b16 %v464
    %v2125 = vunpack.c.l.b16 %v465
    %v2126 = vunpack.c.h.b16 %v465
    %v2127 = vunpack.c.l.b16 %v466
    %v2128 = vunpack.c.h.b16 %v466
    %v2129 = vunpack.c.l.b16 %v467
    %v2130 = vunpack.c.h.b16 %v467
    %v2131 = vunpack.c.l.b16 %v468
    %v2132 = vunpack.c.h.b16 %v468
    %v2133 = vpack.c.b16 %v1879, %v1877
    %v2134 = vpack.c.b16 %v1880, %v1878
    %v2135 = vpack.c.b16 %v1883, %v1881
    %v2136 = vpack.c.b16 %v1884, %v1882
    %v2137 = vpack.c.b16 %v1887, %v1885
    %v2138 = vpack.c.b16 %v1888, %v1886
    %v2139 = vpack.c.b16 %v1891, %v1889
    %v2140 = vpack.c.b16 %v1892, %v1890
    %v2141 = vpack.c.b16 %v1895, %v1893
    %v2142 = vpack.c.b16 %v1896, %v1894
    %v2143 = vpack.c.b16 %v1899, %v1897
    %v2144 = vpack.c.b16 %v1900, %v1898
    %v2145 = vpack.c.b16 %v1903, %v1901
    %v2146 = vpack.c.b16 %v1904, %v1902
    %v2147 = vpack.c.b16 %v1907, %v1905
    %v2148 = vpack.c.b16 %v1908, %v1906
    %v2149 = vpack.c.b16 %v1911, %v1909
    %v2150 = vpack.c.b16 %v1912, %v1910
    %v2151 = vpack.c.b16 %v1915, %v1913
    %v2152 = vpack.c.b16 %v1916, %v1914
    %v2153 = vpack.c.b16 %v1919, %v1917
    %v2154 = vpack.c.b16 %v1920, %v1918
    %v2155 = vpack.c.b16 %v1923, %v1921
    %v2156 = vpack.c.b16 %v1924, %v1922
    %v2157 = vpack.c.b16 %v1927, %v1925
    %v2158 = vpack.c.b16 %v1928, %v1926
    %v2159 = vpack.c.b16 %v1931, %v1929
    %v2160 = vpack.c.b16 %v1932, %v1930
    %v2161 = vpack.c.b16 %v1935, %v1933
    %v2162 = vpack.c.b16 %v1936, %v1934
    %v2163 = vpack.c.b16 %v1939, %v1937
    %v2164 = vpack.c.b16 %v1940, %v1938
    %v2165 = vpack.c.b16 %v1943, %v1941
    %v2166 = vpack.c.b16 %v1944, %v1942
    %v2167 = vpack.c.b16 %v1947, %v1945
    %v2168 = vpack.c.b16 %v1948, %v1946
    %v2169 = vpack.c.b16 %v1951, %v1949
    %v2170 = vpack.c.b16 %v1952, %v1950
    %v2171 = vpack.c.b16 %v1955, %v1953
    %v2172 = vpack.c.b16 %v1956, %v1954
    %v2173 = vpack.c.b16 %v1959, %v1957
    %v2174 = vpack.c.b16 %v1960, %v1958
    %v2175 = vpack.c.b16 %v1963, %v1961
    %v2176 = vpack.c.b16 %v1964, %v1962
    %v2177 = vpack.c.b16 %v1967, %v1965
    %v2178 = vpack.c.b16 %v1968, %v1966
    %v2179 = vpack.c.b16 %v1971, %v1969
    %v2180 = vpack.c.b16 %v1972, %v1970
    %v2181 = vpack.c.b16 %v1975, %v1973
    %v2182 = vpack.c.b16 %v1976, %v1974
    %v2183 = vpack.c.b16 %v1979, %v1977
    %v2184 = vpack.c.b16 %v1980, %v1978
    %v2185 = vpack.c.b16 %v1983, %v1981
    %v2186 = vpack.c.b16 %v1984, %v1982
    %v2187 = vpack.c.b16 %v1987, %v1985
    %v2188 = vpack.c.b16 %v1988, %v1986
    %v2189 = vpack.c.b16 %v1991, %v1989
    %v2190 = vpack.c.b16 %v1992, %v1990
    %v2191 = vpack.c.b16 %v1995, %v1993
    %v2192 = vpack.c.b16 %v1996, %v1994
    %v2193 = vpack.c.b16 %v1999, %v1997
    %v2194 = vpack.c.b16 %v2000, %v1998
    %v2195 = vpack.c.b16 %v2003, %v2001
    %v2196 = vpack.c.b16 %v2004, %v2002
    %v2197 = vpack.c.b16 %v2007, %v2005
    %v2198 = vpack.c.b16 %v2008, %v2006
    %v2199 = vpack.c.b16 %v2011, %v2009
    %v2200 = vpack.c.b16 %v2012, %v2010
    %v2201 = vpack.c.b16 %v2015, %v2013
    %v2202 = vpack.c.b16 %v2016, %v2014
    %v2203 = vpack.c.b16 %v2019, %v2017
    %v2204 = vpack.c.b16 %v2020, %v2018
    %v2205 = vpack.c.b16 %v2023, %v2021
    %v2206 = vpack.c.b16 %v2024, %v2022
    %v2207 = vpack.c.b16 %v2027, %v2025
    %v2208 = vpack.c.b16 %v2028, %v2026
    %v2209 = vpack.c.b16 %v2031, %v2029
    %v2210 = vpack.c.b16 %v2032, %v2030
    %v2211 = vpack.c.b16 %v2035, %v2033
    %v2212 = vpack.c.b16 %v2036, %v2034
    %v2213 = vpack.c.b16 %v2039, %v2037
    %v2214 = vpack.c.b16 %v2040, %v2038
    %v2215 = vpack.c.b16 %v2043, %v2041
    %v2216 = vpack.c.b16 %v2044, %v2042
    %v2217 = vpack.c.b16 %v2047, %v2045
    %v2218 = vpack.c.b16 %v2048, %v2046
    %v2219 = vpack.c.b16 %v2051, %v2049
    %v2220 = vpack.c.b16 %v2052, %v2050
    %v2221 = vpack.c.b16 %v2055, %v2053
    %v2222 = vpack.c.b16 %v2056, %v2054
    %v2223 = vpack.c.b16 %v2059, %v2057
    %v2224 = vpack.c.b16 %v2060, %v2058
    %v2225 = vpack.c.b16 %v2063, %v2061
    %v2226 = vpack.c.b16 %v2064, %v2062
    %v2227 = vpack.c.b16 %v2067, %v2065
    %v2228 = vpack.c.b16 %v2068, %v2066
    %v2229 = vpack.c.b16 %v2071, %v2069
    %v2230 = vpack.c.b16 %v2072, %v2070
    %v2231 = vpack.c.b16 %v2075, %v2073
    %v2232 = vpack.c.b16 %v2076, %v2074
    %v2233 = vpack.c.b16 %v2079, %v2077
    %v2234 = vpack.c.b16 %v2080, %v2078
    %v2235 = vpack.c.b16 %v2083, %v2081
    %v2236 = vpack.c.b16 %v2084, %v2082
    %v2237 = vpack.c.b16 %v2087, %v2085
    %v2238 = vpack.c.b16 %v2088, %v2086
    %v2239 = vpack.c.b16 %v2091, %v2089
    %v2240 = vpack.c.b16 %v2092, %v2090
    %v2241 = vpack.c.b16 %v2095, %v2093
    %v2242 = vpack.c.b16 %v2096, %v2094
    %v2243 = vpack.c.b16 %v2099, %v2097
    %v2244 = vpack.c.b16 %v2100, %v2098
    %v2245 = vpack.c.b16 %v2103, %v2101
    %v2246 = vpack.c.b16 %v2104, %v2102
    %v2247 = vpack.c.b16 %v2107, %v2105
    %v2248 = vpack.c.b16 %v2108, %v2106
    %v2249 = vpack.c.b16 %v2111, %v2109
    %v2250 = vpack.c.b16 %v2112, %v2110
    %v2251 = vpack.c.b16 %v2115, %v2113
    %v2252 = vpack.c.b16 %v2116, %v2114
    %v2253 = vpack.c.b16 %v2119, %v2117
    %v2254 = vpack.c.b16 %v2120, %v2118
    %v2255 = vpack.c.b16 %v2123, %v2121
    %v2256 = vpack.c.b16 %v2124, %v2122
    %v2257 = vpack.c.b16 %v2127, %v2125
    %v2258 = vpack.c.b16 %v2128, %v2126
    %v2259 = vpack.c.b16 %v2131, %v2129
    %v2260 = vpack.c.b16 %v2132, %v2130
    %2389 = vmatprep.subr.bf16.mxu0 %v2134
    %2390 = vmatpush1.bf16.msra.mxu0 %v2133
    %2391 = vmatprep.subr.bf16.mxu0 %v2136
    %2392 = vmatpush1.bf16.msra.mxu0 %v2135
    %2393 = vmatprep.subr.bf16.mxu0 %v2138
    %2394 = vmatpush1.bf16.msra.mxu0 %v2137
    %2395 = vmatprep.subr.bf16.mxu0 %v2140
    %2396 = vmatpush1.bf16.msra.mxu0 %v2139
    %2397 = vmatprep.subr.bf16.mxu0 %v2142
    %2398 = vmatpush1.bf16.msra.mxu0 %v2141
    %2399 = vmatprep.subr.bf16.mxu0 %v2144
    %2400 = vmatpush1.bf16.msra.mxu0 %v2143
    %2401 = vmatprep.subr.bf16.mxu0 %v2146
    %2402 = vmatpush1.bf16.msra.mxu0 %v2145
    %2403 = vmatprep.subr.bf16.mxu0 %v2148
    %2404 = vmatpush1.bf16.msra.mxu0 %v2147
    %2405 = vmatprep.subr.bf16.mxu0 %v2150
    %2406 = vmatpush1.bf16.msra.mxu0 %v2149
    %2407 = vmatprep.subr.bf16.mxu0 %v2152
    %2408 = vmatpush1.bf16.msra.mxu0 %v2151
    %2409 = vmatprep.subr.bf16.mxu0 %v2154
    %2410 = vmatpush1.bf16.msra.mxu0 %v2153
    %2411 = vmatprep.subr.bf16.mxu0 %v2156
    %2412 = vmatpush1.bf16.msra.mxu0 %v2155
    %2413 = vmatprep.subr.bf16.mxu0 %v2158
    %2414 = vmatpush1.bf16.msra.mxu0 %v2157
    %2415 = vmatprep.subr.bf16.mxu0 %v2160
    %2416 = vmatpush1.bf16.msra.mxu0 %v2159
    %2417 = vmatprep.subr.bf16.mxu0 %v2162
    %2418 = vmatpush1.bf16.msra.mxu0 %v2161
    %2419 = vmatprep.subr.bf16.mxu0 %v2164
    %2420 = vmatpush1.bf16.msra.mxu0 %v2163
    %2421 = vmatprep.mubr.bf16.mxu0 %v1238
    %2422 = vmatmul.mubr.bf16.gmra.mrb[0].mxu0 %v1237
    %v2423 = vpop.f32.mrb[0].mxu0
    %v2424 = vadd.f32 0.0, %v2423
    %v2425 = vpop.f32.mrb[0].mxu0
    %v2426 = vadd.f32 0.0, %v2425
    %v2427 = vpop.f32.mrb[0].mxu0
    %v2428 = vadd.f32 0.0, %v2427
    %v2429 = vpop.f32.mrb[0].mxu0
    %v2430 = vadd.f32 0.0, %v2429
    %2431 = vmatprep.mubr.bf16.mxu0 %v1246
    %2432 = vmatmul.mubr.bf16.gmra.mrb[0].mxu0 %v1245
    %v2433 = vpop.f32.mrb[0].mxu0
    %v2434 = vadd.f32 0.0, %v2433
    %v2435 = vpop.f32.mrb[0].mxu0
    %v2436 = vadd.f32 0.0, %v2435
    %v2437 = vpop.f32.mrb[0].mxu0
    %v2438 = vadd.f32 0.0, %v2437
    %v2439 = vpop.f32.mrb[0].mxu0
    %v2440 = vadd.f32 0.0, %v2439
    %2441 = vmatprep.mubr.bf16.mxu0 %v1254
    %2442 = vmatmul.mubr.bf16.gmra.mrb[0].mxu0 %v1253
    %v2443 = vpop.f32.mrb[0].mxu0
    %v2444 = vadd.f32 0.0, %v2443
    %v2445 = vpop.f32.mrb[0].mxu0
    %v2446 = vadd.f32 0.0, %v2445
    %v2447 = vpop.f32.mrb[0].mxu0
    %v2448 = vadd.f32 0.0, %v2447
    %v2449 = vpop.f32.mrb[0].mxu0
    %v2450 = vadd.f32 0.0, %v2449
    %2451 = vmatprep.mubr.bf16.mxu0 %v1262
    %2452 = vmatmul.mubr.bf16.gmra.mrb[0].mxu0 %v1261
    %v2453 = vpop.f32.mrb[0].mxu0
    %v2454 = vadd.f32 0.0, %v2453
    %v2455 = vpop.f32.mrb[0].mxu0
    %v2456 = vadd.f32 0.0, %v2455
    %v2457 = vpop.f32.mrb[0].mxu0
    %v2458 = vadd.f32 0.0, %v2457
    %v2459 = vpop.f32.mrb[0].mxu0
    %v2460 = vadd.f32 0.0, %v2459
    %2461 = vmatprep.mubr.bf16.mxu0 %v1270
    %2462 = vmatmul.mubr.bf16.gmra.mrb[0].mxu0 %v1269
    %v2463 = vpop.f32.mrb[0].mxu0
    %v2464 = vadd.f32 0.0, %v2463
    %v2465 = vpop.f32.mrb[0].mxu0
    %v2466 = vadd.f32 0.0, %v2465
    %v2467 = vpop.f32.mrb[0].mxu0
    %v2468 = vadd.f32 0.0, %v2467
    %v2469 = vpop.f32.mrb[0].mxu0
    %v2470 = vadd.f32 0.0, %v2469
    %2471 = vmatprep.mubr.bf16.mxu0 %v1278
    %2472 = vmatmul.mubr.bf16.gmra.mrb[0].mxu0 %v1277
    %v2473 = vpop.f32.mrb[0].mxu0
    %v2474 = vadd.f32 0.0, %v2473
    %v2475 = vpop.f32.mrb[0].mxu0
    %v2476 = vadd.f32 0.0, %v2475
    %v2477 = vpop.f32.mrb[0].mxu0
    %v2478 = vadd.f32 0.0, %v2477
    %v2479 = vpop.f32.mrb[0].mxu0
    %v2480 = vadd.f32 0.0, %v2479
    %2481 = vmatprep.mubr.bf16.mxu0 %v1286
    %2482 = vmatmul.mubr.bf16.gmra.mrb[0].mxu0 %v1285
    %v2483 = vpop.f32.mrb[0].mxu0
    %v2484 = vadd.f32 0.0, %v2483
    %v2485 = vpop.f32.mrb[0].mxu0
    %v2486 = vadd.f32 0.0, %v2485
    %v2487 = vpop.f32.mrb[0].mxu0
    %v2488 = vadd.f32 0.0, %v2487
    %v2489 = vpop.f32.mrb[0].mxu0
    %v2490 = vadd.f32 0.0, %v2489
    %2491 = vmatprep.mubr.bf16.mxu0 %v1294
    %2492 = vmatmul.mubr.bf16.gmra.mrb[0].mxu0 %v1293
    %v2493 = vpop.f32.mrb[0].mxu0
    %v2494 = vadd.f32 0.0, %v2493
    %v2495 = vpop.f32.mrb[0].mxu0
    %v2496 = vadd.f32 0.0, %v2495
    %v2497 = vpop.f32.mrb[0].mxu0
    %v2498 = vadd.f32 0.0, %v2497
    %v2499 = vpop.f32.mrb[0].mxu0
    %v2500 = vadd.f32 0.0, %v2499
    %2501 = vmatprep.mubr.bf16.mxu0 %v1302
    %2502 = vmatmul.mubr.bf16.gmra.mrb[0].mxu0 %v1301
    %v2503 = vpop.f32.mrb[0].mxu0
    %v2504 = vadd.f32 0.0, %v2503
    %v2505 = vpop.f32.mrb[0].mxu0
    %v2506 = vadd.f32 0.0, %v2505
    %v2507 = vpop.f32.mrb[0].mxu0
    %v2508 = vadd.f32 0.0, %v2507
    %v2509 = vpop.f32.mrb[0].mxu0
    %v2510 = vadd.f32 0.0, %v2509
    %2511 = vmatprep.mubr.bf16.mxu0 %v1310
    %2512 = vmatmul.mubr.bf16.gmra.mrb[0].mxu0 %v1309
    %v2513 = vpop.f32.mrb[0].mxu0
    %v2514 = vadd.f32 0.0, %v2513
    %v2515 = vpop.f32.mrb[0].mxu0
    %v2516 = vadd.f32 0.0, %v2515
    %v2517 = vpop.f32.mrb[0].mxu0
    %v2518 = vadd.f32 0.0, %v2517
    %v2519 = vpop.f32.mrb[0].mxu0
    %v2520 = vadd.f32 0.0, %v2519
    %2521 = vmatprep.mubr.bf16.mxu0 %v1318
    %2522 = vmatmul.mubr.bf16.gmra.mrb[0].mxu0 %v1317
    %v2523 = vpop.f32.mrb[0].mxu0
    %v2524 = vadd.f32 0.0, %v2523
    %v2525 = vpop.f32.mrb[0].mxu0
    %v2526 = vadd.f32 0.0, %v2525
    %v2527 = vpop.f32.mrb[0].mxu0
    %v2528 = vadd.f32 0.0, %v2527
    %v2529 = vpop.f32.mrb[0].mxu0
    %v2530 = vadd.f32 0.0, %v2529
    %2531 = vmatprep.mubr.bf16.mxu0 %v1326
    %2532 = vmatmul.mubr.bf16.gmra.mrb[0].mxu0 %v1325
    %v2533 = vpop.f32.mrb[0].mxu0
    %v2534 = vadd.f32 0.0, %v2533
    %v2535 = vpop.f32.mrb[0].mxu0
    %v2536 = vadd.f32 0.0, %v2535
    %v2537 = vpop.f32.mrb[0].mxu0
    %v2538 = vadd.f32 0.0, %v2537
    %v2539 = vpop.f32.mrb[0].mxu0
    %v2540 = vadd.f32 0.0, %v2539
    %2541 = vmatprep.mubr.bf16.mxu0 %v1334
    %2542 = vmatmul.mubr.bf16.gmra.mrb[0].mxu0 %v1333
    %v2543 = vpop.f32.mrb[0].mxu0
    %v2544 = vadd.f32 0.0, %v2543
    %v2545 = vpop.f32.mrb[0].mxu0
    %v2546 = vadd.f32 0.0, %v2545
    %v2547 = vpop.f32.mrb[0].mxu0
    %v2548 = vadd.f32 0.0, %v2547
    %v2549 = vpop.f32.mrb[0].mxu0
    %v2550 = vadd.f32 0.0, %v2549
    %2551 = vmatprep.mubr.bf16.mxu0 %v1342
    %2552 = vmatmul.mubr.bf16.gmra.mrb[0].mxu0 %v1341
    %v2553 = vpop.f32.mrb[0].mxu0
    %v2554 = vadd.f32 0.0, %v2553
    %v2555 = vpop.f32.mrb[0].mxu0
    %v2556 = vadd.f32 0.0, %v2555
    %v2557 = vpop.f32.mrb[0].mxu0
    %v2558 = vadd.f32 0.0, %v2557
    %v2559 = vpop.f32.mrb[0].mxu0
    %v2560 = vadd.f32 0.0, %v2559
    %2561 = vmatprep.mubr.bf16.mxu0 %v1350
    %2562 = vmatmul.mubr.bf16.gmra.mrb[0].mxu0 %v1349
    %v2563 = vpop.f32.mrb[0].mxu0
    %v2564 = vadd.f32 0.0, %v2563
    %v2565 = vpop.f32.mrb[0].mxu0
    %v2566 = vadd.f32 0.0, %v2565
    %v2567 = vpop.f32.mrb[0].mxu0
    %v2568 = vadd.f32 0.0, %v2567
    %v2569 = vpop.f32.mrb[0].mxu0
    %v2570 = vadd.f32 0.0, %v2569
    %2571 = vmatprep.mubr.bf16.mxu0 %v1358
    %2572 = vmatmul.mubr.bf16.gmra.mrb[0].mxu0 %v1357
    %v2573 = vpop.f32.mrb[0].mxu0
    %v2574 = vadd.f32 0.0, %v2573
    %v2575 = vpop.f32.mrb[0].mxu0
    %v2576 = vadd.f32 0.0, %v2575
    %v2577 = vpop.f32.mrb[0].mxu0
    %v2578 = vadd.f32 0.0, %v2577
    %v2579 = vpop.f32.mrb[0].mxu0
    %v2580 = vadd.f32 0.0, %v2579
    %2581 = vmatprep.mubr.bf16.mxu0 %v1366
    %2582 = vmatmul.mubr.bf16.gmra.mrb[0].mxu0 %v1365
    %v2583 = vpop.f32.mrb[0].mxu0
    %v2584 = vadd.f32 0.0, %v2583
    %v2585 = vpop.f32.mrb[0].mxu0
    %v2586 = vadd.f32 0.0, %v2585
    %v2587 = vpop.f32.mrb[0].mxu0
    %v2588 = vadd.f32 0.0, %v2587
    %v2589 = vpop.f32.mrb[0].mxu0
    %v2590 = vadd.f32 0.0, %v2589
    %2591 = vmatprep.mubr.bf16.mxu0 %v1374
    %2592 = vmatmul.mubr.bf16.gmra.mrb[0].mxu0 %v1373
    %v2593 = vpop.f32.mrb[0].mxu0
    %v2594 = vadd.f32 0.0, %v2593
    %v2595 = vpop.f32.mrb[0].mxu0
    %v2596 = vadd.f32 0.0, %v2595
    %v2597 = vpop.f32.mrb[0].mxu0
    %v2598 = vadd.f32 0.0, %v2597
    %v2599 = vpop.f32.mrb[0].mxu0
    %v2600 = vadd.f32 0.0, %v2599
    %2601 = vmatprep.mubr.bf16.mxu0 %v1382
    %2602 = vmatmul.mubr.bf16.gmra.mrb[0].mxu0 %v1381
    %v2603 = vpop.f32.mrb[0].mxu0
    %v2604 = vadd.f32 0.0, %v2603
    %v2605 = vpop.f32.mrb[0].mxu0
    %v2606 = vadd.f32 0.0, %v2605
    %v2607 = vpop.f32.mrb[0].mxu0
    %v2608 = vadd.f32 0.0, %v2607
    %v2609 = vpop.f32.mrb[0].mxu0
    %v2610 = vadd.f32 0.0, %v2609
    %2611 = vmatprep.mubr.bf16.mxu0 %v1390
    %2612 = vmatmul.mubr.bf16.gmra.mrb[0].mxu0 %v1389
    %v2613 = vpop.f32.mrb[0].mxu0
    %v2614 = vadd.f32 0.0, %v2613
    %v2615 = vpop.f32.mrb[0].mxu0
    %v2616 = vadd.f32 0.0, %v2615
    %v2617 = vpop.f32.mrb[0].mxu0
    %v2618 = vadd.f32 0.0, %v2617
    %v2619 = vpop.f32.mrb[0].mxu0
    %v2620 = vadd.f32 0.0, %v2619
    %2621 = vmatprep.mubr.bf16.mxu0 %v1398
    %2622 = vmatmul.mubr.bf16.gmra.mrb[0].mxu0 %v1397
    %v2623 = vpop.f32.mrb[0].mxu0
    %v2624 = vadd.f32 0.0, %v2623
    %v2625 = vpop.f32.mrb[0].mxu0
    %v2626 = vadd.f32 0.0, %v2625
    %v2627 = vpop.f32.mrb[0].mxu0
    %v2628 = vadd.f32 0.0, %v2627
    %v2629 = vpop.f32.mrb[0].mxu0
    %v2630 = vadd.f32 0.0, %v2629
    %2631 = vmatprep.mubr.bf16.mxu0 %v1406
    %2632 = vmatmul.mubr.bf16.gmra.mrb[0].mxu0 %v1405
    %v2633 = vpop.f32.mrb[0].mxu0
    %v2634 = vadd.f32 0.0, %v2633
    %v2635 = vpop.f32.mrb[0].mxu0
    %v2636 = vadd.f32 0.0, %v2635
    %v2637 = vpop.f32.mrb[0].mxu0
    %v2638 = vadd.f32 0.0, %v2637
    %v2639 = vpop.f32.mrb[0].mxu0
    %v2640 = vadd.f32 0.0, %v2639
    %2641 = vmatprep.mubr.bf16.mxu0 %v1414
    %2642 = vmatmul.mubr.bf16.gmra.mrb[0].mxu0 %v1413
    %v2643 = vpop.f32.mrb[0].mxu0
    %v2644 = vadd.f32 0.0, %v2643
    %v2645 = vpop.f32.mrb[0].mxu0
    %v2646 = vadd.f32 0.0, %v2645
    %v2647 = vpop.f32.mrb[0].mxu0
    %v2648 = vadd.f32 0.0, %v2647
    %v2649 = vpop.f32.mrb[0].mxu0
    %v2650 = vadd.f32 0.0, %v2649
    %2651 = vmatprep.mubr.bf16.mxu0 %v1422
    %2652 = vmatmul.mubr.bf16.gmra.mrb[0].mxu0 %v1421
    %v2653 = vpop.f32.mrb[0].mxu0
    %v2654 = vadd.f32 0.0, %v2653
    %v2655 = vpop.f32.mrb[0].mxu0
    %v2656 = vadd.f32 0.0, %v2655
    %v2657 = vpop.f32.mrb[0].mxu0
    %v2658 = vadd.f32 0.0, %v2657
    %v2659 = vpop.f32.mrb[0].mxu0
    %v2660 = vadd.f32 0.0, %v2659
    %2661 = vmatprep.mubr.bf16.mxu0 %v1430
    %2662 = vmatmul.mubr.bf16.gmra.mrb[0].mxu0 %v1429
    %v2663 = vpop.f32.mrb[0].mxu0
    %v2664 = vadd.f32 0.0, %v2663
    %v2665 = vpop.f32.mrb[0].mxu0
    %v2666 = vadd.f32 0.0, %v2665
    %v2667 = vpop.f32.mrb[0].mxu0
    %v2668 = vadd.f32 0.0, %v2667
    %v2669 = vpop.f32.mrb[0].mxu0
    %v2670 = vadd.f32 0.0, %v2669
    %2671 = vmatprep.mubr.bf16.mxu0 %v1438
    %2672 = vmatmul.mubr.bf16.gmra.mrb[0].mxu0 %v1437
    %v2673 = vpop.f32.mrb[0].mxu0
    %v2674 = vadd.f32 0.0, %v2673
    %v2675 = vpop.f32.mrb[0].mxu0
    %v2676 = vadd.f32 0.0, %v2675
    %v2677 = vpop.f32.mrb[0].mxu0
    %v2678 = vadd.f32 0.0, %v2677
    %v2679 = vpop.f32.mrb[0].mxu0
    %v2680 = vadd.f32 0.0, %v2679
    %2681 = vmatprep.mubr.bf16.mxu0 %v1446
    %2682 = vmatmul.mubr.bf16.gmra.mrb[0].mxu0 %v1445
    %v2683 = vpop.f32.mrb[0].mxu0
    %v2684 = vadd.f32 0.0, %v2683
    %v2685 = vpop.f32.mrb[0].mxu0
    %v2686 = vadd.f32 0.0, %v2685
    %v2687 = vpop.f32.mrb[0].mxu0
    %v2688 = vadd.f32 0.0, %v2687
    %v2689 = vpop.f32.mrb[0].mxu0
    %v2690 = vadd.f32 0.0, %v2689
    %2691 = vmatprep.mubr.bf16.mxu0 %v1454
    %2692 = vmatmul.mubr.bf16.gmra.mrb[0].mxu0 %v1453
    %v2693 = vpop.f32.mrb[0].mxu0
    %v2694 = vadd.f32 0.0, %v2693
    %v2695 = vpop.f32.mrb[0].mxu0
    %v2696 = vadd.f32 0.0, %v2695
    %v2697 = vpop.f32.mrb[0].mxu0
    %v2698 = vadd.f32 0.0, %v2697
    %v2699 = vpop.f32.mrb[0].mxu0
    %v2700 = vadd.f32 0.0, %v2699
    %2701 = vmatprep.mubr.bf16.mxu0 %v1462
    %2702 = vmatmul.mubr.bf16.gmra.mrb[0].mxu0 %v1461
    %v2703 = vpop.f32.mrb[0].mxu0
    %v2704 = vadd.f32 0.0, %v2703
    %v2705 = vpop.f32.mrb[0].mxu0
    %v2706 = vadd.f32 0.0, %v2705
    %v2707 = vpop.f32.mrb[0].mxu0
    %v2708 = vadd.f32 0.0, %v2707
    %v2709 = vpop.f32.mrb[0].mxu0
    %v2710 = vadd.f32 0.0, %v2709
    %2711 = vmatprep.mubr.bf16.mxu0 %v1470
    %2712 = vmatmul.mubr.bf16.gmra.mrb[0].mxu0 %v1469
    %v2713 = vpop.f32.mrb[0].mxu0
    %v2714 = vadd.f32 0.0, %v2713
    %v2715 = vpop.f32.mrb[0].mxu0
    %v2716 = vadd.f32 0.0, %v2715
    %v2717 = vpop.f32.mrb[0].mxu0
    %v2718 = vadd.f32 0.0, %v2717
    %v2719 = vpop.f32.mrb[0].mxu0
    %v2720 = vadd.f32 0.0, %v2719
    %2721 = vmatprep.mubr.bf16.mxu0 %v1478
    %2722 = vmatmul.mubr.bf16.gmra.mrb[0].mxu0 %v1477
    %v2723 = vpop.f32.mrb[0].mxu0
    %v2724 = vadd.f32 0.0, %v2723
    %v2725 = vpop.f32.mrb[0].mxu0
    %v2726 = vadd.f32 0.0, %v2725
    %v2727 = vpop.f32.mrb[0].mxu0
    %v2728 = vadd.f32 0.0, %v2727
    %v2729 = vpop.f32.mrb[0].mxu0
    %v2730 = vadd.f32 0.0, %v2729
    %2731 = vmatprep.mubr.bf16.mxu0 %v1486
    %2732 = vmatmul.mubr.bf16.gmra.mrb[0].mxu0 %v1485
    %v2733 = vpop.f32.mrb[0].mxu0
    %v2734 = vadd.f32 0.0, %v2733
    %v2735 = vpop.f32.mrb[0].mxu0
    %v2736 = vadd.f32 0.0, %v2735
    %v2737 = vpop.f32.mrb[0].mxu0
    %v2738 = vadd.f32 0.0, %v2737
    %v2739 = vpop.f32.mrb[0].mxu0
    %v2740 = vadd.f32 0.0, %v2739
    %2741 = vdwg.mxu0
    %2742 = vmatprep.subr.bf16.mxu0 %v2166
    %2743 = vmatpush1.bf16.msra.mxu0 %v2165
    %2744 = vmatprep.subr.bf16.mxu0 %v2168
    %2745 = vmatpush1.bf16.msra.mxu0 %v2167
    %2746 = vmatprep.subr.bf16.mxu0 %v2170
    %2747 = vmatpush1.bf16.msra.mxu0 %v2169
    %2748 = vmatprep.subr.bf16.mxu0 %v2172
    %2749 = vmatpush1.bf16.msra.mxu0 %v2171
    %2750 = vmatprep.subr.bf16.mxu0 %v2174
    %2751 = vmatpush1.bf16.msra.mxu0 %v2173
    %2752 = vmatprep.subr.bf16.mxu0 %v2176
    %2753 = vmatpush1.bf16.msra.mxu0 %v2175
    %2754 = vmatprep.subr.bf16.mxu0 %v2178
    %2755 = vmatpush1.bf16.msra.mxu0 %v2177
    %2756 = vmatprep.subr.bf16.mxu0 %v2180
    %2757 = vmatpush1.bf16.msra.mxu0 %v2179
    %2758 = vmatprep.subr.bf16.mxu0 %v2182
    %2759 = vmatpush1.bf16.msra.mxu0 %v2181
    %2760 = vmatprep.subr.bf16.mxu0 %v2184
    %2761 = vmatpush1.bf16.msra.mxu0 %v2183
    %2762 = vmatprep.subr.bf16.mxu0 %v2186
    %2763 = vmatpush1.bf16.msra.mxu0 %v2185
    %2764 = vmatprep.subr.bf16.mxu0 %v2188
    %2765 = vmatpush1.bf16.msra.mxu0 %v2187
    %2766 = vmatprep.subr.bf16.mxu0 %v2190
    %2767 = vmatpush1.bf16.msra.mxu0 %v2189
    %2768 = vmatprep.subr.bf16.mxu0 %v2192
    %2769 = vmatpush1.bf16.msra.mxu0 %v2191
    %2770 = vmatprep.subr.bf16.mxu0 %v2194
    %2771 = vmatpush1.bf16.msra.mxu0 %v2193
    %2772 = vmatprep.subr.bf16.mxu0 %v2196
    %2773 = vmatpush1.bf16.msra.mxu0 %v2195
    %2774 = vmatprep.mubr.bf16.mxu0 %v1240
    %2775 = vmatmul.mubr.bf16.gmra.mrb[0].mxu0 %v1239
    %v2776 = vpop.f32.mrb[0].mxu0
    %v2777 = vadd.f32 %v2424, %v2776
    %v2778 = vpop.f32.mrb[0].mxu0
    %v2779 = vadd.f32 %v2426, %v2778
    %v2780 = vpop.f32.mrb[0].mxu0
    %v2781 = vadd.f32 %v2428, %v2780
    %v2782 = vpop.f32.mrb[0].mxu0
    %v2783 = vadd.f32 %v2430, %v2782
    %2784 = vmatprep.mubr.bf16.mxu0 %v1248
    %2785 = vmatmul.mubr.bf16.gmra.mrb[0].mxu0 %v1247
    %v2786 = vpop.f32.mrb[0].mxu0
    %v2787 = vadd.f32 %v2434, %v2786
    %v2788 = vpop.f32.mrb[0].mxu0
    %v2789 = vadd.f32 %v2436, %v2788
    %v2790 = vpop.f32.mrb[0].mxu0
    %v2791 = vadd.f32 %v2438, %v2790
    %v2792 = vpop.f32.mrb[0].mxu0
    %v2793 = vadd.f32 %v2440, %v2792
    %2794 = vmatprep.mubr.bf16.mxu0 %v1256
    %2795 = vmatmul.mubr.bf16.gmra.mrb[0].mxu0 %v1255
    %v2796 = vpop.f32.mrb[0].mxu0
    %v2797 = vadd.f32 %v2444, %v2796
    %v2798 = vpop.f32.mrb[0].mxu0
    %v2799 = vadd.f32 %v2446, %v2798
    %v2800 = vpop.f32.mrb[0].mxu0
    %v2801 = vadd.f32 %v2448, %v2800
    %v2802 = vpop.f32.mrb[0].mxu0
    %v2803 = vadd.f32 %v2450, %v2802
    %2804 = vmatprep.mubr.bf16.mxu0 %v1264
    %2805 = vmatmul.mubr.bf16.gmra.mrb[0].mxu0 %v1263
    %v2806 = vpop.f32.mrb[0].mxu0
    %v2807 = vadd.f32 %v2454, %v2806
    %v2808 = vpop.f32.mrb[0].mxu0
    %v2809 = vadd.f32 %v2456, %v2808
    %v2810 = vpop.f32.mrb[0].mxu0
    %v2811 = vadd.f32 %v2458, %v2810
    %v2812 = vpop.f32.mrb[0].mxu0
    %v2813 = vadd.f32 %v2460, %v2812
    %2814 = vmatprep.mubr.bf16.mxu0 %v1272
    %2815 = vmatmul.mubr.bf16.gmra.mrb[0].mxu0 %v1271
    %v2816 = vpop.f32.mrb[0].mxu0
    %v2817 = vadd.f32 %v2464, %v2816
    %v2818 = vpop.f32.mrb[0].mxu0
    %v2819 = vadd.f32 %v2466, %v2818
    %v2820 = vpop.f32.mrb[0].mxu0
    %v2821 = vadd.f32 %v2468, %v2820
    %v2822 = vpop.f32.mrb[0].mxu0
    %v2823 = vadd.f32 %v2470, %v2822
    %2824 = vmatprep.mubr.bf16.mxu0 %v1280
    %2825 = vmatmul.mubr.bf16.gmra.mrb[0].mxu0 %v1279
    %v2826 = vpop.f32.mrb[0].mxu0
    %v2827 = vadd.f32 %v2474, %v2826
    %v2828 = vpop.f32.mrb[0].mxu0
    %v2829 = vadd.f32 %v2476, %v2828
    %v2830 = vpop.f32.mrb[0].mxu0
    %v2831 = vadd.f32 %v2478, %v2830
    %v2832 = vpop.f32.mrb[0].mxu0
    %v2833 = vadd.f32 %v2480, %v2832
    %2834 = vmatprep.mubr.bf16.mxu0 %v1288
    %2835 = vmatmul.mubr.bf16.gmra.mrb[0].mxu0 %v1287
    %v2836 = vpop.f32.mrb[0].mxu0
    %v2837 = vadd.f32 %v2484, %v2836
    %v2838 = vpop.f32.mrb[0].mxu0
    %v2839 = vadd.f32 %v2486, %v2838
    %v2840 = vpop.f32.mrb[0].mxu0
    %v2841 = vadd.f32 %v2488, %v2840
    %v2842 = vpop.f32.mrb[0].mxu0
    %v2843 = vadd.f32 %v2490, %v2842
    %2844 = vmatprep.mubr.bf16.mxu0 %v1296
    %2845 = vmatmul.mubr.bf16.gmra.mrb[0].mxu0 %v1295
    %v2846 = vpop.f32.mrb[0].mxu0
    %v2847 = vadd.f32 %v2494, %v2846
    %v2848 = vpop.f32.mrb[0].mxu0
    %v2849 = vadd.f32 %v2496, %v2848
    %v2850 = vpop.f32.mrb[0].mxu0
    %v2851 = vadd.f32 %v2498, %v2850
    %v2852 = vpop.f32.mrb[0].mxu0
    %v2853 = vadd.f32 %v2500, %v2852
    %2854 = vmatprep.mubr.bf16.mxu0 %v1304
    %2855 = vmatmul.mubr.bf16.gmra.mrb[0].mxu0 %v1303
    %v2856 = vpop.f32.mrb[0].mxu0
    %v2857 = vadd.f32 %v2504, %v2856
    %v2858 = vpop.f32.mrb[0].mxu0
    %v2859 = vadd.f32 %v2506, %v2858
    %v2860 = vpop.f32.mrb[0].mxu0
    %v2861 = vadd.f32 %v2508, %v2860
    %v2862 = vpop.f32.mrb[0].mxu0
    %v2863 = vadd.f32 %v2510, %v2862
    %2864 = vmatprep.mubr.bf16.mxu0 %v1312
    %2865 = vmatmul.mubr.bf16.gmra.mrb[0].mxu0 %v1311
    %v2866 = vpop.f32.mrb[0].mxu0
    %v2867 = vadd.f32 %v2514, %v2866
    %v2868 = vpop.f32.mrb[0].mxu0
    %v2869 = vadd.f32 %v2516, %v2868
    %v2870 = vpop.f32.mrb[0].mxu0
    %v2871 = vadd.f32 %v2518, %v2870
    %v2872 = vpop.f32.mrb[0].mxu0
    %v2873 = vadd.f32 %v2520, %v2872
    %2874 = vmatprep.mubr.bf16.mxu0 %v1320
    %2875 = vmatmul.mubr.bf16.gmra.mrb[0].mxu0 %v1319
    %v2876 = vpop.f32.mrb[0].mxu0
    %v2877 = vadd.f32 %v2524, %v2876
    %v2878 = vpop.f32.mrb[0].mxu0
    %v2879 = vadd.f32 %v2526, %v2878
    %v2880 = vpop.f32.mrb[0].mxu0
    %v2881 = vadd.f32 %v2528, %v2880
    %v2882 = vpop.f32.mrb[0].mxu0
    %v2883 = vadd.f32 %v2530, %v2882
    %2884 = vmatprep.mubr.bf16.mxu0 %v1328
    %2885 = vmatmul.mubr.bf16.gmra.mrb[0].mxu0 %v1327
    %v2886 = vpop.f32.mrb[0].mxu0
    %v2887 = vadd.f32 %v2534, %v2886
    %v2888 = vpop.f32.mrb[0].mxu0
    %v2889 = vadd.f32 %v2536, %v2888
    %v2890 = vpop.f32.mrb[0].mxu0
    %v2891 = vadd.f32 %v2538, %v2890
    %v2892 = vpop.f32.mrb[0].mxu0
    %v2893 = vadd.f32 %v2540, %v2892
    %2894 = vmatprep.mubr.bf16.mxu0 %v1336
    %2895 = vmatmul.mubr.bf16.gmra.mrb[0].mxu0 %v1335
    %v2896 = vpop.f32.mrb[0].mxu0
    %v2897 = vadd.f32 %v2544, %v2896
    %v2898 = vpop.f32.mrb[0].mxu0
    %v2899 = vadd.f32 %v2546, %v2898
    %v2900 = vpop.f32.mrb[0].mxu0
    %v2901 = vadd.f32 %v2548, %v2900
    %v2902 = vpop.f32.mrb[0].mxu0
    %v2903 = vadd.f32 %v2550, %v2902
    %2904 = vmatprep.mubr.bf16.mxu0 %v1344
    %2905 = vmatmul.mubr.bf16.gmra.mrb[0].mxu0 %v1343
    %v2906 = vpop.f32.mrb[0].mxu0
    %v2907 = vadd.f32 %v2554, %v2906
    %v2908 = vpop.f32.mrb[0].mxu0
    %v2909 = vadd.f32 %v2556, %v2908
    %v2910 = vpop.f32.mrb[0].mxu0
    %v2911 = vadd.f32 %v2558, %v2910
    %v2912 = vpop.f32.mrb[0].mxu0
    %v2913 = vadd.f32 %v2560, %v2912
    %2914 = vmatprep.mubr.bf16.mxu0 %v1352
    %2915 = vmatmul.mubr.bf16.gmra.mrb[0].mxu0 %v1351
    %v2916 = vpop.f32.mrb[0].mxu0
    %v2917 = vadd.f32 %v2564, %v2916
    %v2918 = vpop.f32.mrb[0].mxu0
    %v2919 = vadd.f32 %v2566, %v2918
    %v2920 = vpop.f32.mrb[0].mxu0
    %v2921 = vadd.f32 %v2568, %v2920
    %v2922 = vpop.f32.mrb[0].mxu0
    %v2923 = vadd.f32 %v2570, %v2922
    %2924 = vmatprep.mubr.bf16.mxu0 %v1360
    %2925 = vmatmul.mubr.bf16.gmra.mrb[0].mxu0 %v1359
    %v2926 = vpop.f32.mrb[0].mxu0
    %v2927 = vadd.f32 %v2574, %v2926
    %v2928 = vpop.f32.mrb[0].mxu0
    %v2929 = vadd.f32 %v2576, %v2928
    %v2930 = vpop.f32.mrb[0].mxu0
    %v2931 = vadd.f32 %v2578, %v2930
    %v2932 = vpop.f32.mrb[0].mxu0
    %v2933 = vadd.f32 %v2580, %v2932
    %2934 = vmatprep.mubr.bf16.mxu0 %v1368
    %2935 = vmatmul.mubr.bf16.gmra.mrb[0].mxu0 %v1367
    %v2936 = vpop.f32.mrb[0].mxu0
    %v2937 = vadd.f32 %v2584, %v2936
    %v2938 = vpop.f32.mrb[0].mxu0
    %v2939 = vadd.f32 %v2586, %v2938
    %v2940 = vpop.f32.mrb[0].mxu0
    %v2941 = vadd.f32 %v2588, %v2940
    %v2942 = vpop.f32.mrb[0].mxu0
    %v2943 = vadd.f32 %v2590, %v2942
    %2944 = vmatprep.mubr.bf16.mxu0 %v1376
    %2945 = vmatmul.mubr.bf16.gmra.mrb[0].mxu0 %v1375
    %v2946 = vpop.f32.mrb[0].mxu0
    %v2947 = vadd.f32 %v2594, %v2946
    %v2948 = vpop.f32.mrb[0].mxu0
    %v2949 = vadd.f32 %v2596, %v2948
    %v2950 = vpop.f32.mrb[0].mxu0
    %v2951 = vadd.f32 %v2598, %v2950
    %v2952 = vpop.f32.mrb[0].mxu0
    %v2953 = vadd.f32 %v2600, %v2952
    %2954 = vmatprep.mubr.bf16.mxu0 %v1384
    %2955 = vmatmul.mubr.bf16.gmra.mrb[0].mxu0 %v1383
    %v2956 = vpop.f32.mrb[0].mxu0
    %v2957 = vadd.f32 %v2604, %v2956
    %v2958 = vpop.f32.mrb[0].mxu0
    %v2959 = vadd.f32 %v2606, %v2958
    %v2960 = vpop.f32.mrb[0].mxu0
    %v2961 = vadd.f32 %v2608, %v2960
    %v2962 = vpop.f32.mrb[0].mxu0
    %v2963 = vadd.f32 %v2610, %v2962
    %2964 = vmatprep.mubr.bf16.mxu0 %v1392
    %2965 = vmatmul.mubr.bf16.gmra.mrb[0].mxu0 %v1391
    %v2966 = vpop.f32.mrb[0].mxu0
    %v2967 = vadd.f32 %v2614, %v2966
    %v2968 = vpop.f32.mrb[0].mxu0
    %v2969 = vadd.f32 %v2616, %v2968
    %v2970 = vpop.f32.mrb[0].mxu0
    %v2971 = vadd.f32 %v2618, %v2970
    %v2972 = vpop.f32.mrb[0].mxu0
    %v2973 = vadd.f32 %v2620, %v2972
    %2974 = vmatprep.mubr.bf16.mxu0 %v1400
    %2975 = vmatmul.mubr.bf16.gmra.mrb[0].mxu0 %v1399
    %v2976 = vpop.f32.mrb[0].mxu0
    %v2977 = vadd.f32 %v2624, %v2976
    %v2978 = vpop.f32.mrb[0].mxu0
    %v2979 = vadd.f32 %v2626, %v2978
    %v2980 = vpop.f32.mrb[0].mxu0
    %v2981 = vadd.f32 %v2628, %v2980
    %v2982 = vpop.f32.mrb[0].mxu0
    %v2983 = vadd.f32 %v2630, %v2982
    %2984 = vmatprep.mubr.bf16.mxu0 %v1408
    %2985 = vmatmul.mubr.bf16.gmra.mrb[0].mxu0 %v1407
    %v2986 = vpop.f32.mrb[0].mxu0
    %v2987 = vadd.f32 %v2634, %v2986
    %v2988 = vpop.f32.mrb[0].mxu0
    %v2989 = vadd.f32 %v2636, %v2988
    %v2990 = vpop.f32.mrb[0].mxu0
    %v2991 = vadd.f32 %v2638, %v2990
    %v2992 = vpop.f32.mrb[0].mxu0
    %v2993 = vadd.f32 %v2640, %v2992
    %2994 = vmatprep.mubr.bf16.mxu0 %v1416
    %2995 = vmatmul.mubr.bf16.gmra.mrb[0].mxu0 %v1415
    %v2996 = vpop.f32.mrb[0].mxu0
    %v2997 = vadd.f32 %v2644, %v2996
    %v2998 = vpop.f32.mrb[0].mxu0
    %v2999 = vadd.f32 %v2646, %v2998
    %v3000 = vpop.f32.mrb[0].mxu0
    %v3001 = vadd.f32 %v2648, %v3000
    %v3002 = vpop.f32.mrb[0].mxu0
    %v3003 = vadd.f32 %v2650, %v3002
    %3004 = vmatprep.mubr.bf16.mxu0 %v1424
    %3005 = vmatmul.mubr.bf16.gmra.mrb[0].mxu0 %v1423
    %v3006 = vpop.f32.mrb[0].mxu0
    %v3007 = vadd.f32 %v2654, %v3006
    %v3008 = vpop.f32.mrb[0].mxu0
    %v3009 = vadd.f32 %v2656, %v3008
    %v3010 = vpop.f32.mrb[0].mxu0
    %v3011 = vadd.f32 %v2658, %v3010
    %v3012 = vpop.f32.mrb[0].mxu0
    %v3013 = vadd.f32 %v2660, %v3012
    %3014 = vmatprep.mubr.bf16.mxu0 %v1432
    %3015 = vmatmul.mubr.bf16.gmra.mrb[0].mxu0 %v1431
    %v3016 = vpop.f32.mrb[0].mxu0
    %v3017 = vadd.f32 %v2664, %v3016
    %v3018 = vpop.f32.mrb[0].mxu0
    %v3019 = vadd.f32 %v2666, %v3018
    %v3020 = vpop.f32.mrb[0].mxu0
    %v3021 = vadd.f32 %v2668, %v3020
    %v3022 = vpop.f32.mrb[0].mxu0
    %v3023 = vadd.f32 %v2670, %v3022
    %3024 = vmatprep.mubr.bf16.mxu0 %v1440
    %3025 = vmatmul.mubr.bf16.gmra.mrb[0].mxu0 %v1439
    %v3026 = vpop.f32.mrb[0].mxu0
    %v3027 = vadd.f32 %v2674, %v3026
    %v3028 = vpop.f32.mrb[0].mxu0
    %v3029 = vadd.f32 %v2676, %v3028
    %v3030 = vpop.f32.mrb[0].mxu0
    %v3031 = vadd.f32 %v2678, %v3030
    %v3032 = vpop.f32.mrb[0].mxu0
    %v3033 = vadd.f32 %v2680, %v3032
    %3034 = vmatprep.mubr.bf16.mxu0 %v1448
    %3035 = vmatmul.mubr.bf16.gmra.mrb[0].mxu0 %v1447
    %v3036 = vpop.f32.mrb[0].mxu0
    %v3037 = vadd.f32 %v2684, %v3036
    %v3038 = vpop.f32.mrb[0].mxu0
    %v3039 = vadd.f32 %v2686, %v3038
    %v3040 = vpop.f32.mrb[0].mxu0
    %v3041 = vadd.f32 %v2688, %v3040
    %v3042 = vpop.f32.mrb[0].mxu0
    %v3043 = vadd.f32 %v2690, %v3042
    %3044 = vmatprep.mubr.bf16.mxu0 %v1456
    %3045 = vmatmul.mubr.bf16.gmra.mrb[0].mxu0 %v1455
    %v3046 = vpop.f32.mrb[0].mxu0
    %v3047 = vadd.f32 %v2694, %v3046
    %v3048 = vpop.f32.mrb[0].mxu0
    %v3049 = vadd.f32 %v2696, %v3048
    %v3050 = vpop.f32.mrb[0].mxu0
    %v3051 = vadd.f32 %v2698, %v3050
    %v3052 = vpop.f32.mrb[0].mxu0
    %v3053 = vadd.f32 %v2700, %v3052
    %3054 = vmatprep.mubr.bf16.mxu0 %v1464
    %3055 = vmatmul.mubr.bf16.gmra.mrb[0].mxu0 %v1463
    %v3056 = vpop.f32.mrb[0].mxu0
    %v3057 = vadd.f32 %v2704, %v3056
    %v3058 = vpop.f32.mrb[0].mxu0
    %v3059 = vadd.f32 %v2706, %v3058
    %v3060 = vpop.f32.mrb[0].mxu0
    %v3061 = vadd.f32 %v2708, %v3060
    %v3062 = vpop.f32.mrb[0].mxu0
    %v3063 = vadd.f32 %v2710, %v3062
    %3064 = vmatprep.mubr.bf16.mxu0 %v1472
    %3065 = vmatmul.mubr.bf16.gmra.mrb[0].mxu0 %v1471
    %v3066 = vpop.f32.mrb[0].mxu0
    %v3067 = vadd.f32 %v2714, %v3066
    %v3068 = vpop.f32.mrb[0].mxu0
    %v3069 = vadd.f32 %v2716, %v3068
    %v3070 = vpop.f32.mrb[0].mxu0
    %v3071 = vadd.f32 %v2718, %v3070
    %v3072 = vpop.f32.mrb[0].mxu0
    %v3073 = vadd.f32 %v2720, %v3072
    %3074 = vmatprep.mubr.bf16.mxu0 %v1480
    %3075 = vmatmul.mubr.bf16.gmra.mrb[0].mxu0 %v1479
    %v3076 = vpop.f32.mrb[0].mxu0
    %v3077 = vadd.f32 %v2724, %v3076
    %v3078 = vpop.f32.mrb[0].mxu0
    %v3079 = vadd.f32 %v2726, %v3078
    %v3080 = vpop.f32.mrb[0].mxu0
    %v3081 = vadd.f32 %v2728, %v3080
    %v3082 = vpop.f32.mrb[0].mxu0
    %v3083 = vadd.f32 %v2730, %v3082
    %3084 = vmatprep.mubr.bf16.mxu0 %v1488
    %3085 = vmatmul.mubr.bf16.gmra.mrb[0].mxu0 %v1487
    %v3086 = vpop.f32.mrb[0].mxu0
    %v3087 = vadd.f32 %v2734, %v3086
    %v3088 = vpop.f32.mrb[0].mxu0
    %v3089 = vadd.f32 %v2736, %v3088
    %v3090 = vpop.f32.mrb[0].mxu0
    %v3091 = vadd.f32 %v2738, %v3090
    %v3092 = vpop.f32.mrb[0].mxu0
    %v3093 = vadd.f32 %v2740, %v3092
    %3094 = vdwg.mxu0
    %3095 = vmatprep.subr.bf16.mxu0 %v2198
    %3096 = vmatpush1.bf16.msra.mxu0 %v2197
    %3097 = vmatprep.subr.bf16.mxu0 %v2200
    %3098 = vmatpush1.bf16.msra.mxu0 %v2199
    %3099 = vmatprep.subr.bf16.mxu0 %v2202
    %3100 = vmatpush1.bf16.msra.mxu0 %v2201
    %3101 = vmatprep.subr.bf16.mxu0 %v2204
    %3102 = vmatpush1.bf16.msra.mxu0 %v2203
    %3103 = vmatprep.subr.bf16.mxu0 %v2206
    %3104 = vmatpush1.bf16.msra.mxu0 %v2205
    %3105 = vmatprep.subr.bf16.mxu0 %v2208
    %3106 = vmatpush1.bf16.msra.mxu0 %v2207
    %3107 = vmatprep.subr.bf16.mxu0 %v2210
    %3108 = vmatpush1.bf16.msra.mxu0 %v2209
    %3109 = vmatprep.subr.bf16.mxu0 %v2212
    %3110 = vmatpush1.bf16.msra.mxu0 %v2211
    %3111 = vmatprep.subr.bf16.mxu0 %v2214
    %3112 = vmatpush1.bf16.msra.mxu0 %v2213
    %3113 = vmatprep.subr.bf16.mxu0 %v2216
    %3114 = vmatpush1.bf16.msra.mxu0 %v2215
    %3115 = vmatprep.subr.bf16.mxu0 %v2218
    %3116 = vmatpush1.bf16.msra.mxu0 %v2217
    %3117 = vmatprep.subr.bf16.mxu0 %v2220
    %3118 = vmatpush1.bf16.msra.mxu0 %v2219
    %3119 = vmatprep.subr.bf16.mxu0 %v2222
    %3120 = vmatpush1.bf16.msra.mxu0 %v2221
    %3121 = vmatprep.subr.bf16.mxu0 %v2224
    %3122 = vmatpush1.bf16.msra.mxu0 %v2223
    %3123 = vmatprep.subr.bf16.mxu0 %v2226
    %3124 = vmatpush1.bf16.msra.mxu0 %v2225
    %3125 = vmatprep.subr.bf16.mxu0 %v2228
    %3126 = vmatpush1.bf16.msra.mxu0 %v2227
    %3127 = vmatprep.mubr.bf16.mxu0 %v1242
    %3128 = vmatmul.mubr.bf16.gmra.mrb[0].mxu0 %v1241
    %v3129 = vpop.f32.mrb[0].mxu0
    %v3130 = vadd.f32 %v2777, %v3129
    %v3131 = vpop.f32.mrb[0].mxu0
    %v3132 = vadd.f32 %v2779, %v3131
    %v3133 = vpop.f32.mrb[0].mxu0
    %v3134 = vadd.f32 %v2781, %v3133
    %v3135 = vpop.f32.mrb[0].mxu0
    %v3136 = vadd.f32 %v2783, %v3135
    %3137 = vmatprep.mubr.bf16.mxu0 %v1250
    %3138 = vmatmul.mubr.bf16.gmra.mrb[0].mxu0 %v1249
    %v3139 = vpop.f32.mrb[0].mxu0
    %v3140 = vadd.f32 %v2787, %v3139
    %v3141 = vpop.f32.mrb[0].mxu0
    %v3142 = vadd.f32 %v2789, %v3141
    %v3143 = vpop.f32.mrb[0].mxu0
    %v3144 = vadd.f32 %v2791, %v3143
    %v3145 = vpop.f32.mrb[0].mxu0
    %v3146 = vadd.f32 %v2793, %v3145
    %3147 = vmatprep.mubr.bf16.mxu0 %v1258
    %3148 = vmatmul.mubr.bf16.gmra.mrb[0].mxu0 %v1257
    %v3149 = vpop.f32.mrb[0].mxu0
    %v3150 = vadd.f32 %v2797, %v3149
    %v3151 = vpop.f32.mrb[0].mxu0
    %v3152 = vadd.f32 %v2799, %v3151
    %v3153 = vpop.f32.mrb[0].mxu0
    %v3154 = vadd.f32 %v2801, %v3153
    %v3155 = vpop.f32.mrb[0].mxu0
    %v3156 = vadd.f32 %v2803, %v3155
    %3157 = vmatprep.mubr.bf16.mxu0 %v1266
    %3158 = vmatmul.mubr.bf16.gmra.mrb[0].mxu0 %v1265
    %v3159 = vpop.f32.mrb[0].mxu0
    %v3160 = vadd.f32 %v2807, %v3159
    %v3161 = vpop.f32.mrb[0].mxu0
    %v3162 = vadd.f32 %v2809, %v3161
    %v3163 = vpop.f32.mrb[0].mxu0
    %v3164 = vadd.f32 %v2811, %v3163
    %v3165 = vpop.f32.mrb[0].mxu0
    %v3166 = vadd.f32 %v2813, %v3165
    %3167 = vmatprep.mubr.bf16.mxu0 %v1274
    %3168 = vmatmul.mubr.bf16.gmra.mrb[0].mxu0 %v1273
    %v3169 = vpop.f32.mrb[0].mxu0
    %v3170 = vadd.f32 %v2817, %v3169
    %v3171 = vpop.f32.mrb[0].mxu0
    %v3172 = vadd.f32 %v2819, %v3171
    %v3173 = vpop.f32.mrb[0].mxu0
    %v3174 = vadd.f32 %v2821, %v3173
    %v3175 = vpop.f32.mrb[0].mxu0
    %v3176 = vadd.f32 %v2823, %v3175
    %3177 = vmatprep.mubr.bf16.mxu0 %v1282
    %3178 = vmatmul.mubr.bf16.gmra.mrb[0].mxu0 %v1281
    %v3179 = vpop.f32.mrb[0].mxu0
    %v3180 = vadd.f32 %v2827, %v3179
    %v3181 = vpop.f32.mrb[0].mxu0
    %v3182 = vadd.f32 %v2829, %v3181
    %v3183 = vpop.f32.mrb[0].mxu0
    %v3184 = vadd.f32 %v2831, %v3183
    %v3185 = vpop.f32.mrb[0].mxu0
    %v3186 = vadd.f32 %v2833, %v3185
    %3187 = vmatprep.mubr.bf16.mxu0 %v1290
    %3188 = vmatmul.mubr.bf16.gmra.mrb[0].mxu0 %v1289
    %v3189 = vpop.f32.mrb[0].mxu0
    %v3190 = vadd.f32 %v2837, %v3189
    %v3191 = vpop.f32.mrb[0].mxu0
    %v3192 = vadd.f32 %v2839, %v3191
    %v3193 = vpop.f32.mrb[0].mxu0
    %v3194 = vadd.f32 %v2841, %v3193
    %v3195 = vpop.f32.mrb[0].mxu0
    %v3196 = vadd.f32 %v2843, %v3195
    %3197 = vmatprep.mubr.bf16.mxu0 %v1298
    %3198 = vmatmul.mubr.bf16.gmra.mrb[0].mxu0 %v1297
    %v3199 = vpop.f32.mrb[0].mxu0
    %v3200 = vadd.f32 %v2847, %v3199
    %v3201 = vpop.f32.mrb[0].mxu0
    %v3202 = vadd.f32 %v2849, %v3201
    %v3203 = vpop.f32.mrb[0].mxu0
    %v3204 = vadd.f32 %v2851, %v3203
    %v3205 = vpop.f32.mrb[0].mxu0
    %v3206 = vadd.f32 %v2853, %v3205
    %3207 = vmatprep.mubr.bf16.mxu0 %v1306
    %3208 = vmatmul.mubr.bf16.gmra.mrb[0].mxu0 %v1305
    %v3209 = vpop.f32.mrb[0].mxu0
    %v3210 = vadd.f32 %v2857, %v3209
    %v3211 = vpop.f32.mrb[0].mxu0
    %v3212 = vadd.f32 %v2859, %v3211
    %v3213 = vpop.f32.mrb[0].mxu0
    %v3214 = vadd.f32 %v2861, %v3213
    %v3215 = vpop.f32.mrb[0].mxu0
    %v3216 = vadd.f32 %v2863, %v3215
    %3217 = vmatprep.mubr.bf16.mxu0 %v1314
    %3218 = vmatmul.mubr.bf16.gmra.mrb[0].mxu0 %v1313
    %v3219 = vpop.f32.mrb[0].mxu0
    %v3220 = vadd.f32 %v2867, %v3219
    %v3221 = vpop.f32.mrb[0].mxu0
    %v3222 = vadd.f32 %v2869, %v3221
    %v3223 = vpop.f32.mrb[0].mxu0
    %v3224 = vadd.f32 %v2871, %v3223
    %v3225 = vpop.f32.mrb[0].mxu0
    %v3226 = vadd.f32 %v2873, %v3225
    %3227 = vmatprep.mubr.bf16.mxu0 %v1322
    %3228 = vmatmul.mubr.bf16.gmra.mrb[0].mxu0 %v1321
    %v3229 = vpop.f32.mrb[0].mxu0
    %v3230 = vadd.f32 %v2877, %v3229
    %v3231 = vpop.f32.mrb[0].mxu0
    %v3232 = vadd.f32 %v2879, %v3231
    %v3233 = vpop.f32.mrb[0].mxu0
    %v3234 = vadd.f32 %v2881, %v3233
    %v3235 = vpop.f32.mrb[0].mxu0
    %v3236 = vadd.f32 %v2883, %v3235
    %3237 = vmatprep.mubr.bf16.mxu0 %v1330
    %3238 = vmatmul.mubr.bf16.gmra.mrb[0].mxu0 %v1329
    %v3239 = vpop.f32.mrb[0].mxu0
    %v3240 = vadd.f32 %v2887, %v3239
    %v3241 = vpop.f32.mrb[0].mxu0
    %v3242 = vadd.f32 %v2889, %v3241
    %v3243 = vpop.f32.mrb[0].mxu0
    %v3244 = vadd.f32 %v2891, %v3243
    %v3245 = vpop.f32.mrb[0].mxu0
    %v3246 = vadd.f32 %v2893, %v3245
    %3247 = vmatprep.mubr.bf16.mxu0 %v1338
    %3248 = vmatmul.mubr.bf16.gmra.mrb[0].mxu0 %v1337
    %v3249 = vpop.f32.mrb[0].mxu0
    %v3250 = vadd.f32 %v2897, %v3249
    %v3251 = vpop.f32.mrb[0].mxu0
    %v3252 = vadd.f32 %v2899, %v3251
    %v3253 = vpop.f32.mrb[0].mxu0
    %v3254 = vadd.f32 %v2901, %v3253
    %v3255 = vpop.f32.mrb[0].mxu0
    %v3256 = vadd.f32 %v2903, %v3255
    %3257 = vmatprep.mubr.bf16.mxu0 %v1346
    %3258 = vmatmul.mubr.bf16.gmra.mrb[0].mxu0 %v1345
    %v3259 = vpop.f32.mrb[0].mxu0
    %v3260 = vadd.f32 %v2907, %v3259
    %v3261 = vpop.f32.mrb[0].mxu0
    %v3262 = vadd.f32 %v2909, %v3261
    %v3263 = vpop.f32.mrb[0].mxu0
    %v3264 = vadd.f32 %v2911, %v3263
    %v3265 = vpop.f32.mrb[0].mxu0
    %v3266 = vadd.f32 %v2913, %v3265
    %3267 = vmatprep.mubr.bf16.mxu0 %v1354
    %3268 = vmatmul.mubr.bf16.gmra.mrb[0].mxu0 %v1353
    %v3269 = vpop.f32.mrb[0].mxu0
    %v3270 = vadd.f32 %v2917, %v3269
    %v3271 = vpop.f32.mrb[0].mxu0
    %v3272 = vadd.f32 %v2919, %v3271
    %v3273 = vpop.f32.mrb[0].mxu0
    %v3274 = vadd.f32 %v2921, %v3273
    %v3275 = vpop.f32.mrb[0].mxu0
    %v3276 = vadd.f32 %v2923, %v3275
    %3277 = vmatprep.mubr.bf16.mxu0 %v1362
    %3278 = vmatmul.mubr.bf16.gmra.mrb[0].mxu0 %v1361
    %v3279 = vpop.f32.mrb[0].mxu0
    %v3280 = vadd.f32 %v2927, %v3279
    %v3281 = vpop.f32.mrb[0].mxu0
    %v3282 = vadd.f32 %v2929, %v3281
    %v3283 = vpop.f32.mrb[0].mxu0
    %v3284 = vadd.f32 %v2931, %v3283
    %v3285 = vpop.f32.mrb[0].mxu0
    %v3286 = vadd.f32 %v2933, %v3285
    %3287 = vmatprep.mubr.bf16.mxu0 %v1370
    %3288 = vmatmul.mubr.bf16.gmra.mrb[0].mxu0 %v1369
    %v3289 = vpop.f32.mrb[0].mxu0
    %v3290 = vadd.f32 %v2937, %v3289
    %v3291 = vpop.f32.mrb[0].mxu0
    %v3292 = vadd.f32 %v2939, %v3291
    %v3293 = vpop.f32.mrb[0].mxu0
    %v3294 = vadd.f32 %v2941, %v3293
    %v3295 = vpop.f32.mrb[0].mxu0
    %v3296 = vadd.f32 %v2943, %v3295
    %3297 = vmatprep.mubr.bf16.mxu0 %v1378
    %3298 = vmatmul.mubr.bf16.gmra.mrb[0].mxu0 %v1377
    %v3299 = vpop.f32.mrb[0].mxu0
    %v3300 = vadd.f32 %v2947, %v3299
    %v3301 = vpop.f32.mrb[0].mxu0
    %v3302 = vadd.f32 %v2949, %v3301
    %v3303 = vpop.f32.mrb[0].mxu0
    %v3304 = vadd.f32 %v2951, %v3303
    %v3305 = vpop.f32.mrb[0].mxu0
    %v3306 = vadd.f32 %v2953, %v3305
    %3307 = vmatprep.mubr.bf16.mxu0 %v1386
    %3308 = vmatmul.mubr.bf16.gmra.mrb[0].mxu0 %v1385
    %v3309 = vpop.f32.mrb[0].mxu0
    %v3310 = vadd.f32 %v2957, %v3309
    %v3311 = vpop.f32.mrb[0].mxu0
    %v3312 = vadd.f32 %v2959, %v3311
    %v3313 = vpop.f32.mrb[0].mxu0
    %v3314 = vadd.f32 %v2961, %v3313
    %v3315 = vpop.f32.mrb[0].mxu0
    %v3316 = vadd.f32 %v2963, %v3315
    %3317 = vmatprep.mubr.bf16.mxu0 %v1394
    %3318 = vmatmul.mubr.bf16.gmra.mrb[0].mxu0 %v1393
    %v3319 = vpop.f32.mrb[0].mxu0
    %v3320 = vadd.f32 %v2967, %v3319
    %v3321 = vpop.f32.mrb[0].mxu0
    %v3322 = vadd.f32 %v2969, %v3321
    %v3323 = vpop.f32.mrb[0].mxu0
    %v3324 = vadd.f32 %v2971, %v3323
    %v3325 = vpop.f32.mrb[0].mxu0
    %v3326 = vadd.f32 %v2973, %v3325
    %3327 = vmatprep.mubr.bf16.mxu0 %v1402
    %3328 = vmatmul.mubr.bf16.gmra.mrb[0].mxu0 %v1401
    %v3329 = vpop.f32.mrb[0].mxu0
    %v3330 = vadd.f32 %v2977, %v3329
    %v3331 = vpop.f32.mrb[0].mxu0
    %v3332 = vadd.f32 %v2979, %v3331
    %v3333 = vpop.f32.mrb[0].mxu0
    %v3334 = vadd.f32 %v2981, %v3333
    %v3335 = vpop.f32.mrb[0].mxu0
    %v3336 = vadd.f32 %v2983, %v3335
    %3337 = vmatprep.mubr.bf16.mxu0 %v1410
    %3338 = vmatmul.mubr.bf16.gmra.mrb[0].mxu0 %v1409
    %v3339 = vpop.f32.mrb[0].mxu0
    %v3340 = vadd.f32 %v2987, %v3339
    %v3341 = vpop.f32.mrb[0].mxu0
    %v3342 = vadd.f32 %v2989, %v3341
    %v3343 = vpop.f32.mrb[0].mxu0
    %v3344 = vadd.f32 %v2991, %v3343
    %v3345 = vpop.f32.mrb[0].mxu0
    %v3346 = vadd.f32 %v2993, %v3345
    %3347 = vmatprep.mubr.bf16.mxu0 %v1418
    %3348 = vmatmul.mubr.bf16.gmra.mrb[0].mxu0 %v1417
    %v3349 = vpop.f32.mrb[0].mxu0
    %v3350 = vadd.f32 %v2997, %v3349
    %v3351 = vpop.f32.mrb[0].mxu0
    %v3352 = vadd.f32 %v2999, %v3351
    %v3353 = vpop.f32.mrb[0].mxu0
    %v3354 = vadd.f32 %v3001, %v3353
    %v3355 = vpop.f32.mrb[0].mxu0
    %v3356 = vadd.f32 %v3003, %v3355
    %3357 = vmatprep.mubr.bf16.mxu0 %v1426
    %3358 = vmatmul.mubr.bf16.gmra.mrb[0].mxu0 %v1425
    %v3359 = vpop.f32.mrb[0].mxu0
    %v3360 = vadd.f32 %v3007, %v3359
    %v3361 = vpop.f32.mrb[0].mxu0
    %v3362 = vadd.f32 %v3009, %v3361
    %v3363 = vpop.f32.mrb[0].mxu0
    %v3364 = vadd.f32 %v3011, %v3363
    %v3365 = vpop.f32.mrb[0].mxu0
    %v3366 = vadd.f32 %v3013, %v3365
    %3367 = vmatprep.mubr.bf16.mxu0 %v1434
    %3368 = vmatmul.mubr.bf16.gmra.mrb[0].mxu0 %v1433
    %v3369 = vpop.f32.mrb[0].mxu0
    %v3370 = vadd.f32 %v3017, %v3369
    %v3371 = vpop.f32.mrb[0].mxu0
    %v3372 = vadd.f32 %v3019, %v3371
    %v3373 = vpop.f32.mrb[0].mxu0
    %v3374 = vadd.f32 %v3021, %v3373
    %v3375 = vpop.f32.mrb[0].mxu0
    %v3376 = vadd.f32 %v3023, %v3375
    %3377 = vmatprep.mubr.bf16.mxu0 %v1442
    %3378 = vmatmul.mubr.bf16.gmra.mrb[0].mxu0 %v1441
    %v3379 = vpop.f32.mrb[0].mxu0
    %v3380 = vadd.f32 %v3027, %v3379
    %v3381 = vpop.f32.mrb[0].mxu0
    %v3382 = vadd.f32 %v3029, %v3381
    %v3383 = vpop.f32.mrb[0].mxu0
    %v3384 = vadd.f32 %v3031, %v3383
    %v3385 = vpop.f32.mrb[0].mxu0
    %v3386 = vadd.f32 %v3033, %v3385
    %3387 = vmatprep.mubr.bf16.mxu0 %v1450
    %3388 = vmatmul.mubr.bf16.gmra.mrb[0].mxu0 %v1449
    %v3389 = vpop.f32.mrb[0].mxu0
    %v3390 = vadd.f32 %v3037, %v3389
    %v3391 = vpop.f32.mrb[0].mxu0
    %v3392 = vadd.f32 %v3039, %v3391
    %v3393 = vpop.f32.mrb[0].mxu0
    %v3394 = vadd.f32 %v3041, %v3393
    %v3395 = vpop.f32.mrb[0].mxu0
    %v3396 = vadd.f32 %v3043, %v3395
    %3397 = vmatprep.mubr.bf16.mxu0 %v1458
    %3398 = vmatmul.mubr.bf16.gmra.mrb[0].mxu0 %v1457
    %v3399 = vpop.f32.mrb[0].mxu0
    %v3400 = vadd.f32 %v3047, %v3399
    %v3401 = vpop.f32.mrb[0].mxu0
    %v3402 = vadd.f32 %v3049, %v3401
    %v3403 = vpop.f32.mrb[0].mxu0
    %v3404 = vadd.f32 %v3051, %v3403
    %v3405 = vpop.f32.mrb[0].mxu0
    %v3406 = vadd.f32 %v3053, %v3405
    %3407 = vmatprep.mubr.bf16.mxu0 %v1466
    %3408 = vmatmul.mubr.bf16.gmra.mrb[0].mxu0 %v1465
    %v3409 = vpop.f32.mrb[0].mxu0
    %v3410 = vadd.f32 %v3057, %v3409
    %v3411 = vpop.f32.mrb[0].mxu0
    %v3412 = vadd.f32 %v3059, %v3411
    %v3413 = vpop.f32.mrb[0].mxu0
    %v3414 = vadd.f32 %v3061, %v3413
    %v3415 = vpop.f32.mrb[0].mxu0
    %v3416 = vadd.f32 %v3063, %v3415
    %3417 = vmatprep.mubr.bf16.mxu0 %v1474
    %3418 = vmatmul.mubr.bf16.gmra.mrb[0].mxu0 %v1473
    %v3419 = vpop.f32.mrb[0].mxu0
    %v3420 = vadd.f32 %v3067, %v3419
    %v3421 = vpop.f32.mrb[0].mxu0
    %v3422 = vadd.f32 %v3069, %v3421
    %v3423 = vpop.f32.mrb[0].mxu0
    %v3424 = vadd.f32 %v3071, %v3423
    %v3425 = vpop.f32.mrb[0].mxu0
    %v3426 = vadd.f32 %v3073, %v3425
    %3427 = vmatprep.mubr.bf16.mxu0 %v1482
    %3428 = vmatmul.mubr.bf16.gmra.mrb[0].mxu0 %v1481
    %v3429 = vpop.f32.mrb[0].mxu0
    %v3430 = vadd.f32 %v3077, %v3429
    %v3431 = vpop.f32.mrb[0].mxu0
    %v3432 = vadd.f32 %v3079, %v3431
    %v3433 = vpop.f32.mrb[0].mxu0
    %v3434 = vadd.f32 %v3081, %v3433
    %v3435 = vpop.f32.mrb[0].mxu0
    %v3436 = vadd.f32 %v3083, %v3435
    %3437 = vmatprep.mubr.bf16.mxu0 %v1490
    %3438 = vmatmul.mubr.bf16.gmra.mrb[0].mxu0 %v1489
    %v3439 = vpop.f32.mrb[0].mxu0
    %v3440 = vadd.f32 %v3087, %v3439
    %v3441 = vpop.f32.mrb[0].mxu0
    %v3442 = vadd.f32 %v3089, %v3441
    %v3443 = vpop.f32.mrb[0].mxu0
    %v3444 = vadd.f32 %v3091, %v3443
    %v3445 = vpop.f32.mrb[0].mxu0
    %v3446 = vadd.f32 %v3093, %v3445
    %3447 = vdwg.mxu0
    %3448 = vmatprep.subr.bf16.mxu0 %v2230
    %3449 = vmatpush1.bf16.msra.mxu0 %v2229
    %3450 = vmatprep.subr.bf16.mxu0 %v2232
    %3451 = vmatpush1.bf16.msra.mxu0 %v2231
    %3452 = vmatprep.subr.bf16.mxu0 %v2234
    %3453 = vmatpush1.bf16.msra.mxu0 %v2233
    %3454 = vmatprep.subr.bf16.mxu0 %v2236
    %3455 = vmatpush1.bf16.msra.mxu0 %v2235
    %3456 = vmatprep.subr.bf16.mxu0 %v2238
    %3457 = vmatpush1.bf16.msra.mxu0 %v2237
    %3458 = vmatprep.subr.bf16.mxu0 %v2240
    %3459 = vmatpush1.bf16.msra.mxu0 %v2239
    %3460 = vmatprep.subr.bf16.mxu0 %v2242
    %3461 = vmatpush1.bf16.msra.mxu0 %v2241
    %3462 = vmatprep.subr.bf16.mxu0 %v2244
    %3463 = vmatpush1.bf16.msra.mxu0 %v2243
    %3464 = vmatprep.subr.bf16.mxu0 %v2246
    %3465 = vmatpush1.bf16.msra.mxu0 %v2245
    %3466 = vmatprep.subr.bf16.mxu0 %v2248
    %3467 = vmatpush1.bf16.msra.mxu0 %v2247
    %3468 = vmatprep.subr.bf16.mxu0 %v2250
    %3469 = vmatpush1.bf16.msra.mxu0 %v2249
    %3470 = vmatprep.subr.bf16.mxu0 %v2252
    %3471 = vmatpush1.bf16.msra.mxu0 %v2251
    %3472 = vmatprep.subr.bf16.mxu0 %v2254
    %3473 = vmatpush1.bf16.msra.mxu0 %v2253
    %3474 = vmatprep.subr.bf16.mxu0 %v2256
    %3475 = vmatpush1.bf16.msra.mxu0 %v2255
    %3476 = vmatprep.subr.bf16.mxu0 %v2258
    %3477 = vmatpush1.bf16.msra.mxu0 %v2257
    %3478 = vmatprep.subr.bf16.mxu0 %v2260
    %3479 = vmatpush1.bf16.msra.mxu0 %v2259
    %3480 = vmatprep.mubr.bf16.mxu0 %v1244
    %3481 = vmatmul.mubr.bf16.gmra.mrb[0].mxu0 %v1243
    %v3482 = vpop.f32.mrb[0].mxu0
    %v3483 = vadd.f32 %v3130, %v3482
    %v3484 = vpop.f32.mrb[0].mxu0
    %v3485 = vadd.f32 %v3132, %v3484
    %v3486 = vpop.f32.mrb[0].mxu0
    %v3487 = vadd.f32 %v3134, %v3486
    %v3488 = vpop.f32.mrb[0].mxu0
    %v3489 = vadd.f32 %v3136, %v3488
    %3490 = vmatprep.mubr.bf16.mxu0 %v1252
    %3491 = vmatmul.mubr.bf16.gmra.mrb[0].mxu0 %v1251
    %v3492 = vpop.f32.mrb[0].mxu0
    %v3493 = vadd.f32 %v3140, %v3492
    %v3494 = vpop.f32.mrb[0].mxu0
    %v3495 = vadd.f32 %v3142, %v3494
    %v3496 = vpop.f32.mrb[0].mxu0
    %v3497 = vadd.f32 %v3144, %v3496
    %v3498 = vpop.f32.mrb[0].mxu0
    %v3499 = vadd.f32 %v3146, %v3498
    %3500 = vmatprep.mubr.bf16.mxu0 %v1260
    %3501 = vmatmul.mubr.bf16.gmra.mrb[0].mxu0 %v1259
    %v3502 = vpop.f32.mrb[0].mxu0
    %v3503 = vadd.f32 %v3150, %v3502
    %v3504 = vpop.f32.mrb[0].mxu0
    %v3505 = vadd.f32 %v3152, %v3504
    %v3506 = vpop.f32.mrb[0].mxu0
    %v3507 = vadd.f32 %v3154, %v3506
    %v3508 = vpop.f32.mrb[0].mxu0
    %v3509 = vadd.f32 %v3156, %v3508
    %3510 = vmatprep.mubr.bf16.mxu0 %v1268
    %3511 = vmatmul.mubr.bf16.gmra.mrb[0].mxu0 %v1267
    %v3512 = vpop.f32.mrb[0].mxu0
    %v3513 = vadd.f32 %v3160, %v3512
    %v3514 = vpop.f32.mrb[0].mxu0
    %v3515 = vadd.f32 %v3162, %v3514
    %v3516 = vpop.f32.mrb[0].mxu0
    %v3517 = vadd.f32 %v3164, %v3516
    %v3518 = vpop.f32.mrb[0].mxu0
    %v3519 = vadd.f32 %v3166, %v3518
    %3520 = vmatprep.mubr.bf16.mxu0 %v1276
    %3521 = vmatmul.mubr.bf16.gmra.mrb[0].mxu0 %v1275
    %v3522 = vpop.f32.mrb[0].mxu0
    %v3523 = vadd.f32 %v3170, %v3522
    %v3524 = vpop.f32.mrb[0].mxu0
    %v3525 = vadd.f32 %v3172, %v3524
    %v3526 = vpop.f32.mrb[0].mxu0
    %v3527 = vadd.f32 %v3174, %v3526
    %v3528 = vpop.f32.mrb[0].mxu0
    %v3529 = vadd.f32 %v3176, %v3528
    %3530 = vmatprep.mubr.bf16.mxu0 %v1284
    %3531 = vmatmul.mubr.bf16.gmra.mrb[0].mxu0 %v1283
    %v3532 = vpop.f32.mrb[0].mxu0
    %v3533 = vadd.f32 %v3180, %v3532
    %v3534 = vpop.f32.mrb[0].mxu0
    %v3535 = vadd.f32 %v3182, %v3534
    %v3536 = vpop.f32.mrb[0].mxu0
    %v3537 = vadd.f32 %v3184, %v3536
    %v3538 = vpop.f32.mrb[0].mxu0
    %v3539 = vadd.f32 %v3186, %v3538
    %3540 = vmatprep.mubr.bf16.mxu0 %v1292
    %3541 = vmatmul.mubr.bf16.gmra.mrb[0].mxu0 %v1291
    %v3542 = vpop.f32.mrb[0].mxu0
    %v3543 = vadd.f32 %v3190, %v3542
    %v3544 = vpop.f32.mrb[0].mxu0
    %v3545 = vadd.f32 %v3192, %v3544
    %v3546 = vpop.f32.mrb[0].mxu0
    %v3547 = vadd.f32 %v3194, %v3546
    %v3548 = vpop.f32.mrb[0].mxu0
    %v3549 = vadd.f32 %v3196, %v3548
    %3550 = vmatprep.mubr.bf16.mxu0 %v1300
    %3551 = vmatmul.mubr.bf16.gmra.mrb[0].mxu0 %v1299
    %v3552 = vpop.f32.mrb[0].mxu0
    %v3553 = vadd.f32 %v3200, %v3552
    %v3554 = vpop.f32.mrb[0].mxu0
    %v3555 = vadd.f32 %v3202, %v3554
    %v3556 = vpop.f32.mrb[0].mxu0
    %v3557 = vadd.f32 %v3204, %v3556
    %v3558 = vpop.f32.mrb[0].mxu0
    %v3559 = vadd.f32 %v3206, %v3558
    %3560 = vmatprep.mubr.bf16.mxu0 %v1308
    %3561 = vmatmul.mubr.bf16.gmra.mrb[0].mxu0 %v1307
    %v3562 = vpop.f32.mrb[0].mxu0
    %v3563 = vadd.f32 %v3210, %v3562
    %v3564 = vpop.f32.mrb[0].mxu0
    %v3565 = vadd.f32 %v3212, %v3564
    %v3566 = vpop.f32.mrb[0].mxu0
    %v3567 = vadd.f32 %v3214, %v3566
    %v3568 = vpop.f32.mrb[0].mxu0
    %v3569 = vadd.f32 %v3216, %v3568
    %3570 = vmatprep.mubr.bf16.mxu0 %v1316
    %3571 = vmatmul.mubr.bf16.gmra.mrb[0].mxu0 %v1315
    %v3572 = vpop.f32.mrb[0].mxu0
    %v3573 = vadd.f32 %v3220, %v3572
    %v3574 = vpop.f32.mrb[0].mxu0
    %v3575 = vadd.f32 %v3222, %v3574
    %v3576 = vpop.f32.mrb[0].mxu0
    %v3577 = vadd.f32 %v3224, %v3576
    %v3578 = vpop.f32.mrb[0].mxu0
    %v3579 = vadd.f32 %v3226, %v3578
    %3580 = vmatprep.mubr.bf16.mxu0 %v1324
    %3581 = vmatmul.mubr.bf16.gmra.mrb[0].mxu0 %v1323
    %v3582 = vpop.f32.mrb[0].mxu0
    %v3583 = vadd.f32 %v3230, %v3582
    %v3584 = vpop.f32.mrb[0].mxu0
    %v3585 = vadd.f32 %v3232, %v3584
    %v3586 = vpop.f32.mrb[0].mxu0
    %v3587 = vadd.f32 %v3234, %v3586
    %v3588 = vpop.f32.mrb[0].mxu0
    %v3589 = vadd.f32 %v3236, %v3588
    %3590 = vmatprep.mubr.bf16.mxu0 %v1332
    %3591 = vmatmul.mubr.bf16.gmra.mrb[0].mxu0 %v1331
    %v3592 = vpop.f32.mrb[0].mxu0
    %v3593 = vadd.f32 %v3240, %v3592
    %v3594 = vpop.f32.mrb[0].mxu0
    %v3595 = vadd.f32 %v3242, %v3594
    %v3596 = vpop.f32.mrb[0].mxu0
    %v3597 = vadd.f32 %v3244, %v3596
    %v3598 = vpop.f32.mrb[0].mxu0
    %v3599 = vadd.f32 %v3246, %v3598
    %3600 = vmatprep.mubr.bf16.mxu0 %v1340
    %3601 = vmatmul.mubr.bf16.gmra.mrb[0].mxu0 %v1339
    %v3602 = vpop.f32.mrb[0].mxu0
    %v3603 = vadd.f32 %v3250, %v3602
    %v3604 = vpop.f32.mrb[0].mxu0
    %v3605 = vadd.f32 %v3252, %v3604
    %v3606 = vpop.f32.mrb[0].mxu0
    %v3607 = vadd.f32 %v3254, %v3606
    %v3608 = vpop.f32.mrb[0].mxu0
    %v3609 = vadd.f32 %v3256, %v3608
    %3610 = vmatprep.mubr.bf16.mxu0 %v1348
    %3611 = vmatmul.mubr.bf16.gmra.mrb[0].mxu0 %v1347
    %v3612 = vpop.f32.mrb[0].mxu0
    %v3613 = vadd.f32 %v3260, %v3612
    %v3614 = vpop.f32.mrb[0].mxu0
    %v3615 = vadd.f32 %v3262, %v3614
    %v3616 = vpop.f32.mrb[0].mxu0
    %v3617 = vadd.f32 %v3264, %v3616
    %v3618 = vpop.f32.mrb[0].mxu0
    %v3619 = vadd.f32 %v3266, %v3618
    %3620 = vmatprep.mubr.bf16.mxu0 %v1356
    %3621 = vmatmul.mubr.bf16.gmra.mrb[0].mxu0 %v1355
    %v3622 = vpop.f32.mrb[0].mxu0
    %v3623 = vadd.f32 %v3270, %v3622
    %v3624 = vpop.f32.mrb[0].mxu0
    %v3625 = vadd.f32 %v3272, %v3624
    %v3626 = vpop.f32.mrb[0].mxu0
    %v3627 = vadd.f32 %v3274, %v3626
    %v3628 = vpop.f32.mrb[0].mxu0
    %v3629 = vadd.f32 %v3276, %v3628
    %3630 = vmatprep.mubr.bf16.mxu0 %v1364
    %3631 = vmatmul.mubr.bf16.gmra.mrb[0].mxu0 %v1363
    %v3632 = vpop.f32.mrb[0].mxu0
    %v3633 = vadd.f32 %v3280, %v3632
    %v3634 = vpop.f32.mrb[0].mxu0
    %v3635 = vadd.f32 %v3282, %v3634
    %v3636 = vpop.f32.mrb[0].mxu0
    %v3637 = vadd.f32 %v3284, %v3636
    %v3638 = vpop.f32.mrb[0].mxu0
    %v3639 = vadd.f32 %v3286, %v3638
    %3640 = vmatprep.mubr.bf16.mxu0 %v1372
    %3641 = vmatmul.mubr.bf16.gmra.mrb[0].mxu0 %v1371
    %v3642 = vpop.f32.mrb[0].mxu0
    %v3643 = vadd.f32 %v3290, %v3642
    %v3644 = vpop.f32.mrb[0].mxu0
    %v3645 = vadd.f32 %v3292, %v3644
    %v3646 = vpop.f32.mrb[0].mxu0
    %v3647 = vadd.f32 %v3294, %v3646
    %v3648 = vpop.f32.mrb[0].mxu0
    %v3649 = vadd.f32 %v3296, %v3648
    %3650 = vmatprep.mubr.bf16.mxu0 %v1380
    %3651 = vmatmul.mubr.bf16.gmra.mrb[0].mxu0 %v1379
    %v3652 = vpop.f32.mrb[0].mxu0
    %v3653 = vadd.f32 %v3300, %v3652
    %v3654 = vpop.f32.mrb[0].mxu0
    %v3655 = vadd.f32 %v3302, %v3654
    %v3656 = vpop.f32.mrb[0].mxu0
    %v3657 = vadd.f32 %v3304, %v3656
    %v3658 = vpop.f32.mrb[0].mxu0
    %v3659 = vadd.f32 %v3306, %v3658
    %3660 = vmatprep.mubr.bf16.mxu0 %v1388
    %3661 = vmatmul.mubr.bf16.gmra.mrb[0].mxu0 %v1387
    %v3662 = vpop.f32.mrb[0].mxu0
    %v3663 = vadd.f32 %v3310, %v3662
    %v3664 = vpop.f32.mrb[0].mxu0
    %v3665 = vadd.f32 %v3312, %v3664
    %v3666 = vpop.f32.mrb[0].mxu0
    %v3667 = vadd.f32 %v3314, %v3666
    %v3668 = vpop.f32.mrb[0].mxu0
    %v3669 = vadd.f32 %v3316, %v3668
    %3670 = vmatprep.mubr.bf16.mxu0 %v1396
    %3671 = vmatmul.mubr.bf16.gmra.mrb[0].mxu0 %v1395
    %v3672 = vpop.f32.mrb[0].mxu0
    %v3673 = vadd.f32 %v3320, %v3672
    %v3674 = vpop.f32.mrb[0].mxu0
    %v3675 = vadd.f32 %v3322, %v3674
    %v3676 = vpop.f32.mrb[0].mxu0
    %v3677 = vadd.f32 %v3324, %v3676
    %v3678 = vpop.f32.mrb[0].mxu0
    %v3679 = vadd.f32 %v3326, %v3678
    %3680 = vmatprep.mubr.bf16.mxu0 %v1404
    %3681 = vmatmul.mubr.bf16.gmra.mrb[0].mxu0 %v1403
    %v3682 = vpop.f32.mrb[0].mxu0
    %v3683 = vadd.f32 %v3330, %v3682
    %v3684 = vpop.f32.mrb[0].mxu0
    %v3685 = vadd.f32 %v3332, %v3684
    %v3686 = vpop.f32.mrb[0].mxu0
    %v3687 = vadd.f32 %v3334, %v3686
    %v3688 = vpop.f32.mrb[0].mxu0
    %v3689 = vadd.f32 %v3336, %v3688
    %3690 = vmatprep.mubr.bf16.mxu0 %v1412
    %3691 = vmatmul.mubr.bf16.gmra.mrb[0].mxu0 %v1411
    %v3692 = vpop.f32.mrb[0].mxu0
    %v3693 = vadd.f32 %v3340, %v3692
    %v3694 = vpop.f32.mrb[0].mxu0
    %v3695 = vadd.f32 %v3342, %v3694
    %v3696 = vpop.f32.mrb[0].mxu0
    %v3697 = vadd.f32 %v3344, %v3696
    %v3698 = vpop.f32.mrb[0].mxu0
    %v3699 = vadd.f32 %v3346, %v3698
    %3700 = vmatprep.mubr.bf16.mxu0 %v1420
    %3701 = vmatmul.mubr.bf16.gmra.mrb[0].mxu0 %v1419
    %v3702 = vpop.f32.mrb[0].mxu0
    %v3703 = vadd.f32 %v3350, %v3702
    %v3704 = vpop.f32.mrb[0].mxu0
    %v3705 = vadd.f32 %v3352, %v3704
    %v3706 = vpop.f32.mrb[0].mxu0
    %v3707 = vadd.f32 %v3354, %v3706
    %v3708 = vpop.f32.mrb[0].mxu0
    %v3709 = vadd.f32 %v3356, %v3708
    %3710 = vmatprep.mubr.bf16.mxu0 %v1428
    %3711 = vmatmul.mubr.bf16.gmra.mrb[0].mxu0 %v1427
    %v3712 = vpop.f32.mrb[0].mxu0
    %v3713 = vadd.f32 %v3360, %v3712
    %v3714 = vpop.f32.mrb[0].mxu0
    %v3715 = vadd.f32 %v3362, %v3714
    %v3716 = vpop.f32.mrb[0].mxu0
    %v3717 = vadd.f32 %v3364, %v3716
    %v3718 = vpop.f32.mrb[0].mxu0
    %v3719 = vadd.f32 %v3366, %v3718
    %3720 = vmatprep.mubr.bf16.mxu0 %v1436
    %3721 = vmatmul.mubr.bf16.gmra.mrb[0].mxu0 %v1435
    %v3722 = vpop.f32.mrb[0].mxu0
    %v3723 = vadd.f32 %v3370, %v3722
    %v3724 = vpop.f32.mrb[0].mxu0
    %v3725 = vadd.f32 %v3372, %v3724
    %v3726 = vpop.f32.mrb[0].mxu0
    %v3727 = vadd.f32 %v3374, %v3726
    %v3728 = vpop.f32.mrb[0].mxu0
    %v3729 = vadd.f32 %v3376, %v3728
    %3730 = vmatprep.mubr.bf16.mxu0 %v1444
    %3731 = vmatmul.mubr.bf16.gmra.mrb[0].mxu0 %v1443
    %v3732 = vpop.f32.mrb[0].mxu0
    %v3733 = vadd.f32 %v3380, %v3732
    %v3734 = vpop.f32.mrb[0].mxu0
    %v3735 = vadd.f32 %v3382, %v3734
    %v3736 = vpop.f32.mrb[0].mxu0
    %v3737 = vadd.f32 %v3384, %v3736
    %v3738 = vpop.f32.mrb[0].mxu0
    %v3739 = vadd.f32 %v3386, %v3738
    %3740 = vmatprep.mubr.bf16.mxu0 %v1452
    %3741 = vmatmul.mubr.bf16.gmra.mrb[0].mxu0 %v1451
    %v3742 = vpop.f32.mrb[0].mxu0
    %v3743 = vadd.f32 %v3390, %v3742
    %v3744 = vpop.f32.mrb[0].mxu0
    %v3745 = vadd.f32 %v3392, %v3744
    %v3746 = vpop.f32.mrb[0].mxu0
    %v3747 = vadd.f32 %v3394, %v3746
    %v3748 = vpop.f32.mrb[0].mxu0
    %v3749 = vadd.f32 %v3396, %v3748
    %3750 = vmatprep.mubr.bf16.mxu0 %v1460
    %3751 = vmatmul.mubr.bf16.gmra.mrb[0].mxu0 %v1459
    %v3752 = vpop.f32.mrb[0].mxu0
    %v3753 = vadd.f32 %v3400, %v3752
    %v3754 = vpop.f32.mrb[0].mxu0
    %v3755 = vadd.f32 %v3402, %v3754
    %v3756 = vpop.f32.mrb[0].mxu0
    %v3757 = vadd.f32 %v3404, %v3756
    %v3758 = vpop.f32.mrb[0].mxu0
    %v3759 = vadd.f32 %v3406, %v3758
    %3760 = vmatprep.mubr.bf16.mxu0 %v1468
    %3761 = vmatmul.mubr.bf16.gmra.mrb[0].mxu0 %v1467
    %v3762 = vpop.f32.mrb[0].mxu0
    %v3763 = vadd.f32 %v3410, %v3762
    %v3764 = vpop.f32.mrb[0].mxu0
    %v3765 = vadd.f32 %v3412, %v3764
    %v3766 = vpop.f32.mrb[0].mxu0
    %v3767 = vadd.f32 %v3414, %v3766
    %v3768 = vpop.f32.mrb[0].mxu0
    %v3769 = vadd.f32 %v3416, %v3768
    %3770 = vmatprep.mubr.bf16.mxu0 %v1476
    %3771 = vmatmul.mubr.bf16.gmra.mrb[0].mxu0 %v1475
    %v3772 = vpop.f32.mrb[0].mxu0
    %v3773 = vadd.f32 %v3420, %v3772
    %v3774 = vpop.f32.mrb[0].mxu0
    %v3775 = vadd.f32 %v3422, %v3774
    %v3776 = vpop.f32.mrb[0].mxu0
    %v3777 = vadd.f32 %v3424, %v3776
    %v3778 = vpop.f32.mrb[0].mxu0
    %v3779 = vadd.f32 %v3426, %v3778
    %3780 = vmatprep.mubr.bf16.mxu0 %v1484
    %3781 = vmatmul.mubr.bf16.gmra.mrb[0].mxu0 %v1483
    %v3782 = vpop.f32.mrb[0].mxu0
    %v3783 = vadd.f32 %v3430, %v3782
    %v3784 = vpop.f32.mrb[0].mxu0
    %v3785 = vadd.f32 %v3432, %v3784
    %v3786 = vpop.f32.mrb[0].mxu0
    %v3787 = vadd.f32 %v3434, %v3786
    %v3788 = vpop.f32.mrb[0].mxu0
    %v3789 = vadd.f32 %v3436, %v3788
    %3790 = vmatprep.mubr.bf16.mxu0 %v1492
    %3791 = vmatmul.mubr.bf16.gmra.mrb[0].mxu0 %v1491
    %v3792 = vpop.f32.mrb[0].mxu0
    %v3793 = vadd.f32 %v3440, %v3792
    %v3794 = vpop.f32.mrb[0].mxu0
    %v3795 = vadd.f32 %v3442, %v3794
    %v3796 = vpop.f32.mrb[0].mxu0
    %v3797 = vadd.f32 %v3444, %v3796
    %v3798 = vpop.f32.mrb[0].mxu0
    %v3799 = vadd.f32 %v3446, %v3798
    %3800 = vdwg.mxu0
    %v3801 = vmax.f32 %v3483, %v3563
    %v3802 = vmax.f32 %v3485, %v3565
    %v3803 = vmax.f32 %v3487, %v3567
    %v3804 = vmax.f32 %v3489, %v3569
    %v3805 = vmax.f32 %v3493, %v3573
    %v3806 = vmax.f32 %v3495, %v3575
    %v3807 = vmax.f32 %v3497, %v3577
    %v3808 = vmax.f32 %v3499, %v3579
    %v3809 = vmax.f32 %v3503, %v3583
    %v3810 = vmax.f32 %v3505, %v3585
    %v3811 = vmax.f32 %v3507, %v3587
    %v3812 = vmax.f32 %v3509, %v3589
    %v3813 = vmax.f32 %v3513, %v3593
    %v3814 = vmax.f32 %v3515, %v3595
    %v3815 = vmax.f32 %v3517, %v3597
    %v3816 = vmax.f32 %v3519, %v3599
    %v3817 = vmax.f32 %v3523, %v3603
    %v3818 = vmax.f32 %v3525, %v3605
    %v3819 = vmax.f32 %v3527, %v3607
    %v3820 = vmax.f32 %v3529, %v3609
    %v3821 = vmax.f32 %v3533, %v3613
    %v3822 = vmax.f32 %v3535, %v3615
    %v3823 = vmax.f32 %v3537, %v3617
    %v3824 = vmax.f32 %v3539, %v3619
    %v3825 = vmax.f32 %v3543, %v3623
    %v3826 = vmax.f32 %v3545, %v3625
    %v3827 = vmax.f32 %v3547, %v3627
    %v3828 = vmax.f32 %v3549, %v3629
    %v3829 = vmax.f32 %v3553, %v3633
    %v3830 = vmax.f32 %v3555, %v3635
    %v3831 = vmax.f32 %v3557, %v3637
    %v3832 = vmax.f32 %v3559, %v3639
    %v3833 = vmax.f32 %v3643, %v3723
    %v3834 = vmax.f32 %v3645, %v3725
    %v3835 = vmax.f32 %v3647, %v3727
    %v3836 = vmax.f32 %v3649, %v3729
    %v3837 = vmax.f32 %v3653, %v3733
    %v3838 = vmax.f32 %v3655, %v3735
    %v3839 = vmax.f32 %v3657, %v3737
    %v3840 = vmax.f32 %v3659, %v3739
    %v3841 = vmax.f32 %v3663, %v3743
    %v3842 = vmax.f32 %v3665, %v3745
    %v3843 = vmax.f32 %v3667, %v3747
    %v3844 = vmax.f32 %v3669, %v3749
    %v3845 = vmax.f32 %v3673, %v3753
    %v3846 = vmax.f32 %v3675, %v3755
    %v3847 = vmax.f32 %v3677, %v3757
    %v3848 = vmax.f32 %v3679, %v3759
    %v3849 = vmax.f32 %v3683, %v3763
    %v3850 = vmax.f32 %v3685, %v3765
    %v3851 = vmax.f32 %v3687, %v3767
    %v3852 = vmax.f32 %v3689, %v3769
    %v3853 = vmax.f32 %v3693, %v3773
    %v3854 = vmax.f32 %v3695, %v3775
    %v3855 = vmax.f32 %v3697, %v3777
    %v3856 = vmax.f32 %v3699, %v3779
    %v3857 = vmax.f32 %v3703, %v3783
    %v3858 = vmax.f32 %v3705, %v3785
    %v3859 = vmax.f32 %v3707, %v3787
    %v3860 = vmax.f32 %v3709, %v3789
    %v3861 = vmax.f32 %v3713, %v3793
    %v3862 = vmax.f32 %v3715, %v3795
    %v3863 = vmax.f32 %v3717, %v3797
    %v3864 = vmax.f32 %v3719, %v3799
    %v3865 = vmax.f32 %v3801, %v3833
    %v3866 = vmax.f32 %v3802, %v3834
    %v3867 = vmax.f32 %v3803, %v3835
    %v3868 = vmax.f32 %v3804, %v3836
    %v3869 = vmax.f32 %v3805, %v3837
    %v3870 = vmax.f32 %v3806, %v3838
    %v3871 = vmax.f32 %v3807, %v3839
    %v3872 = vmax.f32 %v3808, %v3840
    %v3873 = vmax.f32 %v3809, %v3841
    %v3874 = vmax.f32 %v3810, %v3842
    %v3875 = vmax.f32 %v3811, %v3843
    %v3876 = vmax.f32 %v3812, %v3844
    %v3877 = vmax.f32 %v3813, %v3845
    %v3878 = vmax.f32 %v3814, %v3846
    %v3879 = vmax.f32 %v3815, %v3847
    %v3880 = vmax.f32 %v3816, %v3848
    %v3881 = vmax.f32 %v3817, %v3849
    %v3882 = vmax.f32 %v3818, %v3850
    %v3883 = vmax.f32 %v3819, %v3851
    %v3884 = vmax.f32 %v3820, %v3852
    %v3885 = vmax.f32 %v3821, %v3853
    %v3886 = vmax.f32 %v3822, %v3854
    %v3887 = vmax.f32 %v3823, %v3855
    %v3888 = vmax.f32 %v3824, %v3856
    %v3889 = vmax.f32 %v3825, %v3857
    %v3890 = vmax.f32 %v3826, %v3858
    %v3891 = vmax.f32 %v3827, %v3859
    %v3892 = vmax.f32 %v3828, %v3860
    %v3893 = vmax.f32 %v3829, %v3861
    %v3894 = vmax.f32 %v3830, %v3862
    %v3895 = vmax.f32 %v3831, %v3863
    %v3896 = vmax.f32 %v3832, %v3864
    %v3897 = vmax.f32 %v3865, %v3866
    %v3898 = vmax.f32 %v3867, %v3868
    %v3899 = vmax.f32 %v3869, %v3870
    %v3900 = vmax.f32 %v3871, %v3872
    %v3901 = vmax.f32 %v3873, %v3874
    %v3902 = vmax.f32 %v3875, %v3876
    %v3903 = vmax.f32 %v3877, %v3878
    %v3904 = vmax.f32 %v3879, %v3880
    %v3905 = vmax.f32 %v3881, %v3882
    %v3906 = vmax.f32 %v3883, %v3884
    %v3907 = vmax.f32 %v3885, %v3886
    %v3908 = vmax.f32 %v3887, %v3888
    %v3909 = vmax.f32 %v3889, %v3890
    %v3910 = vmax.f32 %v3891, %v3892
    %v3911 = vmax.f32 %v3893, %v3894
    %v3912 = vmax.f32 %v3895, %v3896
    %3929 = vrot.lane.b32.xlu0 %v3897, 64
    %v3930 = vpop.permute.xlu0 %3929
    %3931 = vrot.lane.b32.xlu0 %v3898, 64
    %v3932 = vpop.permute.xlu0 %3931
    %3933 = vrot.lane.b32.xlu0 %v3899, 64
    %v3934 = vpop.permute.xlu0 %3933
    %3935 = vrot.lane.b32.xlu0 %v3900, 64
    %v3936 = vpop.permute.xlu0 %3935
    %3937 = vrot.lane.b32.xlu0 %v3901, 64
    %v3938 = vpop.permute.xlu0 %3937
    %3939 = vrot.lane.b32.xlu0 %v3902, 64
    %v3940 = vpop.permute.xlu0 %3939
    %3941 = vrot.lane.b32.xlu0 %v3903, 64
    %v3942 = vpop.permute.xlu0 %3941
    %3943 = vrot.lane.b32.xlu0 %v3904, 64
    %v3944 = vpop.permute.xlu0 %3943
    %3945 = vrot.lane.b32.xlu0 %v3905, 64
    %v3946 = vpop.permute.xlu0 %3945
    %3947 = vrot.lane.b32.xlu0 %v3906, 64
    %v3948 = vpop.permute.xlu0 %3947
    %3949 = vrot.lane.b32.xlu0 %v3907, 64
    %v3950 = vpop.permute.xlu0 %3949
    %3951 = vrot.lane.b32.xlu0 %v3908, 64
    %v3952 = vpop.permute.xlu0 %3951
    %3953 = vrot.lane.b32.xlu0 %v3909, 64
    %v3954 = vpop.permute.xlu0 %3953
    %3955 = vrot.lane.b32.xlu0 %v3910, 64
    %v3956 = vpop.permute.xlu0 %3955
    %3957 = vrot.lane.b32.xlu0 %v3911, 64
    %v3958 = vpop.permute.xlu0 %3957
    %3959 = vrot.lane.b32.xlu0 %v3912, 64
    %v3960 = vpop.permute.xlu0 %3959
    %v3977 = vmax.f32 %v3897, %v3930
    %v3978 = vmax.f32 %v3898, %v3932
    %v3979 = vmax.f32 %v3899, %v3934
    %v3980 = vmax.f32 %v3900, %v3936
    %v3981 = vmax.f32 %v3901, %v3938
    %v3982 = vmax.f32 %v3902, %v3940
    %v3983 = vmax.f32 %v3903, %v3942
    %v3984 = vmax.f32 %v3904, %v3944
    %v3985 = vmax.f32 %v3905, %v3946
    %v3986 = vmax.f32 %v3906, %v3948
    %v3987 = vmax.f32 %v3907, %v3950
    %v3988 = vmax.f32 %v3908, %v3952
    %v3989 = vmax.f32 %v3909, %v3954
    %v3990 = vmax.f32 %v3910, %v3956
    %v3991 = vmax.f32 %v3911, %v3958
    %v3992 = vmax.f32 %v3912, %v3960
    %v3993 = vld [vmem:[%s2] sm:$0x1]
    %v3995 = vlaneseq
    %v3996 = vshrl.u32 %v3995, 7
    %v3997 = vsub.s32 0, %v3996
    %v3998 = vrot.slane %v3993, %v3997
    %v4000 = vadd.f32 %v3977, %v3998
    %v4001 = vadd.f32 %v3978, %v3998
    %v4002 = vadd.f32 %v3979, %v3998
    %v4003 = vadd.f32 %v3980, %v3998
    %v4004 = vadd.f32 %v3981, %v3998
    %v4005 = vadd.f32 %v3982, %v3998
    %v4006 = vadd.f32 %v3983, %v3998
    %v4007 = vadd.f32 %v3984, %v3998
    %v4008 = vadd.f32 %v3985, %v3998
    %v4009 = vadd.f32 %v3986, %v3998
    %v4010 = vadd.f32 %v3987, %v3998
    %v4011 = vadd.f32 %v3988, %v3998
    %v4012 = vadd.f32 %v3989, %v3998
    %v4013 = vadd.f32 %v3990, %v3998
    %v4014 = vadd.f32 %v3991, %v3998
    %v4015 = vadd.f32 %v3992, %v3998
    %v4016 = vmax.f32 %v4000, 0.0
    %v4017 = vmax.f32 %v4001, 0.0
    %v4018 = vmax.f32 %v4002, 0.0
    %v4019 = vmax.f32 %v4003, 0.0
    %v4020 = vmax.f32 %v4004, 0.0
    %v4021 = vmax.f32 %v4005, 0.0
    %v4022 = vmax.f32 %v4006, 0.0
    %v4023 = vmax.f32 %v4007, 0.0
    %v4024 = vmax.f32 %v4008, 0.0
    %v4025 = vmax.f32 %v4009, 0.0
    %v4026 = vmax.f32 %v4010, 0.0
    %v4027 = vmax.f32 %v4011, 0.0
    %v4028 = vmax.f32 %v4012, 0.0
    %v4029 = vmax.f32 %v4013, 0.0
    %v4030 = vmax.f32 %v4014, 0.0
    %v4031 = vmax.f32 %v4015, 0.0
    %v4032 = vld [vmem:[#allocation7] sm:$0xff]
    %v4033 = vld [vmem:[#allocation7 + $0x8] sm:$0xff]
    %v4034 = vld [vmem:[#allocation7 + $0x10] sm:$0xff]
    %v4035 = vld [vmem:[#allocation7 + $0x18] sm:$0xff]
    %v4036 = vld [vmem:[#allocation7 + $0x20] sm:$0xff]
    %v4037 = vld [vmem:[#allocation7 + $0x28] sm:$0xff]
    %v4038 = vld [vmem:[#allocation7 + $0x30] sm:$0xff]
    %v4039 = vld [vmem:[#allocation7 + $0x38] sm:$0xff]
    %s4040 = scalar_lea.vmem [#allocation7], 64
    %v4041 = vld [vmem:[%s4040] sm:$0xff]
    %v4042 = vld [vmem:[%s4040 + $0x8] sm:$0xff]
    %v4043 = vld [vmem:[%s4040 + $0x10] sm:$0xff]
    %v4044 = vld [vmem:[%s4040 + $0x18] sm:$0xff]
    %v4045 = vld [vmem:[%s4040 + $0x20] sm:$0xff]
    %v4046 = vld [vmem:[%s4040 + $0x28] sm:$0xff]
    %v4047 = vld [vmem:[%s4040 + $0x30] sm:$0xff]
    %v4048 = vld [vmem:[%s4040 + $0x38] sm:$0xff]
    %s4049 = scalar_lea.vmem [#allocation7], 128
    %v4050 = vld [vmem:[%s4049] sm:$0xff]
    %v4051 = vld [vmem:[%s4049 + $0x8] sm:$0xff]
    %v4052 = vld [vmem:[%s4049 + $0x10] sm:$0xff]
    %v4053 = vld [vmem:[%s4049 + $0x18] sm:$0xff]
    %v4054 = vld [vmem:[%s4049 + $0x20] sm:$0xff]
    %v4055 = vld [vmem:[%s4049 + $0x28] sm:$0xff]
    %v4056 = vld [vmem:[%s4049 + $0x30] sm:$0xff]
    %v4057 = vld [vmem:[%s4049 + $0x38] sm:$0xff]
    %s4058 = scalar_lea.vmem [#allocation7], 192
    %v4059 = vld [vmem:[%s4058] sm:$0xff]
    %v4060 = vld [vmem:[%s4058 + $0x8] sm:$0xff]
    %v4061 = vld [vmem:[%s4058 + $0x10] sm:$0xff]
    %v4062 = vld [vmem:[%s4058 + $0x18] sm:$0xff]
    %v4063 = vld [vmem:[%s4058 + $0x20] sm:$0xff]
    %v4064 = vld [vmem:[%s4058 + $0x28] sm:$0xff]
    %v4065 = vld [vmem:[%s4058 + $0x30] sm:$0xff]
    %v4066 = vld [vmem:[%s4058 + $0x38] sm:$0xff]
    %s4067 = scalar_lea.vmem [#allocation7], 256
    %v4068 = vld [vmem:[%s4067] sm:$0xff]
    %v4069 = vld [vmem:[%s4067 + $0x8] sm:$0xff]
    %v4070 = vld [vmem:[%s4067 + $0x10] sm:$0xff]
    %v4071 = vld [vmem:[%s4067 + $0x18] sm:$0xff]
    %v4072 = vld [vmem:[%s4067 + $0x20] sm:$0xff]
    %v4073 = vld [vmem:[%s4067 + $0x28] sm:$0xff]
    %v4074 = vld [vmem:[%s4067 + $0x30] sm:$0xff]
    %v4075 = vld [vmem:[%s4067 + $0x38] sm:$0xff]
    %vm4076 = vcmask 523264
    %v4078 = vsel %vm4076, %v4020, 0
    %4080 = vmatprep.subr.mxu0 0.0
    %4081 = vmatpush1.msra.mxu0 %v4068
    %4082 = vmatprep.subr.mxu0 0.0
    %4083 = vmatpush1.msra.mxu0 %v4069
    %4084 = vmatprep.subr.mxu0 0.0
    %4085 = vmatpush1.msra.mxu0 %v4070
    %4086 = vmatprep.subr.mxu0 0.0
    %4087 = vmatpush1.msra.mxu0 %v4071
    %4088 = vmatprep.subr.mxu0 0.0
    %4089 = vmatpush1.msra.mxu0 %v4072
    %4090 = vmatprep.subr.mxu0 0.0
    %4091 = vmatpush1.msra.mxu0 %v4073
    %4092 = vmatprep.subr.mxu0 0.0
    %4093 = vmatpush1.msra.mxu0 %v4074
    %4094 = vmatprep.subr.mxu0 0.0
    %4095 = vmatpush1.msra.mxu0 %v4075
    %4096 = vmatprep.subr.mxu0 0.0
    %4097 = vmatpush1.msra.mxu0 0.0
    %4098 = vmatprep.subr.mxu0 0.0
    %4099 = vmatpush1.msra.mxu0 0.0
    %4100 = vmatprep.subr.mxu0 0.0
    %4101 = vmatpush1.msra.mxu0 0.0
    %4102 = vmatprep.subr.mxu0 0.0
    %4103 = vmatpush1.msra.mxu0 0.0
    %4104 = vmatprep.subr.mxu0 0.0
    %4105 = vmatpush1.msra.mxu0 0.0
    %4106 = vmatprep.subr.mxu0 0.0
    %4107 = vmatpush1.msra.mxu0 0.0
    %4108 = vmatprep.subr.mxu0 0.0
    %4109 = vmatpush1.msra.mxu0 0.0
    %4110 = vmatprep.subr.mxu0 0.0
    %4111 = vmatpush1.msra.mxu0 0.0
    %4112 = vmatprep.subr.mxu0 0.0
    %4113 = vmatpush1.msra.mxu0 0.0
    %4114 = vmatprep.subr.mxu0 0.0
    %4115 = vmatpush1.msra.mxu0 0.0
    %4116 = vmatprep.subr.mxu0 0.0
    %4117 = vmatpush1.msra.mxu0 0.0
    %4118 = vmatprep.subr.mxu0 0.0
    %4119 = vmatpush1.msra.mxu0 0.0
    %4120 = vmatprep.subr.mxu0 0.0
    %4121 = vmatpush1.msra.mxu0 0.0
    %4122 = vmatprep.subr.mxu0 0.0
    %4123 = vmatpush1.msra.mxu0 0.0
    %4124 = vmatprep.subr.mxu0 0.0
    %4125 = vmatpush1.msra.mxu0 0.0
    %4126 = vmatprep.subr.mxu0 0.0
    %4127 = vmatpush1.msra.mxu0 0.0
    %4128 = vmatprep.subr.mxu0 0.0
    %4129 = vmatpush1.msra.mxu0 0.0
    %4130 = vmatprep.subr.mxu0 0.0
    %4131 = vmatpush1.msra.mxu0 0.0
    %4132 = vmatprep.subr.mxu0 0.0
    %4133 = vmatpush1.msra.mxu0 0.0
    %4134 = vmatprep.subr.mxu0 0.0
    %4135 = vmatpush1.msra.mxu0 0.0
    %4136 = vmatprep.subr.mxu0 0.0
    %4137 = vmatpush1.msra.mxu0 0.0
    %4138 = vmatprep.subr.mxu0 0.0
    %4139 = vmatpush1.msra.mxu0 0.0
    %4140 = vmatprep.subr.mxu0 0.0
    %4141 = vmatpush1.msra.mxu0 0.0
    %4142 = vmatprep.subr.mxu0 0.0
    %4143 = vmatpush1.msra.mxu0 0.0
    %4144 = vmatprep.mubr.f32.mxu0 0.0
    %4145 = vmatmul.mubr.f32.gmra.mrb[0].mxu0 %v4078
    %v4146 = vpop.f32.mrb[0].mxu0
    %v4147 = vadd.f32 0.0, %v4146
    %v4148 = vpop.f32.mrb[0].mxu0
    %4149 = vdwg.mxu0
    %v4151 = vsel %vm4076, %v4016, 0
    %4153 = vmatprep.subr.mxu0 0.0
    %4154 = vmatpush1.msra.mxu0 %v4032
    %4155 = vmatprep.subr.mxu0 0.0
    %4156 = vmatpush1.msra.mxu0 %v4033
    %4157 = vmatprep.subr.mxu0 0.0
    %4158 = vmatpush1.msra.mxu0 %v4034
    %4159 = vmatprep.subr.mxu0 0.0
    %4160 = vmatpush1.msra.mxu0 %v4035
    %4161 = vmatprep.subr.mxu0 0.0
    %4162 = vmatpush1.msra.mxu0 %v4036
    %4163 = vmatprep.subr.mxu0 0.0
    %4164 = vmatpush1.msra.mxu0 %v4037
    %4165 = vmatprep.subr.mxu0 0.0
    %4166 = vmatpush1.msra.mxu0 %v4038
    %4167 = vmatprep.subr.mxu0 0.0
    %4168 = vmatpush1.msra.mxu0 %v4039
    %4169 = vmatprep.subr.mxu0 0.0
    %4170 = vmatpush1.msra.mxu0 0.0
    %4171 = vmatprep.subr.mxu0 0.0
    %4172 = vmatpush1.msra.mxu0 0.0
    %4173 = vmatprep.subr.mxu0 0.0
    %4174 = vmatpush1.msra.mxu0 0.0
    %4175 = vmatprep.subr.mxu0 0.0
    %4176 = vmatpush1.msra.mxu0 0.0
    %4177 = vmatprep.subr.mxu0 0.0
    %4178 = vmatpush1.msra.mxu0 0.0
    %4179 = vmatprep.subr.mxu0 0.0
    %4180 = vmatpush1.msra.mxu0 0.0
    %4181 = vmatprep.subr.mxu0 0.0
    %4182 = vmatpush1.msra.mxu0 0.0
    %4183 = vmatprep.subr.mxu0 0.0
    %4184 = vmatpush1.msra.mxu0 0.0
    %4185 = vmatprep.subr.mxu0 0.0
    %4186 = vmatpush1.msra.mxu0 0.0
    %4187 = vmatprep.subr.mxu0 0.0
    %4188 = vmatpush1.msra.mxu0 0.0
    %4189 = vmatprep.subr.mxu0 0.0
    %4190 = vmatpush1.msra.mxu0 0.0
    %4191 = vmatprep.subr.mxu0 0.0
    %4192 = vmatpush1.msra.mxu0 0.0
    %4193 = vmatprep.subr.mxu0 0.0
    %4194 = vmatpush1.msra.mxu0 0.0
    %4195 = vmatprep.subr.mxu0 0.0
    %4196 = vmatpush1.msra.mxu0 0.0
    %4197 = vmatprep.subr.mxu0 0.0
    %4198 = vmatpush1.msra.mxu0 0.0
    %4199 = vmatprep.subr.mxu0 0.0
    %4200 = vmatpush1.msra.mxu0 0.0
    %4201 = vmatprep.subr.mxu0 0.0
    %4202 = vmatpush1.msra.mxu0 0.0
    %4203 = vmatprep.subr.mxu0 0.0
    %4204 = vmatpush1.msra.mxu0 0.0
    %4205 = vmatprep.subr.mxu0 0.0
    %4206 = vmatpush1.msra.mxu0 0.0
    %4207 = vmatprep.subr.mxu0 0.0
    %4208 = vmatpush1.msra.mxu0 0.0
    %4209 = vmatprep.subr.mxu0 0.0
    %4210 = vmatpush1.msra.mxu0 0.0
    %4211 = vmatprep.subr.mxu0 0.0
    %4212 = vmatpush1.msra.mxu0 0.0
    %4213 = vmatprep.subr.mxu0 0.0
    %4214 = vmatpush1.msra.mxu0 0.0
    %4215 = vmatprep.subr.mxu0 0.0
    %4216 = vmatpush1.msra.mxu0 0.0
    %4217 = vmatprep.mubr.f32.mxu0 0.0
    %4218 = vmatmul.mubr.f32.gmra.mrb[0].mxu0 %v4151
    %v4219 = vpop.f32.mrb[0].mxu0
    %v4220 = vadd.f32 %v4147, %v4219
    %v4221 = vpop.f32.mrb[0].mxu0
    %4222 = vdwg.mxu0
    %s4223 = scalar_lea.vmem [#allocation7], 320
    %v4224 = vld [vmem:[%s4223] sm:$0xff]
    %v4225 = vld [vmem:[%s4223 + $0x8] sm:$0xff]
    %v4226 = vld [vmem:[%s4223 + $0x10] sm:$0xff]
    %v4227 = vld [vmem:[%s4223 + $0x18] sm:$0xff]
    %v4228 = vld [vmem:[%s4223 + $0x20] sm:$0xff]
    %v4229 = vld [vmem:[%s4223 + $0x28] sm:$0xff]
    %v4230 = vld [vmem:[%s4223 + $0x30] sm:$0xff]
    %v4231 = vld [vmem:[%s4223 + $0x38] sm:$0xff]
    %v4233 = vsel %vm4076, %v4021, 0
    %4235 = vmatprep.subr.mxu0 0.0
    %4236 = vmatpush1.msra.mxu0 %v4224
    %4237 = vmatprep.subr.mxu0 0.0
    %4238 = vmatpush1.msra.mxu0 %v4225
    %4239 = vmatprep.subr.mxu0 0.0
    %4240 = vmatpush1.msra.mxu0 %v4226
    %4241 = vmatprep.subr.mxu0 0.0
    %4242 = vmatpush1.msra.mxu0 %v4227
    %4243 = vmatprep.subr.mxu0 0.0
    %4244 = vmatpush1.msra.mxu0 %v4228
    %4245 = vmatprep.subr.mxu0 0.0
    %4246 = vmatpush1.msra.mxu0 %v4229
    %4247 = vmatprep.subr.mxu0 0.0
    %4248 = vmatpush1.msra.mxu0 %v4230
    %4249 = vmatprep.subr.mxu0 0.0
    %4250 = vmatpush1.msra.mxu0 %v4231
    %4251 = vmatprep.subr.mxu0 0.0
    %4252 = vmatpush1.msra.mxu0 0.0
    %4253 = vmatprep.subr.mxu0 0.0
    %4254 = vmatpush1.msra.mxu0 0.0
    %4255 = vmatprep.subr.mxu0 0.0
    %4256 = vmatpush1.msra.mxu0 0.0
    %4257 = vmatprep.subr.mxu0 0.0
    %4258 = vmatpush1.msra.mxu0 0.0
    %4259 = vmatprep.subr.mxu0 0.0
    %4260 = vmatpush1.msra.mxu0 0.0
    %4261 = vmatprep.subr.mxu0 0.0
    %4262 = vmatpush1.msra.mxu0 0.0
    %4263 = vmatprep.subr.mxu0 0.0
    %4264 = vmatpush1.msra.mxu0 0.0
    %4265 = vmatprep.subr.mxu0 0.0
    %4266 = vmatpush1.msra.mxu0 0.0
    %4267 = vmatprep.subr.mxu0 0.0
    %4268 = vmatpush1.msra.mxu0 0.0
    %4269 = vmatprep.subr.mxu0 0.0
    %4270 = vmatpush1.msra.mxu0 0.0
    %4271 = vmatprep.subr.mxu0 0.0
    %4272 = vmatpush1.msra.mxu0 0.0
    %4273 = vmatprep.subr.mxu0 0.0
    %4274 = vmatpush1.msra.mxu0 0.0
    %4275 = vmatprep.subr.mxu0 0.0
    %4276 = vmatpush1.msra.mxu0 0.0
    %4277 = vmatprep.subr.mxu0 0.0
    %4278 = vmatpush1.msra.mxu0 0.0
    %4279 = vmatprep.subr.mxu0 0.0
    %4280 = vmatpush1.msra.mxu0 0.0
    %4281 = vmatprep.subr.mxu0 0.0
    %4282 = vmatpush1.msra.mxu0 0.0
    %4283 = vmatprep.subr.mxu0 0.0
    %4284 = vmatpush1.msra.mxu0 0.0
    %4285 = vmatprep.subr.mxu0 0.0
    %4286 = vmatpush1.msra.mxu0 0.0
    %4287 = vmatprep.subr.mxu0 0.0
    %4288 = vmatpush1.msra.mxu0 0.0
    %4289 = vmatprep.subr.mxu0 0.0
    %4290 = vmatpush1.msra.mxu0 0.0
    %4291 = vmatprep.subr.mxu0 0.0
    %4292 = vmatpush1.msra.mxu0 0.0
    %4293 = vmatprep.subr.mxu0 0.0
    %4294 = vmatpush1.msra.mxu0 0.0
    %4295 = vmatprep.subr.mxu0 0.0
    %4296 = vmatpush1.msra.mxu0 0.0
    %4297 = vmatprep.subr.mxu0 0.0
    %4298 = vmatpush1.msra.mxu0 0.0
    %4299 = vmatprep.mubr.f32.mxu0 0.0
    %4300 = vmatmul.mubr.f32.gmra.mrb[0].mxu0 %v4233
    %v4301 = vpop.f32.mrb[0].mxu0
    %v4302 = vadd.f32 0.0, %v4301
    %v4303 = vpop.f32.mrb[0].mxu0
    %4304 = vdwg.mxu0
    %v4306 = vsel %vm4076, %v4017, 0
    %4308 = vmatprep.subr.mxu0 0.0
    %4309 = vmatpush1.msra.mxu0 %v4041
    %4310 = vmatprep.subr.mxu0 0.0
    %4311 = vmatpush1.msra.mxu0 %v4042
    %4312 = vmatprep.subr.mxu0 0.0
    %4313 = vmatpush1.msra.mxu0 %v4043
    %4314 = vmatprep.subr.mxu0 0.0
    %4315 = vmatpush1.msra.mxu0 %v4044
    %4316 = vmatprep.subr.mxu0 0.0
    %4317 = vmatpush1.msra.mxu0 %v4045
    %4318 = vmatprep.subr.mxu0 0.0
    %4319 = vmatpush1.msra.mxu0 %v4046
    %4320 = vmatprep.subr.mxu0 0.0
    %4321 = vmatpush1.msra.mxu0 %v4047
    %4322 = vmatprep.subr.mxu0 0.0
    %4323 = vmatpush1.msra.mxu0 %v4048
    %4324 = vmatprep.subr.mxu0 0.0
    %4325 = vmatpush1.msra.mxu0 0.0
    %4326 = vmatprep.subr.mxu0 0.0
    %4327 = vmatpush1.msra.mxu0 0.0
    %4328 = vmatprep.subr.mxu0 0.0
    %4329 = vmatpush1.msra.mxu0 0.0
    %4330 = vmatprep.subr.mxu0 0.0
    %4331 = vmatpush1.msra.mxu0 0.0
    %4332 = vmatprep.subr.mxu0 0.0
    %4333 = vmatpush1.msra.mxu0 0.0
    %4334 = vmatprep.subr.mxu0 0.0
    %4335 = vmatpush1.msra.mxu0 0.0
    %4336 = vmatprep.subr.mxu0 0.0
    %4337 = vmatpush1.msra.mxu0 0.0
    %4338 = vmatprep.subr.mxu0 0.0
    %4339 = vmatpush1.msra.mxu0 0.0
    %4340 = vmatprep.subr.mxu0 0.0
    %4341 = vmatpush1.msra.mxu0 0.0
    %4342 = vmatprep.subr.mxu0 0.0
    %4343 = vmatpush1.msra.mxu0 0.0
    %4344 = vmatprep.subr.mxu0 0.0
    %4345 = vmatpush1.msra.mxu0 0.0
    %4346 = vmatprep.subr.mxu0 0.0
    %4347 = vmatpush1.msra.mxu0 0.0
    %4348 = vmatprep.subr.mxu0 0.0
    %4349 = vmatpush1.msra.mxu0 0.0
    %4350 = vmatprep.subr.mxu0 0.0
    %4351 = vmatpush1.msra.mxu0 0.0
    %4352 = vmatprep.subr.mxu0 0.0
    %4353 = vmatpush1.msra.mxu0 0.0
    %4354 = vmatprep.subr.mxu0 0.0
    %4355 = vmatpush1.msra.mxu0 0.0
    %4356 = vmatprep.subr.mxu0 0.0
    %4357 = vmatpush1.msra.mxu0 0.0
    %4358 = vmatprep.subr.mxu0 0.0
    %4359 = vmatpush1.msra.mxu0 0.0
    %4360 = vmatprep.subr.mxu0 0.0
    %4361 = vmatpush1.msra.mxu0 0.0
    %4362 = vmatprep.subr.mxu0 0.0
    %4363 = vmatpush1.msra.mxu0 0.0
    %4364 = vmatprep.subr.mxu0 0.0
    %4365 = vmatpush1.msra.mxu0 0.0
    %4366 = vmatprep.subr.mxu0 0.0
    %4367 = vmatpush1.msra.mxu0 0.0
    %4368 = vmatprep.subr.mxu0 0.0
    %4369 = vmatpush1.msra.mxu0 0.0
    %4370 = vmatprep.subr.mxu0 0.0
    %4371 = vmatpush1.msra.mxu0 0.0
    %4372 = vmatprep.mubr.f32.mxu0 0.0
    %4373 = vmatmul.mubr.f32.gmra.mrb[0].mxu0 %v4306
    %v4374 = vpop.f32.mrb[0].mxu0
    %v4375 = vadd.f32 %v4302, %v4374
    %v4376 = vpop.f32.mrb[0].mxu0
    %4377 = vdwg.mxu0
    %s4378 = scalar_lea.vmem [#allocation7], 384
    %v4379 = vld [vmem:[%s4378] sm:$0xff]
    %v4380 = vld [vmem:[%s4378 + $0x8] sm:$0xff]
    %v4381 = vld [vmem:[%s4378 + $0x10] sm:$0xff]
    %v4382 = vld [vmem:[%s4378 + $0x18] sm:$0xff]
    %v4383 = vld [vmem:[%s4378 + $0x20] sm:$0xff]
    %v4384 = vld [vmem:[%s4378 + $0x28] sm:$0xff]
    %v4385 = vld [vmem:[%s4378 + $0x30] sm:$0xff]
    %v4386 = vld [vmem:[%s4378 + $0x38] sm:$0xff]
    %v4388 = vsel %vm4076, %v4022, 0
    %4390 = vmatprep.subr.mxu0 0.0
    %4391 = vmatpush1.msra.mxu0 %v4379
    %4392 = vmatprep.subr.mxu0 0.0
    %4393 = vmatpush1.msra.mxu0 %v4380
    %4394 = vmatprep.subr.mxu0 0.0
    %4395 = vmatpush1.msra.mxu0 %v4381
    %4396 = vmatprep.subr.mxu0 0.0
    %4397 = vmatpush1.msra.mxu0 %v4382
    %4398 = vmatprep.subr.mxu0 0.0
    %4399 = vmatpush1.msra.mxu0 %v4383
    %4400 = vmatprep.subr.mxu0 0.0
    %4401 = vmatpush1.msra.mxu0 %v4384
    %4402 = vmatprep.subr.mxu0 0.0
    %4403 = vmatpush1.msra.mxu0 %v4385
    %4404 = vmatprep.subr.mxu0 0.0
    %4405 = vmatpush1.msra.mxu0 %v4386
    %4406 = vmatprep.subr.mxu0 0.0
    %4407 = vmatpush1.msra.mxu0 0.0
    %4408 = vmatprep.subr.mxu0 0.0
    %4409 = vmatpush1.msra.mxu0 0.0
    %4410 = vmatprep.subr.mxu0 0.0
    %4411 = vmatpush1.msra.mxu0 0.0
    %4412 = vmatprep.subr.mxu0 0.0
    %4413 = vmatpush1.msra.mxu0 0.0
    %4414 = vmatprep.subr.mxu0 0.0
    %4415 = vmatpush1.msra.mxu0 0.0
    %4416 = vmatprep.subr.mxu0 0.0
    %4417 = vmatpush1.msra.mxu0 0.0
    %4418 = vmatprep.subr.mxu0 0.0
    %4419 = vmatpush1.msra.mxu0 0.0
    %4420 = vmatprep.subr.mxu0 0.0
    %4421 = vmatpush1.msra.mxu0 0.0
    %4422 = vmatprep.subr.mxu0 0.0
    %4423 = vmatpush1.msra.mxu0 0.0
    %4424 = vmatprep.subr.mxu0 0.0
    %4425 = vmatpush1.msra.mxu0 0.0
    %4426 = vmatprep.subr.mxu0 0.0
    %4427 = vmatpush1.msra.mxu0 0.0
    %4428 = vmatprep.subr.mxu0 0.0
    %4429 = vmatpush1.msra.mxu0 0.0
    %4430 = vmatprep.subr.mxu0 0.0
    %4431 = vmatpush1.msra.mxu0 0.0
    %4432 = vmatprep.subr.mxu0 0.0
    %4433 = vmatpush1.msra.mxu0 0.0
    %4434 = vmatprep.subr.mxu0 0.0
    %4435 = vmatpush1.msra.mxu0 0.0
    %4436 = vmatprep.subr.mxu0 0.0
    %4437 = vmatpush1.msra.mxu0 0.0
    %4438 = vmatprep.subr.mxu0 0.0
    %4439 = vmatpush1.msra.mxu0 0.0
    %4440 = vmatprep.subr.mxu0 0.0
    %4441 = vmatpush1.msra.mxu0 0.0
    %4442 = vmatprep.subr.mxu0 0.0
    %4443 = vmatpush1.msra.mxu0 0.0
    %4444 = vmatprep.subr.mxu0 0.0
    %4445 = vmatpush1.msra.mxu0 0.0
    %4446 = vmatprep.subr.mxu0 0.0
    %4447 = vmatpush1.msra.mxu0 0.0
    %4448 = vmatprep.subr.mxu0 0.0
    %4449 = vmatpush1.msra.mxu0 0.0
    %4450 = vmatprep.subr.mxu0 0.0
    %4451 = vmatpush1.msra.mxu0 0.0
    %4452 = vmatprep.subr.mxu0 0.0
    %4453 = vmatpush1.msra.mxu0 0.0
    %4454 = vmatprep.mubr.f32.mxu0 0.0
    %4455 = vmatmul.mubr.f32.gmra.mrb[0].mxu0 %v4388
    %v4456 = vpop.f32.mrb[0].mxu0
    %v4457 = vadd.f32 0.0, %v4456
    %v4458 = vpop.f32.mrb[0].mxu0
    %4459 = vdwg.mxu0
    %v4461 = vsel %vm4076, %v4018, 0
    %4463 = vmatprep.subr.mxu0 0.0
    %4464 = vmatpush1.msra.mxu0 %v4050
    %4465 = vmatprep.subr.mxu0 0.0
    %4466 = vmatpush1.msra.mxu0 %v4051
    %4467 = vmatprep.subr.mxu0 0.0
    %4468 = vmatpush1.msra.mxu0 %v4052
    %4469 = vmatprep.subr.mxu0 0.0
    %4470 = vmatpush1.msra.mxu0 %v4053
    %4471 = vmatprep.subr.mxu0 0.0
    %4472 = vmatpush1.msra.mxu0 %v4054
    %4473 = vmatprep.subr.mxu0 0.0
    %4474 = vmatpush1.msra.mxu0 %v4055
    %4475 = vmatprep.subr.mxu0 0.0
    %4476 = vmatpush1.msra.mxu0 %v4056
    %4477 = vmatprep.subr.mxu0 0.0
    %4478 = vmatpush1.msra.mxu0 %v4057
    %4479 = vmatprep.subr.mxu0 0.0
    %4480 = vmatpush1.msra.mxu0 0.0
    %4481 = vmatprep.subr.mxu0 0.0
    %4482 = vmatpush1.msra.mxu0 0.0
    %4483 = vmatprep.subr.mxu0 0.0
    %4484 = vmatpush1.msra.mxu0 0.0
    %4485 = vmatprep.subr.mxu0 0.0
    %4486 = vmatpush1.msra.mxu0 0.0
    %4487 = vmatprep.subr.mxu0 0.0
    %4488 = vmatpush1.msra.mxu0 0.0
    %4489 = vmatprep.subr.mxu0 0.0
    %4490 = vmatpush1.msra.mxu0 0.0
    %4491 = vmatprep.subr.mxu0 0.0
    %4492 = vmatpush1.msra.mxu0 0.0
    %4493 = vmatprep.subr.mxu0 0.0
    %4494 = vmatpush1.msra.mxu0 0.0
    %4495 = vmatprep.subr.mxu0 0.0
    %4496 = vmatpush1.msra.mxu0 0.0
    %4497 = vmatprep.subr.mxu0 0.0
    %4498 = vmatpush1.msra.mxu0 0.0
    %4499 = vmatprep.subr.mxu0 0.0
    %4500 = vmatpush1.msra.mxu0 0.0
    %4501 = vmatprep.subr.mxu0 0.0
    %4502 = vmatpush1.msra.mxu0 0.0
    %4503 = vmatprep.subr.mxu0 0.0
    %4504 = vmatpush1.msra.mxu0 0.0
    %4505 = vmatprep.subr.mxu0 0.0
    %4506 = vmatpush1.msra.mxu0 0.0
    %4507 = vmatprep.subr.mxu0 0.0
    %4508 = vmatpush1.msra.mxu0 0.0
    %4509 = vmatprep.subr.mxu0 0.0
    %4510 = vmatpush1.msra.mxu0 0.0
    %4511 = vmatprep.subr.mxu0 0.0
    %4512 = vmatpush1.msra.mxu0 0.0
    %4513 = vmatprep.subr.mxu0 0.0
    %4514 = vmatpush1.msra.mxu0 0.0
    %4515 = vmatprep.subr.mxu0 0.0
    %4516 = vmatpush1.msra.mxu0 0.0
    %4517 = vmatprep.subr.mxu0 0.0
    %4518 = vmatpush1.msra.mxu0 0.0
    %4519 = vmatprep.subr.mxu0 0.0
    %4520 = vmatpush1.msra.mxu0 0.0
    %4521 = vmatprep.subr.mxu0 0.0
    %4522 = vmatpush1.msra.mxu0 0.0
    %4523 = vmatprep.subr.mxu0 0.0
    %4524 = vmatpush1.msra.mxu0 0.0
    %4525 = vmatprep.subr.mxu0 0.0
    %4526 = vmatpush1.msra.mxu0 0.0
    %4527 = vmatprep.mubr.f32.mxu0 0.0
    %4528 = vmatmul.mubr.f32.gmra.mrb[0].mxu0 %v4461
    %v4529 = vpop.f32.mrb[0].mxu0
    %v4530 = vadd.f32 %v4457, %v4529
    %v4531 = vpop.f32.mrb[0].mxu0
    %4532 = vdwg.mxu0
    %s4533 = scalar_lea.vmem [#allocation7], 448
    %v4534 = vld [vmem:[%s4533] sm:$0xff]
    %v4535 = vld [vmem:[%s4533 + $0x8] sm:$0xff]
    %v4536 = vld [vmem:[%s4533 + $0x10] sm:$0xff]
    %v4537 = vld [vmem:[%s4533 + $0x18] sm:$0xff]
    %v4538 = vld [vmem:[%s4533 + $0x20] sm:$0xff]
    %v4539 = vld [vmem:[%s4533 + $0x28] sm:$0xff]
    %v4540 = vld [vmem:[%s4533 + $0x30] sm:$0xff]
    %v4541 = vld [vmem:[%s4533 + $0x38] sm:$0xff]
    %v4543 = vsel %vm4076, %v4023, 0
    %4545 = vmatprep.subr.mxu0 0.0
    %4546 = vmatpush1.msra.mxu0 %v4534
    %4547 = vmatprep.subr.mxu0 0.0
    %4548 = vmatpush1.msra.mxu0 %v4535
    %4549 = vmatprep.subr.mxu0 0.0
    %4550 = vmatpush1.msra.mxu0 %v4536
    %4551 = vmatprep.subr.mxu0 0.0
    %4552 = vmatpush1.msra.mxu0 %v4537
    %4553 = vmatprep.subr.mxu0 0.0
    %4554 = vmatpush1.msra.mxu0 %v4538
    %4555 = vmatprep.subr.mxu0 0.0
    %4556 = vmatpush1.msra.mxu0 %v4539
    %4557 = vmatprep.subr.mxu0 0.0
    %4558 = vmatpush1.msra.mxu0 %v4540
    %4559 = vmatprep.subr.mxu0 0.0
    %4560 = vmatpush1.msra.mxu0 %v4541
    %4561 = vmatprep.subr.mxu0 0.0
    %4562 = vmatpush1.msra.mxu0 0.0
    %4563 = vmatprep.subr.mxu0 0.0
    %4564 = vmatpush1.msra.mxu0 0.0
    %4565 = vmatprep.subr.mxu0 0.0
    %4566 = vmatpush1.msra.mxu0 0.0
    %4567 = vmatprep.subr.mxu0 0.0
    %4568 = vmatpush1.msra.mxu0 0.0
    %4569 = vmatprep.subr.mxu0 0.0
    %4570 = vmatpush1.msra.mxu0 0.0
    %4571 = vmatprep.subr.mxu0 0.0
    %4572 = vmatpush1.msra.mxu0 0.0
    %4573 = vmatprep.subr.mxu0 0.0
    %4574 = vmatpush1.msra.mxu0 0.0
    %4575 = vmatprep.subr.mxu0 0.0
    %4576 = vmatpush1.msra.mxu0 0.0
    %4577 = vmatprep.subr.mxu0 0.0
    %4578 = vmatpush1.msra.mxu0 0.0
    %4579 = vmatprep.subr.mxu0 0.0
    %4580 = vmatpush1.msra.mxu0 0.0
    %4581 = vmatprep.subr.mxu0 0.0
    %4582 = vmatpush1.msra.mxu0 0.0
    %4583 = vmatprep.subr.mxu0 0.0
    %4584 = vmatpush1.msra.mxu0 0.0
    %4585 = vmatprep.subr.mxu0 0.0
    %4586 = vmatpush1.msra.mxu0 0.0
    %4587 = vmatprep.subr.mxu0 0.0
    %4588 = vmatpush1.msra.mxu0 0.0
    %4589 = vmatprep.subr.mxu0 0.0
    %4590 = vmatpush1.msra.mxu0 0.0
    %4591 = vmatprep.subr.mxu0 0.0
    %4592 = vmatpush1.msra.mxu0 0.0
    %4593 = vmatprep.subr.mxu0 0.0
    %4594 = vmatpush1.msra.mxu0 0.0
    %4595 = vmatprep.subr.mxu0 0.0
    %4596 = vmatpush1.msra.mxu0 0.0
    %4597 = vmatprep.subr.mxu0 0.0
    %4598 = vmatpush1.msra.mxu0 0.0
    %4599 = vmatprep.subr.mxu0 0.0
    %4600 = vmatpush1.msra.mxu0 0.0
    %4601 = vmatprep.subr.mxu0 0.0
    %4602 = vmatpush1.msra.mxu0 0.0
    %4603 = vmatprep.subr.mxu0 0.0
    %4604 = vmatpush1.msra.mxu0 0.0
    %4605 = vmatprep.subr.mxu0 0.0
    %4606 = vmatpush1.msra.mxu0 0.0
    %4607 = vmatprep.subr.mxu0 0.0
    %4608 = vmatpush1.msra.mxu0 0.0
    %4609 = vmatprep.mubr.f32.mxu0 0.0
    %4610 = vmatmul.mubr.f32.gmra.mrb[0].mxu0 %v4543
    %v4611 = vpop.f32.mrb[0].mxu0
    %v4612 = vadd.f32 0.0, %v4611
    %v4613 = vpop.f32.mrb[0].mxu0
    %4614 = vdwg.mxu0
    %v4616 = vsel %vm4076, %v4019, 0
    %4618 = vmatprep.subr.mxu0 0.0
    %4619 = vmatpush1.msra.mxu0 %v4059
    %4620 = vmatprep.subr.mxu0 0.0
    %4621 = vmatpush1.msra.mxu0 %v4060
    %4622 = vmatprep.subr.mxu0 0.0
    %4623 = vmatpush1.msra.mxu0 %v4061
    %4624 = vmatprep.subr.mxu0 0.0
    %4625 = vmatpush1.msra.mxu0 %v4062
    %4626 = vmatprep.subr.mxu0 0.0
    %4627 = vmatpush1.msra.mxu0 %v4063
    %4628 = vmatprep.subr.mxu0 0.0
    %4629 = vmatpush1.msra.mxu0 %v4064
    %4630 = vmatprep.subr.mxu0 0.0
    %4631 = vmatpush1.msra.mxu0 %v4065
    %4632 = vmatprep.subr.mxu0 0.0
    %4633 = vmatpush1.msra.mxu0 %v4066
    %4634 = vmatprep.subr.mxu0 0.0
    %4635 = vmatpush1.msra.mxu0 0.0
    %4636 = vmatprep.subr.mxu0 0.0
    %4637 = vmatpush1.msra.mxu0 0.0
    %4638 = vmatprep.subr.mxu0 0.0
    %4639 = vmatpush1.msra.mxu0 0.0
    %4640 = vmatprep.subr.mxu0 0.0
    %4641 = vmatpush1.msra.mxu0 0.0
    %4642 = vmatprep.subr.mxu0 0.0
    %4643 = vmatpush1.msra.mxu0 0.0
    %4644 = vmatprep.subr.mxu0 0.0
    %4645 = vmatpush1.msra.mxu0 0.0
    %4646 = vmatprep.subr.mxu0 0.0
    %4647 = vmatpush1.msra.mxu0 0.0
    %4648 = vmatprep.subr.mxu0 0.0
    %4649 = vmatpush1.msra.mxu0 0.0
    %4650 = vmatprep.subr.mxu0 0.0
    %4651 = vmatpush1.msra.mxu0 0.0
    %4652 = vmatprep.subr.mxu0 0.0
    %4653 = vmatpush1.msra.mxu0 0.0
    %4654 = vmatprep.subr.mxu0 0.0
    %4655 = vmatpush1.msra.mxu0 0.0
    %4656 = vmatprep.subr.mxu0 0.0
    %4657 = vmatpush1.msra.mxu0 0.0
    %4658 = vmatprep.subr.mxu0 0.0
    %4659 = vmatpush1.msra.mxu0 0.0
    %4660 = vmatprep.subr.mxu0 0.0
    %4661 = vmatpush1.msra.mxu0 0.0
    %4662 = vmatprep.subr.mxu0 0.0
    %4663 = vmatpush1.msra.mxu0 0.0
    %4664 = vmatprep.subr.mxu0 0.0
    %4665 = vmatpush1.msra.mxu0 0.0
    %4666 = vmatprep.subr.mxu0 0.0
    %4667 = vmatpush1.msra.mxu0 0.0
    %4668 = vmatprep.subr.mxu0 0.0
    %4669 = vmatpush1.msra.mxu0 0.0
    %4670 = vmatprep.subr.mxu0 0.0
    %4671 = vmatpush1.msra.mxu0 0.0
    %4672 = vmatprep.subr.mxu0 0.0
    %4673 = vmatpush1.msra.mxu0 0.0
    %4674 = vmatprep.subr.mxu0 0.0
    %4675 = vmatpush1.msra.mxu0 0.0
    %4676 = vmatprep.subr.mxu0 0.0
    %4677 = vmatpush1.msra.mxu0 0.0
    %4678 = vmatprep.subr.mxu0 0.0
    %4679 = vmatpush1.msra.mxu0 0.0
    %4680 = vmatprep.subr.mxu0 0.0
    %4681 = vmatpush1.msra.mxu0 0.0
    %4682 = vmatprep.mubr.f32.mxu0 0.0
    %4683 = vmatmul.mubr.f32.gmra.mrb[0].mxu0 %v4616
    %v4684 = vpop.f32.mrb[0].mxu0
    %v4685 = vadd.f32 %v4612, %v4684
    %v4686 = vpop.f32.mrb[0].mxu0
    %4687 = vdwg.mxu0
    %s4688 = scalar_lea.vmem [#allocation7], 512
    %v4689 = vld [vmem:[%s4688] sm:$0xff]
    %v4690 = vld [vmem:[%s4688 + $0x8] sm:$0xff]
    %v4691 = vld [vmem:[%s4688 + $0x10] sm:$0xff]
    %v4692 = vld [vmem:[%s4688 + $0x18] sm:$0xff]
    %v4693 = vld [vmem:[%s4688 + $0x20] sm:$0xff]
    %v4694 = vld [vmem:[%s4688 + $0x28] sm:$0xff]
    %v4695 = vld [vmem:[%s4688 + $0x30] sm:$0xff]
    %v4696 = vld [vmem:[%s4688 + $0x38] sm:$0xff]
    %v4698 = vsel %vm4076, %v4024, 0
    %4700 = vmatprep.subr.mxu0 0.0
    %4701 = vmatpush1.msra.mxu0 %v4689
    %4702 = vmatprep.subr.mxu0 0.0
    %4703 = vmatpush1.msra.mxu0 %v4690
    %4704 = vmatprep.subr.mxu0 0.0
    %4705 = vmatpush1.msra.mxu0 %v4691
    %4706 = vmatprep.subr.mxu0 0.0
    %4707 = vmatpush1.msra.mxu0 %v4692
    %4708 = vmatprep.subr.mxu0 0.0
    %4709 = vmatpush1.msra.mxu0 %v4693
    %4710 = vmatprep.subr.mxu0 0.0
    %4711 = vmatpush1.msra.mxu0 %v4694
    %4712 = vmatprep.subr.mxu0 0.0
    %4713 = vmatpush1.msra.mxu0 %v4695
    %4714 = vmatprep.subr.mxu0 0.0
    %4715 = vmatpush1.msra.mxu0 %v4696
    %4716 = vmatprep.subr.mxu0 0.0
    %4717 = vmatpush1.msra.mxu0 0.0
    %4718 = vmatprep.subr.mxu0 0.0
    %4719 = vmatpush1.msra.mxu0 0.0
    %4720 = vmatprep.subr.mxu0 0.0
    %4721 = vmatpush1.msra.mxu0 0.0
    %4722 = vmatprep.subr.mxu0 0.0
    %4723 = vmatpush1.msra.mxu0 0.0
    %4724 = vmatprep.subr.mxu0 0.0
    %4725 = vmatpush1.msra.mxu0 0.0
    %4726 = vmatprep.subr.mxu0 0.0
    %4727 = vmatpush1.msra.mxu0 0.0
    %4728 = vmatprep.subr.mxu0 0.0
    %4729 = vmatpush1.msra.mxu0 0.0
    %4730 = vmatprep.subr.mxu0 0.0
    %4731 = vmatpush1.msra.mxu0 0.0
    %4732 = vmatprep.subr.mxu0 0.0
    %4733 = vmatpush1.msra.mxu0 0.0
    %4734 = vmatprep.subr.mxu0 0.0
    %4735 = vmatpush1.msra.mxu0 0.0
    %4736 = vmatprep.subr.mxu0 0.0
    %4737 = vmatpush1.msra.mxu0 0.0
    %4738 = vmatprep.subr.mxu0 0.0
    %4739 = vmatpush1.msra.mxu0 0.0
    %4740 = vmatprep.subr.mxu0 0.0
    %4741 = vmatpush1.msra.mxu0 0.0
    %4742 = vmatprep.subr.mxu0 0.0
    %4743 = vmatpush1.msra.mxu0 0.0
    %4744 = vmatprep.subr.mxu0 0.0
    %4745 = vmatpush1.msra.mxu0 0.0
    %4746 = vmatprep.subr.mxu0 0.0
    %4747 = vmatpush1.msra.mxu0 0.0
    %4748 = vmatprep.subr.mxu0 0.0
    %4749 = vmatpush1.msra.mxu0 0.0
    %4750 = vmatprep.subr.mxu0 0.0
    %4751 = vmatpush1.msra.mxu0 0.0
    %4752 = vmatprep.subr.mxu0 0.0
    %4753 = vmatpush1.msra.mxu0 0.0
    %4754 = vmatprep.subr.mxu0 0.0
    %4755 = vmatpush1.msra.mxu0 0.0
    %4756 = vmatprep.subr.mxu0 0.0
    %4757 = vmatpush1.msra.mxu0 0.0
    %4758 = vmatprep.subr.mxu0 0.0
    %4759 = vmatpush1.msra.mxu0 0.0
    %4760 = vmatprep.subr.mxu0 0.0
    %4761 = vmatpush1.msra.mxu0 0.0
    %4762 = vmatprep.subr.mxu0 0.0
    %4763 = vmatpush1.msra.mxu0 0.0
    %4764 = vmatprep.mubr.f32.mxu0 0.0
    %4765 = vmatmul.mubr.f32.gmra.mrb[0].mxu0 %v4698
    %v4766 = vpop.f32.mrb[0].mxu0
    %v4767 = vadd.f32 0.0, %v4766
    %v4768 = vpop.f32.mrb[0].mxu0
    %4769 = vdwg.mxu0
    %v4770 = vadd.f32 %v4220, %v4767
    %s4771 = scalar_lea.vmem [#allocation7], 576
    %v4772 = vld [vmem:[%s4771] sm:$0xff]
    %v4773 = vld [vmem:[%s4771 + $0x8] sm:$0xff]
    %v4774 = vld [vmem:[%s4771 + $0x10] sm:$0xff]
    %v4775 = vld [vmem:[%s4771 + $0x18] sm:$0xff]
    %v4776 = vld [vmem:[%s4771 + $0x20] sm:$0xff]
    %v4777 = vld [vmem:[%s4771 + $0x28] sm:$0xff]
    %v4778 = vld [vmem:[%s4771 + $0x30] sm:$0xff]
    %v4779 = vld [vmem:[%s4771 + $0x38] sm:$0xff]
    %v4781 = vsel %vm4076, %v4025, 0
    %4783 = vmatprep.subr.mxu0 0.0
    %4784 = vmatpush1.msra.mxu0 %v4772
    %4785 = vmatprep.subr.mxu0 0.0
    %4786 = vmatpush1.msra.mxu0 %v4773
    %4787 = vmatprep.subr.mxu0 0.0
    %4788 = vmatpush1.msra.mxu0 %v4774
    %4789 = vmatprep.subr.mxu0 0.0
    %4790 = vmatpush1.msra.mxu0 %v4775
    %4791 = vmatprep.subr.mxu0 0.0
    %4792 = vmatpush1.msra.mxu0 %v4776
    %4793 = vmatprep.subr.mxu0 0.0
    %4794 = vmatpush1.msra.mxu0 %v4777
    %4795 = vmatprep.subr.mxu0 0.0
    %4796 = vmatpush1.msra.mxu0 %v4778
    %4797 = vmatprep.subr.mxu0 0.0
    %4798 = vmatpush1.msra.mxu0 %v4779
    %4799 = vmatprep.subr.mxu0 0.0
    %4800 = vmatpush1.msra.mxu0 0.0
    %4801 = vmatprep.subr.mxu0 0.0
    %4802 = vmatpush1.msra.mxu0 0.0
    %4803 = vmatprep.subr.mxu0 0.0
    %4804 = vmatpush1.msra.mxu0 0.0
    %4805 = vmatprep.subr.mxu0 0.0
    %4806 = vmatpush1.msra.mxu0 0.0
    %4807 = vmatprep.subr.mxu0 0.0
    %4808 = vmatpush1.msra.mxu0 0.0
    %4809 = vmatprep.subr.mxu0 0.0
    %4810 = vmatpush1.msra.mxu0 0.0
    %4811 = vmatprep.subr.mxu0 0.0
    %4812 = vmatpush1.msra.mxu0 0.0
    %4813 = vmatprep.subr.mxu0 0.0
    %4814 = vmatpush1.msra.mxu0 0.0
    %4815 = vmatprep.subr.mxu0 0.0
    %4816 = vmatpush1.msra.mxu0 0.0
    %4817 = vmatprep.subr.mxu0 0.0
    %4818 = vmatpush1.msra.mxu0 0.0
    %4819 = vmatprep.subr.mxu0 0.0
    %4820 = vmatpush1.msra.mxu0 0.0
    %4821 = vmatprep.subr.mxu0 0.0
    %4822 = vmatpush1.msra.mxu0 0.0
    %4823 = vmatprep.subr.mxu0 0.0
    %4824 = vmatpush1.msra.mxu0 0.0
    %4825 = vmatprep.subr.mxu0 0.0
    %4826 = vmatpush1.msra.mxu0 0.0
    %4827 = vmatprep.subr.mxu0 0.0
    %4828 = vmatpush1.msra.mxu0 0.0
    %4829 = vmatprep.subr.mxu0 0.0
    %4830 = vmatpush1.msra.mxu0 0.0
    %4831 = vmatprep.subr.mxu0 0.0
    %4832 = vmatpush1.msra.mxu0 0.0
    %4833 = vmatprep.subr.mxu0 0.0
    %4834 = vmatpush1.msra.mxu0 0.0
    %4835 = vmatprep.subr.mxu0 0.0
    %4836 = vmatpush1.msra.mxu0 0.0
    %4837 = vmatprep.subr.mxu0 0.0
    %4838 = vmatpush1.msra.mxu0 0.0
    %4839 = vmatprep.subr.mxu0 0.0
    %4840 = vmatpush1.msra.mxu0 0.0
    %4841 = vmatprep.subr.mxu0 0.0
    %4842 = vmatpush1.msra.mxu0 0.0
    %4843 = vmatprep.subr.mxu0 0.0
    %4844 = vmatpush1.msra.mxu0 0.0
    %4845 = vmatprep.subr.mxu0 0.0
    %4846 = vmatpush1.msra.mxu0 0.0
    %4847 = vmatprep.mubr.f32.mxu0 0.0
    %4848 = vmatmul.mubr.f32.gmra.mrb[0].mxu0 %v4781
    %v4849 = vpop.f32.mrb[0].mxu0
    %v4850 = vadd.f32 0.0, %v4849
    %v4851 = vpop.f32.mrb[0].mxu0
    %4852 = vdwg.mxu0
    %v4853 = vadd.f32 %v4375, %v4850
    %s4854 = scalar_lea.vmem [#allocation7], 640
    %v4855 = vld [vmem:[%s4854] sm:$0xff]
    %v4856 = vld [vmem:[%s4854 + $0x8] sm:$0xff]
    %v4857 = vld [vmem:[%s4854 + $0x10] sm:$0xff]
    %v4858 = vld [vmem:[%s4854 + $0x18] sm:$0xff]
    %v4859 = vld [vmem:[%s4854 + $0x20] sm:$0xff]
    %v4860 = vld [vmem:[%s4854 + $0x28] sm:$0xff]
    %v4861 = vld [vmem:[%s4854 + $0x30] sm:$0xff]
    %v4862 = vld [vmem:[%s4854 + $0x38] sm:$0xff]
    %v4864 = vsel %vm4076, %v4026, 0
    %4866 = vmatprep.subr.mxu0 0.0
    %4867 = vmatpush1.msra.mxu0 %v4855
    %4868 = vmatprep.subr.mxu0 0.0
    %4869 = vmatpush1.msra.mxu0 %v4856
    %4870 = vmatprep.subr.mxu0 0.0
    %4871 = vmatpush1.msra.mxu0 %v4857
    %4872 = vmatprep.subr.mxu0 0.0
    %4873 = vmatpush1.msra.mxu0 %v4858
    %4874 = vmatprep.subr.mxu0 0.0
    %4875 = vmatpush1.msra.mxu0 %v4859
    %4876 = vmatprep.subr.mxu0 0.0
    %4877 = vmatpush1.msra.mxu0 %v4860
    %4878 = vmatprep.subr.mxu0 0.0
    %4879 = vmatpush1.msra.mxu0 %v4861
    %4880 = vmatprep.subr.mxu0 0.0
    %4881 = vmatpush1.msra.mxu0 %v4862
    %4882 = vmatprep.subr.mxu0 0.0
    %4883 = vmatpush1.msra.mxu0 0.0
    %4884 = vmatprep.subr.mxu0 0.0
    %4885 = vmatpush1.msra.mxu0 0.0
    %4886 = vmatprep.subr.mxu0 0.0
    %4887 = vmatpush1.msra.mxu0 0.0
    %4888 = vmatprep.subr.mxu0 0.0
    %4889 = vmatpush1.msra.mxu0 0.0
    %4890 = vmatprep.subr.mxu0 0.0
    %4891 = vmatpush1.msra.mxu0 0.0
    %4892 = vmatprep.subr.mxu0 0.0
    %4893 = vmatpush1.msra.mxu0 0.0
    %4894 = vmatprep.subr.mxu0 0.0
    %4895 = vmatpush1.msra.mxu0 0.0
    %4896 = vmatprep.subr.mxu0 0.0
    %4897 = vmatpush1.msra.mxu0 0.0
    %4898 = vmatprep.subr.mxu0 0.0
    %4899 = vmatpush1.msra.mxu0 0.0
    %4900 = vmatprep.subr.mxu0 0.0
    %4901 = vmatpush1.msra.mxu0 0.0
    %4902 = vmatprep.subr.mxu0 0.0
    %4903 = vmatpush1.msra.mxu0 0.0
    %4904 = vmatprep.subr.mxu0 0.0
    %4905 = vmatpush1.msra.mxu0 0.0
    %4906 = vmatprep.subr.mxu0 0.0
    %4907 = vmatpush1.msra.mxu0 0.0
    %4908 = vmatprep.subr.mxu0 0.0
    %4909 = vmatpush1.msra.mxu0 0.0
    %4910 = vmatprep.subr.mxu0 0.0
    %4911 = vmatpush1.msra.mxu0 0.0
    %4912 = vmatprep.subr.mxu0 0.0
    %4913 = vmatpush1.msra.mxu0 0.0
    %4914 = vmatprep.subr.mxu0 0.0
    %4915 = vmatpush1.msra.mxu0 0.0
    %4916 = vmatprep.subr.mxu0 0.0
    %4917 = vmatpush1.msra.mxu0 0.0
    %4918 = vmatprep.subr.mxu0 0.0
    %4919 = vmatpush1.msra.mxu0 0.0
    %4920 = vmatprep.subr.mxu0 0.0
    %4921 = vmatpush1.msra.mxu0 0.0
    %4922 = vmatprep.subr.mxu0 0.0
    %4923 = vmatpush1.msra.mxu0 0.0
    %4924 = vmatprep.subr.mxu0 0.0
    %4925 = vmatpush1.msra.mxu0 0.0
    %4926 = vmatprep.subr.mxu0 0.0
    %4927 = vmatpush1.msra.mxu0 0.0
    %4928 = vmatprep.subr.mxu0 0.0
    %4929 = vmatpush1.msra.mxu0 0.0
    %4930 = vmatprep.mubr.f32.mxu0 0.0
    %4931 = vmatmul.mubr.f32.gmra.mrb[0].mxu0 %v4864
    %v4932 = vpop.f32.mrb[0].mxu0
    %v4933 = vadd.f32 0.0, %v4932
    %v4934 = vpop.f32.mrb[0].mxu0
    %4935 = vdwg.mxu0
    %v4936 = vadd.f32 %v4530, %v4933
    %s4937 = scalar_lea.vmem [#allocation7], 704
    %v4938 = vld [vmem:[%s4937] sm:$0xff]
    %v4939 = vld [vmem:[%s4937 + $0x8] sm:$0xff]
    %v4940 = vld [vmem:[%s4937 + $0x10] sm:$0xff]
    %v4941 = vld [vmem:[%s4937 + $0x18] sm:$0xff]
    %v4942 = vld [vmem:[%s4937 + $0x20] sm:$0xff]
    %v4943 = vld [vmem:[%s4937 + $0x28] sm:$0xff]
    %v4944 = vld [vmem:[%s4937 + $0x30] sm:$0xff]
    %v4945 = vld [vmem:[%s4937 + $0x38] sm:$0xff]
    %v4947 = vsel %vm4076, %v4027, 0
    %4949 = vmatprep.subr.mxu0 0.0
    %4950 = vmatpush1.msra.mxu0 %v4938
    %4951 = vmatprep.subr.mxu0 0.0
    %4952 = vmatpush1.msra.mxu0 %v4939
    %4953 = vmatprep.subr.mxu0 0.0
    %4954 = vmatpush1.msra.mxu0 %v4940
    %4955 = vmatprep.subr.mxu0 0.0
    %4956 = vmatpush1.msra.mxu0 %v4941
    %4957 = vmatprep.subr.mxu0 0.0
    %4958 = vmatpush1.msra.mxu0 %v4942
    %4959 = vmatprep.subr.mxu0 0.0
    %4960 = vmatpush1.msra.mxu0 %v4943
    %4961 = vmatprep.subr.mxu0 0.0
    %4962 = vmatpush1.msra.mxu0 %v4944
    %4963 = vmatprep.subr.mxu0 0.0
    %4964 = vmatpush1.msra.mxu0 %v4945
    %4965 = vmatprep.subr.mxu0 0.0
    %4966 = vmatpush1.msra.mxu0 0.0
    %4967 = vmatprep.subr.mxu0 0.0
    %4968 = vmatpush1.msra.mxu0 0.0
    %4969 = vmatprep.subr.mxu0 0.0
    %4970 = vmatpush1.msra.mxu0 0.0
    %4971 = vmatprep.subr.mxu0 0.0
    %4972 = vmatpush1.msra.mxu0 0.0
    %4973 = vmatprep.subr.mxu0 0.0
    %4974 = vmatpush1.msra.mxu0 0.0
    %4975 = vmatprep.subr.mxu0 0.0
    %4976 = vmatpush1.msra.mxu0 0.0
    %4977 = vmatprep.subr.mxu0 0.0
    %4978 = vmatpush1.msra.mxu0 0.0
    %4979 = vmatprep.subr.mxu0 0.0
    %4980 = vmatpush1.msra.mxu0 0.0
    %4981 = vmatprep.subr.mxu0 0.0
    %4982 = vmatpush1.msra.mxu0 0.0
    %4983 = vmatprep.subr.mxu0 0.0
    %4984 = vmatpush1.msra.mxu0 0.0
    %4985 = vmatprep.subr.mxu0 0.0
    %4986 = vmatpush1.msra.mxu0 0.0
    %4987 = vmatprep.subr.mxu0 0.0
    %4988 = vmatpush1.msra.mxu0 0.0
    %4989 = vmatprep.subr.mxu0 0.0
    %4990 = vmatpush1.msra.mxu0 0.0
    %4991 = vmatprep.subr.mxu0 0.0
    %4992 = vmatpush1.msra.mxu0 0.0
    %4993 = vmatprep.subr.mxu0 0.0
    %4994 = vmatpush1.msra.mxu0 0.0
    %4995 = vmatprep.subr.mxu0 0.0
    %4996 = vmatpush1.msra.mxu0 0.0
    %4997 = vmatprep.subr.mxu0 0.0
    %4998 = vmatpush1.msra.mxu0 0.0
    %4999 = vmatprep.subr.mxu0 0.0
    %5000 = vmatpush1.msra.mxu0 0.0
    %5001 = vmatprep.subr.mxu0 0.0
    %5002 = vmatpush1.msra.mxu0 0.0
    %5003 = vmatprep.subr.mxu0 0.0
    %5004 = vmatpush1.msra.mxu0 0.0
    %5005 = vmatprep.subr.mxu0 0.0
    %5006 = vmatpush1.msra.mxu0 0.0
    %5007 = vmatprep.subr.mxu0 0.0
    %5008 = vmatpush1.msra.mxu0 0.0
    %5009 = vmatprep.subr.mxu0 0.0
    %5010 = vmatpush1.msra.mxu0 0.0
    %5011 = vmatprep.subr.mxu0 0.0
    %5012 = vmatpush1.msra.mxu0 0.0
    %5013 = vmatprep.mubr.f32.mxu0 0.0
    %5014 = vmatmul.mubr.f32.gmra.mrb[0].mxu0 %v4947
    %v5015 = vpop.f32.mrb[0].mxu0
    %v5016 = vadd.f32 0.0, %v5015
    %v5017 = vpop.f32.mrb[0].mxu0
    %5018 = vdwg.mxu0
    %v5019 = vadd.f32 %v4685, %v5016
    %s5020 = scalar_lea.vmem [#allocation7], 768
    %v5021 = vld [vmem:[%s5020] sm:$0xff]
    %v5022 = vld [vmem:[%s5020 + $0x8] sm:$0xff]
    %v5023 = vld [vmem:[%s5020 + $0x10] sm:$0xff]
    %v5024 = vld [vmem:[%s5020 + $0x18] sm:$0xff]
    %v5025 = vld [vmem:[%s5020 + $0x20] sm:$0xff]
    %v5026 = vld [vmem:[%s5020 + $0x28] sm:$0xff]
    %v5027 = vld [vmem:[%s5020 + $0x30] sm:$0xff]
    %v5028 = vld [vmem:[%s5020 + $0x38] sm:$0xff]
    %v5030 = vsel %vm4076, %v4028, 0
    %5032 = vmatprep.subr.mxu0 0.0
    %5033 = vmatpush1.msra.mxu0 %v5021
    %5034 = vmatprep.subr.mxu0 0.0
    %5035 = vmatpush1.msra.mxu0 %v5022
    %5036 = vmatprep.subr.mxu0 0.0
    %5037 = vmatpush1.msra.mxu0 %v5023
    %5038 = vmatprep.subr.mxu0 0.0
    %5039 = vmatpush1.msra.mxu0 %v5024
    %5040 = vmatprep.subr.mxu0 0.0
    %5041 = vmatpush1.msra.mxu0 %v5025
    %5042 = vmatprep.subr.mxu0 0.0
    %5043 = vmatpush1.msra.mxu0 %v5026
    %5044 = vmatprep.subr.mxu0 0.0
    %5045 = vmatpush1.msra.mxu0 %v5027
    %5046 = vmatprep.subr.mxu0 0.0
    %5047 = vmatpush1.msra.mxu0 %v5028
    %5048 = vmatprep.subr.mxu0 0.0
    %5049 = vmatpush1.msra.mxu0 0.0
    %5050 = vmatprep.subr.mxu0 0.0
    %5051 = vmatpush1.msra.mxu0 0.0
    %5052 = vmatprep.subr.mxu0 0.0
    %5053 = vmatpush1.msra.mxu0 0.0
    %5054 = vmatprep.subr.mxu0 0.0
    %5055 = vmatpush1.msra.mxu0 0.0
    %5056 = vmatprep.subr.mxu0 0.0
    %5057 = vmatpush1.msra.mxu0 0.0
    %5058 = vmatprep.subr.mxu0 0.0
    %5059 = vmatpush1.msra.mxu0 0.0
    %5060 = vmatprep.subr.mxu0 0.0
    %5061 = vmatpush1.msra.mxu0 0.0
    %5062 = vmatprep.subr.mxu0 0.0
    %5063 = vmatpush1.msra.mxu0 0.0
    %5064 = vmatprep.subr.mxu0 0.0
    %5065 = vmatpush1.msra.mxu0 0.0
    %5066 = vmatprep.subr.mxu0 0.0
    %5067 = vmatpush1.msra.mxu0 0.0
    %5068 = vmatprep.subr.mxu0 0.0
    %5069 = vmatpush1.msra.mxu0 0.0
    %5070 = vmatprep.subr.mxu0 0.0
    %5071 = vmatpush1.msra.mxu0 0.0
    %5072 = vmatprep.subr.mxu0 0.0
    %5073 = vmatpush1.msra.mxu0 0.0
    %5074 = vmatprep.subr.mxu0 0.0
    %5075 = vmatpush1.msra.mxu0 0.0
    %5076 = vmatprep.subr.mxu0 0.0
    %5077 = vmatpush1.msra.mxu0 0.0
    %5078 = vmatprep.subr.mxu0 0.0
    %5079 = vmatpush1.msra.mxu0 0.0
    %5080 = vmatprep.subr.mxu0 0.0
    %5081 = vmatpush1.msra.mxu0 0.0
    %5082 = vmatprep.subr.mxu0 0.0
    %5083 = vmatpush1.msra.mxu0 0.0
    %5084 = vmatprep.subr.mxu0 0.0
    %5085 = vmatpush1.msra.mxu0 0.0
    %5086 = vmatprep.subr.mxu0 0.0
    %5087 = vmatpush1.msra.mxu0 0.0
    %5088 = vmatprep.subr.mxu0 0.0
    %5089 = vmatpush1.msra.mxu0 0.0
    %5090 = vmatprep.subr.mxu0 0.0
    %5091 = vmatpush1.msra.mxu0 0.0
    %5092 = vmatprep.subr.mxu0 0.0
    %5093 = vmatpush1.msra.mxu0 0.0
    %5094 = vmatprep.subr.mxu0 0.0
    %5095 = vmatpush1.msra.mxu0 0.0
    %5096 = vmatprep.mubr.f32.mxu0 0.0
    %5097 = vmatmul.mubr.f32.gmra.mrb[0].mxu0 %v5030
    %v5098 = vpop.f32.mrb[0].mxu0
    %v5099 = vadd.f32 0.0, %v5098
    %v5100 = vpop.f32.mrb[0].mxu0
    %5101 = vdwg.mxu0
    %v5102 = vadd.f32 %v4770, %v5099
    %s5103 = scalar_lea.vmem [#allocation7], 832
    %v5104 = vld [vmem:[%s5103] sm:$0xff]
    %v5105 = vld [vmem:[%s5103 + $0x8] sm:$0xff]
    %v5106 = vld [vmem:[%s5103 + $0x10] sm:$0xff]
    %v5107 = vld [vmem:[%s5103 + $0x18] sm:$0xff]
    %v5108 = vld [vmem:[%s5103 + $0x20] sm:$0xff]
    %v5109 = vld [vmem:[%s5103 + $0x28] sm:$0xff]
    %v5110 = vld [vmem:[%s5103 + $0x30] sm:$0xff]
    %v5111 = vld [vmem:[%s5103 + $0x38] sm:$0xff]
    %v5113 = vsel %vm4076, %v4029, 0
    %5115 = vmatprep.subr.mxu0 0.0
    %5116 = vmatpush1.msra.mxu0 %v5104
    %5117 = vmatprep.subr.mxu0 0.0
    %5118 = vmatpush1.msra.mxu0 %v5105
    %5119 = vmatprep.subr.mxu0 0.0
    %5120 = vmatpush1.msra.mxu0 %v5106
    %5121 = vmatprep.subr.mxu0 0.0
    %5122 = vmatpush1.msra.mxu0 %v5107
    %5123 = vmatprep.subr.mxu0 0.0
    %5124 = vmatpush1.msra.mxu0 %v5108
    %5125 = vmatprep.subr.mxu0 0.0
    %5126 = vmatpush1.msra.mxu0 %v5109
    %5127 = vmatprep.subr.mxu0 0.0
    %5128 = vmatpush1.msra.mxu0 %v5110
    %5129 = vmatprep.subr.mxu0 0.0
    %5130 = vmatpush1.msra.mxu0 %v5111
    %5131 = vmatprep.subr.mxu0 0.0
    %5132 = vmatpush1.msra.mxu0 0.0
    %5133 = vmatprep.subr.mxu0 0.0
    %5134 = vmatpush1.msra.mxu0 0.0
    %5135 = vmatprep.subr.mxu0 0.0
    %5136 = vmatpush1.msra.mxu0 0.0
    %5137 = vmatprep.subr.mxu0 0.0
    %5138 = vmatpush1.msra.mxu0 0.0
    %5139 = vmatprep.subr.mxu0 0.0
    %5140 = vmatpush1.msra.mxu0 0.0
    %5141 = vmatprep.subr.mxu0 0.0
    %5142 = vmatpush1.msra.mxu0 0.0
    %5143 = vmatprep.subr.mxu0 0.0
    %5144 = vmatpush1.msra.mxu0 0.0
    %5145 = vmatprep.subr.mxu0 0.0
    %5146 = vmatpush1.msra.mxu0 0.0
    %5147 = vmatprep.subr.mxu0 0.0
    %5148 = vmatpush1.msra.mxu0 0.0
    %5149 = vmatprep.subr.mxu0 0.0
    %5150 = vmatpush1.msra.mxu0 0.0
    %5151 = vmatprep.subr.mxu0 0.0
    %5152 = vmatpush1.msra.mxu0 0.0
    %5153 = vmatprep.subr.mxu0 0.0
    %5154 = vmatpush1.msra.mxu0 0.0
    %5155 = vmatprep.subr.mxu0 0.0
    %5156 = vmatpush1.msra.mxu0 0.0
    %5157 = vmatprep.subr.mxu0 0.0
    %5158 = vmatpush1.msra.mxu0 0.0
    %5159 = vmatprep.subr.mxu0 0.0
    %5160 = vmatpush1.msra.mxu0 0.0
    %5161 = vmatprep.subr.mxu0 0.0
    %5162 = vmatpush1.msra.mxu0 0.0
    %5163 = vmatprep.subr.mxu0 0.0
    %5164 = vmatpush1.msra.mxu0 0.0
    %5165 = vmatprep.subr.mxu0 0.0
    %5166 = vmatpush1.msra.mxu0 0.0
    %5167 = vmatprep.subr.mxu0 0.0
    %5168 = vmatpush1.msra.mxu0 0.0
    %5169 = vmatprep.subr.mxu0 0.0
    %5170 = vmatpush1.msra.mxu0 0.0
    %5171 = vmatprep.subr.mxu0 0.0
    %5172 = vmatpush1.msra.mxu0 0.0
    %5173 = vmatprep.subr.mxu0 0.0
    %5174 = vmatpush1.msra.mxu0 0.0
    %5175 = vmatprep.subr.mxu0 0.0
    %5176 = vmatpush1.msra.mxu0 0.0
    %5177 = vmatprep.subr.mxu0 0.0
    %5178 = vmatpush1.msra.mxu0 0.0
    %5179 = vmatprep.mubr.f32.mxu0 0.0
    %5180 = vmatmul.mubr.f32.gmra.mrb[0].mxu0 %v5113
    %v5181 = vpop.f32.mrb[0].mxu0
    %v5182 = vadd.f32 0.0, %v5181
    %v5183 = vpop.f32.mrb[0].mxu0
    %5184 = vdwg.mxu0
    %v5185 = vadd.f32 %v4853, %v5182
    %s5186 = scalar_lea.vmem [#allocation7], 896
    %v5187 = vld [vmem:[%s5186] sm:$0xff]
    %v5188 = vld [vmem:[%s5186 + $0x8] sm:$0xff]
    %v5189 = vld [vmem:[%s5186 + $0x10] sm:$0xff]
    %v5190 = vld [vmem:[%s5186 + $0x18] sm:$0xff]
    %v5191 = vld [vmem:[%s5186 + $0x20] sm:$0xff]
    %v5192 = vld [vmem:[%s5186 + $0x28] sm:$0xff]
    %v5193 = vld [vmem:[%s5186 + $0x30] sm:$0xff]
    %v5194 = vld [vmem:[%s5186 + $0x38] sm:$0xff]
    %v5196 = vsel %vm4076, %v4030, 0
    %5198 = vmatprep.subr.mxu0 0.0
    %5199 = vmatpush1.msra.mxu0 %v5187
    %5200 = vmatprep.subr.mxu0 0.0
    %5201 = vmatpush1.msra.mxu0 %v5188
    %5202 = vmatprep.subr.mxu0 0.0
    %5203 = vmatpush1.msra.mxu0 %v5189
    %5204 = vmatprep.subr.mxu0 0.0
    %5205 = vmatpush1.msra.mxu0 %v5190
    %5206 = vmatprep.subr.mxu0 0.0
    %5207 = vmatpush1.msra.mxu0 %v5191
    %5208 = vmatprep.subr.mxu0 0.0
    %5209 = vmatpush1.msra.mxu0 %v5192
    %5210 = vmatprep.subr.mxu0 0.0
    %5211 = vmatpush1.msra.mxu0 %v5193
    %5212 = vmatprep.subr.mxu0 0.0
    %5213 = vmatpush1.msra.mxu0 %v5194
    %5214 = vmatprep.subr.mxu0 0.0
    %5215 = vmatpush1.msra.mxu0 0.0
    %5216 = vmatprep.subr.mxu0 0.0
    %5217 = vmatpush1.msra.mxu0 0.0
    %5218 = vmatprep.subr.mxu0 0.0
    %5219 = vmatpush1.msra.mxu0 0.0
    %5220 = vmatprep.subr.mxu0 0.0
    %5221 = vmatpush1.msra.mxu0 0.0
    %5222 = vmatprep.subr.mxu0 0.0
    %5223 = vmatpush1.msra.mxu0 0.0
    %5224 = vmatprep.subr.mxu0 0.0
    %5225 = vmatpush1.msra.mxu0 0.0
    %5226 = vmatprep.subr.mxu0 0.0
    %5227 = vmatpush1.msra.mxu0 0.0
    %5228 = vmatprep.subr.mxu0 0.0
    %5229 = vmatpush1.msra.mxu0 0.0
    %5230 = vmatprep.subr.mxu0 0.0
    %5231 = vmatpush1.msra.mxu0 0.0
    %5232 = vmatprep.subr.mxu0 0.0
    %5233 = vmatpush1.msra.mxu0 0.0
    %5234 = vmatprep.subr.mxu0 0.0
    %5235 = vmatpush1.msra.mxu0 0.0
    %5236 = vmatprep.subr.mxu0 0.0
    %5237 = vmatpush1.msra.mxu0 0.0
    %5238 = vmatprep.subr.mxu0 0.0
    %5239 = vmatpush1.msra.mxu0 0.0
    %5240 = vmatprep.subr.mxu0 0.0
    %5241 = vmatpush1.msra.mxu0 0.0
    %5242 = vmatprep.subr.mxu0 0.0
    %5243 = vmatpush1.msra.mxu0 0.0
    %5244 = vmatprep.subr.mxu0 0.0
    %5245 = vmatpush1.msra.mxu0 0.0
    %5246 = vmatprep.subr.mxu0 0.0
    %5247 = vmatpush1.msra.mxu0 0.0
    %5248 = vmatprep.subr.mxu0 0.0
    %5249 = vmatpush1.msra.mxu0 0.0
    %5250 = vmatprep.subr.mxu0 0.0
    %5251 = vmatpush1.msra.mxu0 0.0
    %5252 = vmatprep.subr.mxu0 0.0
    %5253 = vmatpush1.msra.mxu0 0.0
    %5254 = vmatprep.subr.mxu0 0.0
    %5255 = vmatpush1.msra.mxu0 0.0
    %5256 = vmatprep.subr.mxu0 0.0
    %5257 = vmatpush1.msra.mxu0 0.0
    %5258 = vmatprep.subr.mxu0 0.0
    %5259 = vmatpush1.msra.mxu0 0.0
    %5260 = vmatprep.subr.mxu0 0.0
    %5261 = vmatpush1.msra.mxu0 0.0
    %5262 = vmatprep.mubr.f32.mxu0 0.0
    %5263 = vmatmul.mubr.f32.gmra.mrb[0].mxu0 %v5196
    %v5264 = vpop.f32.mrb[0].mxu0
    %v5265 = vadd.f32 0.0, %v5264
    %v5266 = vpop.f32.mrb[0].mxu0
    %5267 = vdwg.mxu0
    %v5268 = vadd.f32 %v4936, %v5265
    %s5269 = scalar_lea.vmem [#allocation7], 960
    %v5270 = vld [vmem:[%s5269] sm:$0xff]
    %v5271 = vld [vmem:[%s5269 + $0x8] sm:$0xff]
    %v5272 = vld [vmem:[%s5269 + $0x10] sm:$0xff]
    %v5273 = vld [vmem:[%s5269 + $0x18] sm:$0xff]
    %v5274 = vld [vmem:[%s5269 + $0x20] sm:$0xff]
    %v5275 = vld [vmem:[%s5269 + $0x28] sm:$0xff]
    %v5276 = vld [vmem:[%s5269 + $0x30] sm:$0xff]
    %v5277 = vld [vmem:[%s5269 + $0x38] sm:$0xff]
    %v5279 = vsel %vm4076, %v4031, 0
    %5281 = vmatprep.subr.mxu0 0.0
    %5282 = vmatpush1.msra.mxu0 %v5270
    %5283 = vmatprep.subr.mxu0 0.0
    %5284 = vmatpush1.msra.mxu0 %v5271
    %5285 = vmatprep.subr.mxu0 0.0
    %5286 = vmatpush1.msra.mxu0 %v5272
    %5287 = vmatprep.subr.mxu0 0.0
    %5288 = vmatpush1.msra.mxu0 %v5273
    %5289 = vmatprep.subr.mxu0 0.0
    %5290 = vmatpush1.msra.mxu0 %v5274
    %5291 = vmatprep.subr.mxu0 0.0
    %5292 = vmatpush1.msra.mxu0 %v5275
    %5293 = vmatprep.subr.mxu0 0.0
    %5294 = vmatpush1.msra.mxu0 %v5276
    %5295 = vmatprep.subr.mxu0 0.0
    %5296 = vmatpush1.msra.mxu0 %v5277
    %5297 = vmatprep.subr.mxu0 0.0
    %5298 = vmatpush1.msra.mxu0 0.0
    %5299 = vmatprep.subr.mxu0 0.0
    %5300 = vmatpush1.msra.mxu0 0.0
    %5301 = vmatprep.subr.mxu0 0.0
    %5302 = vmatpush1.msra.mxu0 0.0
    %5303 = vmatprep.subr.mxu0 0.0
    %5304 = vmatpush1.msra.mxu0 0.0
    %5305 = vmatprep.subr.mxu0 0.0
    %5306 = vmatpush1.msra.mxu0 0.0
    %5307 = vmatprep.subr.mxu0 0.0
    %5308 = vmatpush1.msra.mxu0 0.0
    %5309 = vmatprep.subr.mxu0 0.0
    %5310 = vmatpush1.msra.mxu0 0.0
    %5311 = vmatprep.subr.mxu0 0.0
    %5312 = vmatpush1.msra.mxu0 0.0
    %5313 = vmatprep.subr.mxu0 0.0
    %5314 = vmatpush1.msra.mxu0 0.0
    %5315 = vmatprep.subr.mxu0 0.0
    %5316 = vmatpush1.msra.mxu0 0.0
    %5317 = vmatprep.subr.mxu0 0.0
    %5318 = vmatpush1.msra.mxu0 0.0
    %5319 = vmatprep.subr.mxu0 0.0
    %5320 = vmatpush1.msra.mxu0 0.0
    %5321 = vmatprep.subr.mxu0 0.0
    %5322 = vmatpush1.msra.mxu0 0.0
    %5323 = vmatprep.subr.mxu0 0.0
    %5324 = vmatpush1.msra.mxu0 0.0
    %5325 = vmatprep.subr.mxu0 0.0
    %5326 = vmatpush1.msra.mxu0 0.0
    %5327 = vmatprep.subr.mxu0 0.0
    %5328 = vmatpush1.msra.mxu0 0.0
    %5329 = vmatprep.subr.mxu0 0.0
    %5330 = vmatpush1.msra.mxu0 0.0
    %5331 = vmatprep.subr.mxu0 0.0
    %5332 = vmatpush1.msra.mxu0 0.0
    %5333 = vmatprep.subr.mxu0 0.0
    %5334 = vmatpush1.msra.mxu0 0.0
    %5335 = vmatprep.subr.mxu0 0.0
    %5336 = vmatpush1.msra.mxu0 0.0
    %5337 = vmatprep.subr.mxu0 0.0
    %5338 = vmatpush1.msra.mxu0 0.0
    %5339 = vmatprep.subr.mxu0 0.0
    %5340 = vmatpush1.msra.mxu0 0.0
    %5341 = vmatprep.subr.mxu0 0.0
    %5342 = vmatpush1.msra.mxu0 0.0
    %5343 = vmatprep.subr.mxu0 0.0
    %5344 = vmatpush1.msra.mxu0 0.0
    %5345 = vmatprep.mubr.f32.mxu0 0.0
    %5346 = vmatmul.mubr.f32.gmra.mrb[0].mxu0 %v5279
    %v5347 = vpop.f32.mrb[0].mxu0
    %v5348 = vadd.f32 0.0, %v5347
    %v5349 = vpop.f32.mrb[0].mxu0
    %5350 = vdwg.mxu0
    %v5351 = vadd.f32 %v5019, %v5348
    %v5352 = vadd.f32 %v5102, %v5185
    %v5353 = vadd.f32 %v5268, %v5351
    %v5354 = vadd.f32 %v5352, %v5353
    %v5355 = vld [vmem:[%s4] sm:$0x1]
    %v5357 = vlaneseq
    %v5358 = vshrl.u32 %v5357, 7
    %v5359 = vsub.s32 0, %v5358
    %v5360 = vrot.slane %v5355, %v5359
    %v5362 = vmul.f32 %v5354, %v5360
    %v5363 = vld [vmem:[%s5] sm:$0x1]
    %v5365 = vlaneseq
    %v5366 = vshrl.u32 %v5365, 7
    %v5367 = vsub.s32 0, %v5366
    %v5368 = vrot.slane %v5363, %v5367
    %v5370 = vadd.f32 %v5362, %v5368
    %v5371 = vmax.f32 %v5370, 0.0
    %v5372 = vld [vmem:[#allocation8] sm:$0xff]
    %v5373 = vld [vmem:[#allocation8 + $0x8] sm:$0xff]
    %v5374 = vld [vmem:[#allocation8 + $0x10] sm:$0xff]
    %v5375 = vld [vmem:[#allocation8 + $0x18] sm:$0xff]
    %v5376 = vld [vmem:[#allocation8 + $0x20] sm:$0xff]
    %v5377 = vld [vmem:[#allocation8 + $0x28] sm:$0xff]
    %v5378 = vld [vmem:[#allocation8 + $0x30] sm:$0xff]
    %v5379 = vld [vmem:[#allocation8 + $0x38] sm:$0xff]
    %v5380 = vld [vmem:[%s7] sm:$0x1]
    %v5382 = vlaneseq
    %v5383 = vshrl.u32 %v5382, 7
    %v5384 = vsub.s32 0, %v5383
    %v5385 = vrot.slane %v5380, %v5384
    %v5388 = vsel %vm4076, %v5371, 0
    %5390 = vmatprep.subr.mxu0 0.0
    %5391 = vmatpush1.msra.mxu0 %v5372
    %5392 = vmatprep.subr.mxu0 0.0
    %5393 = vmatpush1.msra.mxu0 %v5373
    %5394 = vmatprep.subr.mxu0 0.0
    %5395 = vmatpush1.msra.mxu0 %v5374
    %5396 = vmatprep.subr.mxu0 0.0
    %5397 = vmatpush1.msra.mxu0 %v5375
    %5398 = vmatprep.subr.mxu0 0.0
    %5399 = vmatpush1.msra.mxu0 %v5376
    %5400 = vmatprep.subr.mxu0 0.0
    %5401 = vmatpush1.msra.mxu0 %v5377
    %5402 = vmatprep.subr.mxu0 0.0
    %5403 = vmatpush1.msra.mxu0 %v5378
    %5404 = vmatprep.subr.mxu0 0.0
    %5405 = vmatpush1.msra.mxu0 %v5379
    %5406 = vmatprep.subr.mxu0 0.0
    %5407 = vmatpush1.msra.mxu0 0.0
    %5408 = vmatprep.subr.mxu0 0.0
    %5409 = vmatpush1.msra.mxu0 0.0
    %5410 = vmatprep.subr.mxu0 0.0
    %5411 = vmatpush1.msra.mxu0 0.0
    %5412 = vmatprep.subr.mxu0 0.0
    %5413 = vmatpush1.msra.mxu0 0.0
    %5414 = vmatprep.subr.mxu0 0.0
    %5415 = vmatpush1.msra.mxu0 0.0
    %5416 = vmatprep.subr.mxu0 0.0
    %5417 = vmatpush1.msra.mxu0 0.0
    %5418 = vmatprep.subr.mxu0 0.0
    %5419 = vmatpush1.msra.mxu0 0.0
    %5420 = vmatprep.subr.mxu0 0.0
    %5421 = vmatpush1.msra.mxu0 0.0
    %5422 = vmatprep.subr.mxu0 0.0
    %5423 = vmatpush1.msra.mxu0 0.0
    %5424 = vmatprep.subr.mxu0 0.0
    %5425 = vmatpush1.msra.mxu0 0.0
    %5426 = vmatprep.subr.mxu0 0.0
    %5427 = vmatpush1.msra.mxu0 0.0
    %5428 = vmatprep.subr.mxu0 0.0
    %5429 = vmatpush1.msra.mxu0 0.0
    %5430 = vmatprep.subr.mxu0 0.0
    %5431 = vmatpush1.msra.mxu0 0.0
    %5432 = vmatprep.subr.mxu0 0.0
    %5433 = vmatpush1.msra.mxu0 0.0
    %5434 = vmatprep.subr.mxu0 0.0
    %5435 = vmatpush1.msra.mxu0 0.0
    %5436 = vmatprep.subr.mxu0 0.0
    %5437 = vmatpush1.msra.mxu0 0.0
    %5438 = vmatprep.subr.mxu0 0.0
    %5439 = vmatpush1.msra.mxu0 0.0
    %5440 = vmatprep.subr.mxu0 0.0
    %5441 = vmatpush1.msra.mxu0 0.0
    %5442 = vmatprep.subr.mxu0 0.0
    %5443 = vmatpush1.msra.mxu0 0.0
    %5444 = vmatprep.subr.mxu0 0.0
    %5445 = vmatpush1.msra.mxu0 0.0
    %5446 = vmatprep.subr.mxu0 0.0
    %5447 = vmatpush1.msra.mxu0 0.0
    %5448 = vmatprep.subr.mxu0 0.0
    %5449 = vmatpush1.msra.mxu0 0.0
    %5450 = vmatprep.subr.mxu0 0.0
    %5451 = vmatpush1.msra.mxu0 0.0
    %5452 = vmatprep.subr.mxu0 0.0
    %5453 = vmatpush1.msra.mxu0 0.0
    %5454 = vmatprep.mubr.f32.mxu0 0.0
    %5455 = vmatmul.mubr.f32.gmra.mrb[0].mxu0 %v5388
    %v5456 = vpop.f32.mrb[0].mxu0
    %v5457 = vadd.f32 %v5385, %v5456
    %v5458 = vpop.f32.mrb[0].mxu0
    %5459 = vdwg.mxu0
    %5460 = vst [vmem:[#allocation10] sm:$0xff] %v5457
    // Predicated region
    $region50: #{tpu_custom_call.1} parent=1 // pred_check
      _
    $region51: #{tpu_custom_call.1} parent=1 // pred_check_branch
      %5462 = sbr.rel (0) target = $region53
    $region52: #{tpu_custom_call.1} parent=1 // pred_region
      %s5464 = ssub.s32 128, 128
      %5465 = vsyncadd [#allocation4], %s5464
      %s5467 = sshll.u32 [#allocation10], 4
      %s5468 = int_to_ptr.vmem [resolvable:$true] %s5467
      %5470 = dma.vmem_to_hbm [thread:$0]  %s5468, 128, %s8, [#allocation4]
    $region53: #{tpu_custom_call.1} parent=1 // pred_fallthru
      _
    // Predicated region
    $region54: #{tpu_custom_call.1} parent=1 // pred_check
      _
    $region55: #{tpu_custom_call.1} parent=1 // pred_check_branch
      %5472 = sbr.rel (0) target = $region57
    $region56: #{tpu_custom_call.1} parent=1 // pred_region
      %5473 = dma.done [#allocation4], 128
    $region57: #{tpu_custom_call.1} parent=1 // pred_fallthru
      _
    %5474 = vsyncpa [#allocation3], 1
    %5475 = vsyncpa [#allocation6], 1
    %5476 = vsyncpa [#allocation9], 1
    %5477 = vsyncpa [#allocation4], 1

</llo_original>
